<compile_context>
chip_gen: v5e
topology: v5e:2x2
jax: 0.10.0
libtpu: 0.0.40
codegen_flags: <defaults>
</compile_context>

<pallas_src>
import functools

import jax
import jax.numpy as jnp
from jax.experimental import pallas as pl
from jax.experimental.pallas import tpu as pltpu


# ---------------------------------------------------------------------------
# Fused seq2seq kernel (encoder + decoder + fc_out), executed once (grid=(1,))
# ---------------------------------------------------------------------------
def seq2seq_gru_kernel(enc_x_ref, dec_x_ref, enc_w_ref, enc_b_ref,
                       dec_w_ref, dec_b_ref, fc_w_ref, fc_b_ref,
                       pred_ref,
                       gi_enc_scr, gi_dec_scr, pe_dec_scr,
                       *, S, Tm1, Bp, Hp, E, Ed):
    H3 = 3 * Hp

    # ---- hoisted batched input projections (off the sequential path) ------
    # encoder: gi for every timestep, with folded (b_i + b_h) r/z bias + b_in
    gi_enc_scr[...] = (
        jnp.dot(enc_x_ref[...], enc_w_ref[0:E, :],
                preferred_element_type=jnp.float32)
        + enc_b_ref[:, 0:H3])
    # decoder: embedded part of gi for every step
    gi_dec_scr[...] = (
        jnp.dot(dec_x_ref[...], dec_w_ref[0:Ed, :],
                preferred_element_type=jnp.float32)
        + dec_b_ref[:, 0:H3])
    # decoder: embedded part of the fc_out projection for every step
    pe_dec_scr[...] = jnp.dot(dec_x_ref[...], fc_w_ref[0:Ed, :],
                              preferred_element_type=jnp.float32)

    # hoisted broadcasts of the hidden-side n-gate bias
    enc_bhn = jnp.broadcast_to(enc_b_ref[:, H3:H3 + Hp], (Bp, Hp))
    dec_bhn = jnp.broadcast_to(dec_b_ref[:, H3:H3 + Hp], (Bp, Hp))

    # zero-cost ref views of the recurrent / fc weights used inside the loops
    enc_wh_ref = enc_w_ref.at[E:E + Hp, :]
    dec_wh_ref = dec_w_ref.at[Ed + Hp:Ed + 2 * Hp, :]
    fc_wh_ref = fc_w_ref.at[Ed:Ed + Hp, :]

    def gru_step(gi, h, w_h_ref, b_hn):
        # gi already contains input projection + folded biases
        gh = jnp.dot(h, w_h_ref[...], preferred_element_type=jnp.float32)
        r = jax.nn.sigmoid(gi[:, 0:Hp] + gh[:, 0:Hp])
        z = jax.nn.sigmoid(gi[:, Hp:2 * Hp] + gh[:, Hp:2 * Hp])
        n = jnp.tanh(gi[:, 2 * Hp:3 * Hp] + r * (gh[:, 2 * Hp:3 * Hp] + b_hn))
        return (1.0 - z) * n + z * h

    # ---- encoder recurrence (only the h-dependent matmul per step) --------
    def enc_body(t, h):
        off = pl.multiple_of(t * Bp, Bp)
        gi = gi_enc_scr[pl.ds(off, Bp), :]
        return gru_step(gi, h, enc_wh_ref, enc_bhn)

    context = jax.lax.fori_loop(0, S, enc_body,
                                jnp.zeros((Bp, Hp), jnp.float32),
                                unroll=True)

    # ---- decoder: cache context-dependent partial products once -----------
    gi_ctx = jnp.dot(context, dec_w_ref[Ed:Ed + Hp, :],
                     preferred_element_type=jnp.float32)
    p_ctx = (jnp.dot(context, fc_w_ref[Ed + Hp:Ed + 2 * Hp, :],
                     preferred_element_type=jnp.float32)
             + fc_b_ref[...])

    def dec_body(t, h):
        off = pl.multiple_of(t * Bp, Bp)
        gi = gi_dec_scr[pl.ds(off, Bp), :] + gi_ctx
        h_new = gru_step(gi, h, dec_wh_ref, dec_bhn)
        pred = (pe_dec_scr[pl.ds(off, Bp), :]
                + jnp.dot(h_new, fc_wh_ref[...],
                          preferred_element_type=jnp.float32)
                + p_ctx)
        pred_ref[pl.ds(off, Bp), :] = pred
        return h_new

    jax.lax.fori_loop(0, Tm1, dec_body, context, unroll=True)


def _run_seq2seq(enc_x, dec_x, p, *, S, Tm1, Bp, E, Ed, Hp, Vp):
    kernel = functools.partial(seq2seq_gru_kernel,
                               S=S, Tm1=Tm1, Bp=Bp, Hp=Hp, E=E, Ed=Ed)
    return pl.pallas_call(
        kernel,
        out_shape=jax.ShapeDtypeStruct((Tm1 * Bp, Vp), jnp.float32),
        grid=(1,),
        in_specs=[
            pl.BlockSpec((S * Bp, E), lambda i: (0, 0)),            # enc_x
            pl.BlockSpec((Tm1 * Bp, Ed), lambda i: (0, 0)),         # dec_x
            pl.BlockSpec((E + Hp, 3 * Hp), lambda i: (0, 0)),       # enc_w
            pl.BlockSpec((1, 4 * Hp), lambda i: (0, 0)),            # enc_b
            pl.BlockSpec((Ed + 2 * Hp, 3 * Hp), lambda i: (0, 0)),  # dec_w
            pl.BlockSpec((1, 4 * Hp), lambda i: (0, 0)),            # dec_b
            pl.BlockSpec((Ed + 2 * Hp, Vp), lambda i: (0, 0)),      # fc_w
            pl.BlockSpec((1, Vp), lambda i: (0, 0)),                # fc_b
        ],
        out_specs=pl.BlockSpec((Tm1 * Bp, Vp), lambda i: (0, 0)),
        scratch_shapes=[
            pltpu.VMEM((S * Bp, 3 * Hp), jnp.float32),    # hoisted encoder gi
            pltpu.VMEM((Tm1 * Bp, 3 * Hp), jnp.float32),  # hoisted decoder gi
            pltpu.VMEM((Tm1 * Bp, Vp), jnp.float32),      # hoisted fc_out(emb)
        ],
        compiler_params=pltpu.CompilerParams(
            dimension_semantics=("arbitrary",)),
    )(enc_x, dec_x, p['enc_w'], p['enc_b'], p['dec_w'], p['dec_b'],
      p['fc_w'], p['fc_b'])


# ---------------------------------------------------------------------------
# Parameter init: logical weights + padded/fused kernel layout
# Gate order along columns is [r | z | n] (matches PyTorch GRU).
# ---------------------------------------------------------------------------
def _round_up(x, m):
    return ((x + m - 1) // m) * m


def _pad_gate_cols(w, H, Hp):
    """[rows, 3H] -> [rows, 3Hp]; each gate block zero-padded to Hp lanes."""
    out = jnp.zeros((w.shape[0], 3 * Hp), w.dtype)
    for g in range(3):
        out = out.at[:, g * Hp:g * Hp + H].set(w[:, g * H:(g + 1) * H])
    return out


def _pad_gate_vec(b, H, Hp):
    out = jnp.zeros((3 * Hp,), b.dtype)
    for g in range(3):
        out = out.at[g * Hp:g * Hp + H].set(b[g * H:(g + 1) * H])
    return out


def _pad_rows(w, rows_p):
    return jnp.pad(w, ((0, rows_p - w.shape[0]), (0, 0)))


def init_params(key, input_dim, output_dim, enc_emb_dim, dec_emb_dim, hid_dim,
                lane=128):
    keys = jax.random.split(key, 12)
    H, Ee, Ed, V = hid_dim, enc_emb_dim, dec_emb_dim, output_dim
    Hp = _round_up(max(H, lane), lane)
    Vp = _round_up(V, lane)
    s = 1.0 / float(H) ** 0.5
    u = lambda k, shp: jax.random.uniform(k, shp, jnp.float32, -s, s)

    enc_emb = jax.random.normal(keys[0], (input_dim, Ee), jnp.float32)
    dec_emb = jax.random.normal(keys[1], (output_dim, Ed), jnp.float32)

    # --- logical (unpadded) weights; gates fused along the output dim ------
    enc_w_i = u(keys[2], (Ee, 3 * H))
    enc_w_h = u(keys[3], (H, 3 * H))
    enc_b_i = u(keys[4], (3 * H,))
    enc_b_h = u(keys[5], (3 * H,))
    dec_w_i = u(keys[6], (Ed + H, 3 * H))
    dec_w_h = u(keys[7], (H, 3 * H))
    dec_b_i = u(keys[8], (3 * H,))
    dec_b_h = u(keys[9], (3 * H,))
    fc_w = u(keys[10], (Ed + 2 * H, V))
    fc_b = u(keys[11], (V,))

    def fold_bias(b_i, b_h):
        # [ b_ir+b_hr | b_iz+b_hz | b_in ]  then  [ b_hn ]  -> (1, 4Hp)
        fold = jnp.concatenate([b_i[0:H] + b_h[0:H],
                                b_i[H:2 * H] + b_h[H:2 * H],
                                b_i[2 * H:3 * H]])
        bhn = jnp.zeros((Hp,), jnp.float32).at[:H].set(b_h[2 * H:3 * H])
        return jnp.concatenate([_pad_gate_vec(fold, H, Hp), bhn])[None, :]

    enc_w = jnp.concatenate([
        _pad_gate_cols(enc_w_i, H, Hp),                     # rows [0:Ee]
        _pad_rows(_pad_gate_cols(enc_w_h, H, Hp), Hp),      # rows [Ee:Ee+Hp]
    ], axis=0)
    dec_w = jnp.concatenate([
        _pad_gate_cols(dec_w_i[:Ed], H, Hp),                # W_i (embedded)
        _pad_rows(_pad_gate_cols(dec_w_i[Ed:], H, Hp), Hp),  # W_i (context)
        _pad_rows(_pad_gate_cols(dec_w_h, H, Hp), Hp),      # W_h
    ], axis=0)

    pad_v = ((0, 0), (0, Vp - V))
    fc_w_p = jnp.concatenate([
        jnp.pad(fc_w[:Ed], pad_v),                          # embedded part
        _pad_rows(jnp.pad(fc_w[Ed:Ed + H], pad_v), Hp),     # hidden part
        _pad_rows(jnp.pad(fc_w[Ed + H:], pad_v), Hp),       # context part
    ], axis=0)
    fc_b_p = jnp.pad(fc_b, (0, Vp - V))[None, :]

    return {
        'enc_emb': enc_emb, 'dec_emb': dec_emb,
        'enc_w': enc_w, 'enc_b': fold_bias(enc_b_i, enc_b_h),
        'dec_w': dec_w, 'dec_b': fold_bias(dec_b_i, dec_b_h),
        'fc_w': fc_w_p, 'fc_b': fc_b_p,
        # logical copies kept only for the pure-JAX reference check
        'ref': {
            'enc_w_i': enc_w_i, 'enc_w_h': enc_w_h,
            'enc_b_i': enc_b_i, 'enc_b_h': enc_b_h,
            'dec_w_i': dec_w_i, 'dec_w_h': dec_w_h,
            'dec_b_i': dec_b_i, 'dec_b_h': dec_b_h,
            'fc_w': fc_w, 'fc_b': fc_b,
        },
    }


# ---------------------------------------------------------------------------
# Model forward (matches GRU.forward with teacher_forcing_ratio = 1.0)
# ---------------------------------------------------------------------------
@functools.partial(jax.jit, static_argnums=(3,))
def gru_seq2seq_forward(params, src, trg, output_dim):
    S, B = src.shape
    T = trg.shape[0]
    Tm1 = T - 1
    E = params['enc_emb'].shape[1]
    Ed = params['dec_emb'].shape[1]
    Hp = params['enc_w'].shape[1] // 3
    Vp = params['fc_b'].shape[1]
    Bp = max(8, _round_up(B, 8))

    # Embedding lookups (dropout = identity in eval); pad batch to 8 sublanes
    enc_x = params['enc_emb'][src]                          # [S, B, E]
    dec_x = params['dec_emb'][trg[:-1]]                     # [T-1, B, Ed]
    enc_x = jnp.pad(enc_x, ((0, 0), (0, Bp - B), (0, 0))).reshape(S * Bp, E)
    dec_x = jnp.pad(dec_x, ((0, 0), (0, Bp - B), (0, 0))).reshape(Tm1 * Bp, Ed)

    preds = _run_seq2seq(enc_x, dec_x, params,
                         S=S, Tm1=Tm1, Bp=Bp, E=E, Ed=Ed, Hp=Hp, Vp=Vp)
    preds = preds.reshape(Tm1, Bp, Vp)[:, :B, :output_dim]

    outputs = jnp.zeros((T, B, output_dim), jnp.float32)    # outputs[0] stays 0
    return outputs.at[1:].set(preds)


# ---------------------------------------------------------------------------
# Pure-JAX reference (standard GRU equations, unpadded weights)
# ---------------------------------------------------------------------------
def reference_forward(params, src, trg, output_dim):
    r = params['ref']
    H = r['enc_w_h'].shape[0]
    hp = jax.lax.Precision.HIGHEST

    def gru_cell(x, h, w_i, w_h, b_i, b_h):
        gi = jnp.dot(x, w_i, precision=hp) + b_i
        gh = jnp.dot(h, w_h, precision=hp) + b_h
        rr = jax.nn.sigmoid(gi[:, :H] + gh[:, :H])
        zz = jax.nn.sigmoid(gi[:, H:2 * H] + gh[:, H:2 * H])
        nn = jnp.tanh(gi[:, 2 * H:] + rr * gh[:, 2 * H:])
        return (1.0 - zz) * nn + zz * h

    S, B = src.shape
    T = trg.shape[0]
    enc_x = params['enc_emb'][src]
    h = jnp.zeros((B, H), jnp.float32)
    for t in range(S):
        h = gru_cell(enc_x[t], h, r['enc_w_i'], r['enc_w_h'],
                     r['enc_b_i'], r['enc_b_h'])
    context = h

    outs = [jnp.zeros((B, output_dim), jnp.float32)]
    h = context
    for t in range(T - 1):
        emb = params['dec_emb'][trg[t]]
        x = jnp.concatenate([emb, context], axis=1)
        h = gru_cell(x, h, r['dec_w_i'], r['dec_w_h'],
                     r['dec_b_i'], r['dec_b_h'])
        cat = jnp.concatenate([emb, h, context], axis=1)
        outs.append(jnp.dot(cat, r['fc_w'], precision=hp) + r['fc_b'])
    return jnp.stack(outs, axis=0)


# ---------------------------------------------------------------------------
if __name__ == "__main__":
    key = jax.random.PRNGKey(0)
    k_param, k_src, k_trg = jax.random.split(key, 3)

    INPUT_DIM = 30      # len(SRC.vocab)
    OUTPUT_DIM = 40     # len(TRG.vocab)
    ENC_EMB_DIM = 32
    DEC_EMB_DIM = 32
    HID_DIM = 32
    SRC_LEN = 8
    TRG_LEN = 8
    BATCH = 2

    params = init_params(k_param, INPUT_DIM, OUTPUT_DIM,
                         ENC_EMB_DIM, DEC_EMB_DIM, HID_DIM)

    src = jax.random.randint(k_src, (SRC_LEN, BATCH), 0, INPUT_DIM,
                             dtype=jnp.int32)
    trg = jax.random.randint(k_trg, (TRG_LEN, BATCH), 0, OUTPUT_DIM,
                             dtype=jnp.int32)

    out = gru_seq2seq_forward(params, src, trg, OUTPUT_DIM)
    out = jax.block_until_ready(out)
    assert out.shape == (TRG_LEN, BATCH, OUTPUT_DIM), out.shape

    ref = jax.block_until_ready(reference_forward(params, src, trg, OUTPUT_DIM))
    err = float(jnp.max(jnp.abs(out - ref)))
    assert err < 1e-2, f"max abs error vs reference: {err}"

    print("KERNEL_OK")
</pallas_src>

<mosaic_0001>
module attributes {stable_mosaic.version = 11 : i64} {
  func.func @seq2seq_gru_kernel(%arg0: i32, %arg1: memref<64x32xf32, #tpu.memory_space<vmem>>, %arg2: memref<56x32xf32, #tpu.memory_space<vmem>>, %arg3: memref<160x384xf32, #tpu.memory_space<vmem>>, %arg4: memref<1x512xf32, #tpu.memory_space<vmem>>, %arg5: memref<288x384xf32, #tpu.memory_space<vmem>>, %arg6: memref<1x512xf32, #tpu.memory_space<vmem>>, %arg7: memref<288x128xf32, #tpu.memory_space<vmem>>, %arg8: memref<1x128xf32, #tpu.memory_space<vmem>>, %arg9: memref<56x128xf32, #tpu.memory_space<vmem>>, %arg10: memref<64x384xf32, #tpu.memory_space<vmem>>, %arg11: memref<56x384xf32, #tpu.memory_space<vmem>>, %arg12: memref<56x128xf32, #tpu.memory_space<vmem>>) attributes {dimension_semantics = [#tpu.dimension_semantics<arbitrary>], iteration_bounds = array<i64: 1>, scalar_prefetch = 0 : i64, scratch_operands = 3 : i64, tpu.core_type = #tpu.core_type<tc>, window_params = [{pipeline_mode = #tpu.pipeline_mode<synchronous>, transform_indices = @transform_0, window_bounds = array<i64: 64, 32>}, {pipeline_mode = #tpu.pipeline_mode<synchronous>, transform_indices = @transform_1, window_bounds = array<i64: 56, 32>}, {pipeline_mode = #tpu.pipeline_mode<synchronous>, transform_indices = @transform_2, window_bounds = array<i64: 160, 384>}, {pipeline_mode = #tpu.pipeline_mode<synchronous>, transform_indices = @transform_3, window_bounds = array<i64: 1, 512>}, {pipeline_mode = #tpu.pipeline_mode<synchronous>, transform_indices = @transform_4, window_bounds = array<i64: 288, 384>}, {pipeline_mode = #tpu.pipeline_mode<synchronous>, transform_indices = @transform_5, window_bounds = array<i64: 1, 512>}, {pipeline_mode = #tpu.pipeline_mode<synchronous>, transform_indices = @transform_6, window_bounds = array<i64: 288, 128>}, {pipeline_mode = #tpu.pipeline_mode<synchronous>, transform_indices = @transform_7, window_bounds = array<i64: 1, 128>}, {pipeline_mode = #tpu.pipeline_mode<synchronous>, transform_indices = @transform_8, window_bounds = array<i64: 56, 128>}]} {
    %c0 = arith.constant 0 : index
    %c0_0 = arith.constant 0 : index
    %0 = vector.load %arg1[%c0, %c0_0] : memref<64x32xf32, #tpu.memory_space<vmem>>, vector<64x32xf32>
    %c0_1 = arith.constant 0 : index
    %c0_2 = arith.constant 0 : index
    %1 = vector.load %arg3[%c0_1, %c0_2] : memref<160x384xf32, #tpu.memory_space<vmem>>, vector<32x384xf32>
    %cst = arith.constant dense<0.000000e+00> : vector<64x384xf32>
    %2 = tpu.matmul %0, %1, %cst {dimension_numbers = #tpu.dot_dimension_numbers<[1], [0], [0], [1], [0, 0, 1, 1], [], []>} : vector<64x32xf32>, vector<32x384xf32>, vector<64x384xf32> -> vector<64x384xf32>
    %c0_3 = arith.constant 0 : index
    %c0_4 = arith.constant 0 : index
    %3 = vector.load %arg4[%c0_3, %c0_4] : memref<1x512xf32, #tpu.memory_space<vmem>>, vector<1x384xf32>
    %4 = vector.broadcast %3 : vector<1x384xf32> to vector<64x384xf32>
    %5 = arith.addf %2, %4 : vector<64x384xf32>
    %c0_5 = arith.constant 0 : index
    %c0_6 = arith.constant 0 : index
    %6 = vector.load %arg10[%c0_5, %c0_6] : memref<64x384xf32, #tpu.memory_space<vmem>>, vector<64x384xf32>
    tpu.vector_store %arg10[%c0_5, %c0_6], %5 {strides = array<i32>} : memref<64x384xf32, #tpu.memory_space<vmem>>, vector<64x384xf32>,
    %c0_7 = arith.constant 0 : index
    %c0_8 = arith.constant 0 : index
    %7 = vector.load %arg2[%c0_7, %c0_8] : memref<56x32xf32, #tpu.memory_space<vmem>>, vector<56x32xf32>
    %c0_9 = arith.constant 0 : index
    %c0_10 = arith.constant 0 : index
    %8 = vector.load %arg5[%c0_9, %c0_10] : memref<288x384xf32, #tpu.memory_space<vmem>>, vector<32x384xf32>
    %cst_11 = arith.constant dense<0.000000e+00> : vector<56x384xf32>
    %9 = tpu.matmul %7, %8, %cst_11 {dimension_numbers = #tpu.dot_dimension_numbers<[1], [0], [0], [1], [0, 0, 1, 1], [], []>} : vector<56x32xf32>, vector<32x384xf32>, vector<56x384xf32> -> vector<56x384xf32>
    %c0_12 = arith.constant 0 : index
    %c0_13 = arith.constant 0 : index
    %10 = vector.load %arg6[%c0_12, %c0_13] : memref<1x512xf32, #tpu.memory_space<vmem>>, vector<1x384xf32>
    %11 = vector.broadcast %10 : vector<1x384xf32> to vector<56x384xf32>
    %12 = arith.addf %9, %11 : vector<56x384xf32>
    %c0_14 = arith.constant 0 : index
    %c0_15 = arith.constant 0 : index
    %13 = vector.load %arg11[%c0_14, %c0_15] : memref<56x384xf32, #tpu.memory_space<vmem>>, vector<56x384xf32>
    tpu.vector_store %arg11[%c0_14, %c0_15], %12 {strides = array<i32>} : memref<56x384xf32, #tpu.memory_space<vmem>>, vector<56x384xf32>,
    %c0_16 = arith.constant 0 : index
    %c0_17 = arith.constant 0 : index
    %14 = vector.load %arg2[%c0_16, %c0_17] : memref<56x32xf32, #tpu.memory_space<vmem>>, vector<56x32xf32>
    %c0_18 = arith.constant 0 : index
    %c0_19 = arith.constant 0 : index
    %15 = vector.load %arg7[%c0_18, %c0_19] : memref<288x128xf32, #tpu.memory_space<vmem>>, vector<32x128xf32>
    %cst_20 = arith.constant dense<0.000000e+00> : vector<56x128xf32>
    %16 = tpu.matmul %14, %15, %cst_20 {dimension_numbers = #tpu.dot_dimension_numbers<[1], [0], [0], [1], [0, 0, 1, 1], [], []>} : vector<56x32xf32>, vector<32x128xf32>, vector<56x128xf32> -> vector<56x128xf32>
    %c0_21 = arith.constant 0 : index
    %c0_22 = arith.constant 0 : index
    %17 = vector.load %arg12[%c0_21, %c0_22] : memref<56x128xf32, #tpu.memory_space<vmem>>, vector<56x128xf32>
    tpu.vector_store %arg12[%c0_21, %c0_22], %16 {strides = array<i32>} : memref<56x128xf32, #tpu.memory_space<vmem>>, vector<56x128xf32>,
    %c0_23 = arith.constant 0 : index
    %c384 = arith.constant 384 : index
    %18 = vector.load %arg4[%c0_23, %c384] : memref<1x512xf32, #tpu.memory_space<vmem>>, vector<1x128xf32>
    %19 = vector.shape_cast %18 : vector<1x128xf32> to vector<1x128xf32>
    %20 = vector.broadcast %19 : vector<1x128xf32> to vector<8x128xf32>
    %c0_24 = arith.constant 0 : index
    %c384_25 = arith.constant 384 : index
    %21 = vector.load %arg6[%c0_24, %c384_25] : memref<1x512xf32, #tpu.memory_space<vmem>>, vector<1x128xf32>
    %22 = vector.shape_cast %21 : vector<1x128xf32> to vector<1x128xf32>
    %23 = vector.broadcast %22 : vector<1x128xf32> to vector<8x128xf32>
    %cst_26 = arith.constant 0.000000e+00 : f32
    %24 = vector.broadcast %cst_26 : f32 to vector<8x128xf32>
    %c0_i32 = arith.constant 0 : i32
    %c8_i32 = arith.constant 8 : i32
    %25 = arith.muli %c0_i32, %c8_i32 : i32
    %26 = tpu.assume_multiple %25, 8 : i32
    %27 = arith.index_cast %26 : i32 to index
    %c0_27 = arith.constant 0 : index
    %28 = vector.load %arg10[%27, %c0_27] : memref<64x384xf32, #tpu.memory_space<vmem>>, vector<8x384xf32>
    %c32 = arith.constant 32 : index
    %c0_28 = arith.constant 0 : index
    %29 = vector.load %arg3[%c32, %c0_28] : memref<160x384xf32, #tpu.memory_space<vmem>>, vector<128x384xf32>
    %cst_29 = arith.constant dense<0.000000e+00> : vector<8x384xf32>
    %30 = tpu.matmul %24, %29, %cst_29 {dimension_numbers = #tpu.dot_dimension_numbers<[1], [0], [0], [1], [0, 0, 1, 1], [], []>} : vector<8x128xf32>, vector<128x384xf32>, vector<8x384xf32> -> vector<8x384xf32>
    %31 = vector.extract_strided_slice %28 {offsets = [0, 0], sizes = [8, 128], strides = [1, 1]} : vector<8x384xf32> to vector<8x128xf32>
    %32 = vector.extract_strided_slice %30 {offsets = [0, 0], sizes = [8, 128], strides = [1, 1]} : vector<8x384xf32> to vector<8x128xf32>
    %33 = arith.addf %31, %32 : vector<8x128xf32>
    %34 = arith.negf %33 : vector<8x128xf32>
    %35 = math.exp %34 : vector<8x128xf32>
    %cst_30 = arith.constant 1.000000e+00 : f32
    %36 = vector.broadcast %cst_30 : f32 to vector<8x128xf32>
    %37 = arith.addf %36, %35 : vector<8x128xf32>
    %38 = arith.divf %36, %37 : vector<8x128xf32>
    %39 = vector.extract_strided_slice %28 {offsets = [0, 128], sizes = [8, 128], strides = [1, 1]} : vector<8x384xf32> to vector<8x128xf32>
    %40 = vector.extract_strided_slice %30 {offsets = [0, 128], sizes = [8, 128], strides = [1, 1]} : vector<8x384xf32> to vector<8x128xf32>
    %41 = arith.addf %39, %40 : vector<8x128xf32>
    %42 = arith.negf %41 : vector<8x128xf32>
    %43 = math.exp %42 : vector<8x128xf32>
    %cst_31 = arith.constant 1.000000e+00 : f32
    %44 = vector.broadcast %cst_31 : f32 to vector<8x128xf32>
    %45 = arith.addf %44, %43 : vector<8x128xf32>
    %46 = arith.divf %44, %45 : vector<8x128xf32>
    %47 = vector.extract_strided_slice %28 {offsets = [0, 256], sizes = [8, 128], strides = [1, 1]} : vector<8x384xf32> to vector<8x128xf32>
    %48 = vector.extract_strided_slice %30 {offsets = [0, 256], sizes = [8, 128], strides = [1, 1]} : vector<8x384xf32> to vector<8x128xf32>
    %49 = arith.addf %48, %20 : vector<8x128xf32>
    %50 = arith.mulf %38, %49 : vector<8x128xf32>
    %51 = arith.addf %47, %50 : vector<8x128xf32>
    %52 = math.tanh %51 : vector<8x128xf32>
    %cst_32 = arith.constant 1.000000e+00 : f32
    %53 = vector.broadcast %cst_32 : f32 to vector<8x128xf32>
    %54 = arith.subf %53, %46 : vector<8x128xf32>
    %55 = arith.mulf %54, %52 : vector<8x128xf32>
    %56 = arith.mulf %46, %24 : vector<8x128xf32>
    %57 = arith.addf %55, %56 : vector<8x128xf32>
    %c1_i32 = arith.constant 1 : i32
    %c8_i32_33 = arith.constant 8 : i32
    %58 = arith.muli %c1_i32, %c8_i32_33 : i32
    %59 = tpu.assume_multiple %58, 8 : i32
    %60 = arith.index_cast %59 : i32 to index
    %c0_34 = arith.constant 0 : index
    %61 = vector.load %arg10[%60, %c0_34] : memref<64x384xf32, #tpu.memory_space<vmem>>, vector<8x384xf32>
    %c32_35 = arith.constant 32 : index
    %c0_36 = arith.constant 0 : index
    %62 = vector.load %arg3[%c32_35, %c0_36] : memref<160x384xf32, #tpu.memory_space<vmem>>, vector<128x384xf32>
    %cst_37 = arith.constant dense<0.000000e+00> : vector<8x384xf32>
    %63 = tpu.matmul %57, %62, %cst_37 {dimension_numbers = #tpu.dot_dimension_numbers<[1], [0], [0], [1], [0, 0, 1, 1], [], []>} : vector<8x128xf32>, vector<128x384xf32>, vector<8x384xf32> -> vector<8x384xf32>
    %64 = vector.extract_strided_slice %61 {offsets = [0, 0], sizes = [8, 128], strides = [1, 1]} : vector<8x384xf32> to vector<8x128xf32>
    %65 = vector.extract_strided_slice %63 {offsets = [0, 0], sizes = [8, 128], strides = [1, 1]} : vector<8x384xf32> to vector<8x128xf32>
    %66 = arith.addf %64, %65 : vector<8x128xf32>
    %67 = arith.negf %66 : vector<8x128xf32>
    %68 = math.exp %67 : vector<8x128xf32>
    %cst_38 = arith.constant 1.000000e+00 : f32
    %69 = vector.broadcast %cst_38 : f32 to vector<8x128xf32>
    %70 = arith.addf %69, %68 : vector<8x128xf32>
    %71 = arith.divf %69, %70 : vector<8x128xf32>
    %72 = vector.extract_strided_slice %61 {offsets = [0, 128], sizes = [8, 128], strides = [1, 1]} : vector<8x384xf32> to vector<8x128xf32>
    %73 = vector.extract_strided_slice %63 {offsets = [0, 128], sizes = [8, 128], strides = [1, 1]} : vector<8x384xf32> to vector<8x128xf32>
    %74 = arith.addf %72, %73 : vector<8x128xf32>
    %75 = arith.negf %74 : vector<8x128xf32>
    %76 = math.exp %75 : vector<8x128xf32>
    %cst_39 = arith.constant 1.000000e+00 : f32
    %77 = vector.broadcast %cst_39 : f32 to vector<8x128xf32>
    %78 = arith.addf %77, %76 : vector<8x128xf32>
    %79 = arith.divf %77, %78 : vector<8x128xf32>
    %80 = vector.extract_strided_slice %61 {offsets = [0, 256], sizes = [8, 128], strides = [1, 1]} : vector<8x384xf32> to vector<8x128xf32>
    %81 = vector.extract_strided_slice %63 {offsets = [0, 256], sizes = [8, 128], strides = [1, 1]} : vector<8x384xf32> to vector<8x128xf32>
    %82 = arith.addf %81, %20 : vector<8x128xf32>
    %83 = arith.mulf %71, %82 : vector<8x128xf32>
    %84 = arith.addf %80, %83 : vector<8x128xf32>
    %85 = math.tanh %84 : vector<8x128xf32>
    %cst_40 = arith.constant 1.000000e+00 : f32
    %86 = vector.broadcast %cst_40 : f32 to vector<8x128xf32>
    %87 = arith.subf %86, %79 : vector<8x128xf32>
    %88 = arith.mulf %87, %85 : vector<8x128xf32>
    %89 = arith.mulf %79, %57 : vector<8x128xf32>
    %90 = arith.addf %88, %89 : vector<8x128xf32>
    %c2_i32 = arith.constant 2 : i32
    %c8_i32_41 = arith.constant 8 : i32
    %91 = arith.muli %c2_i32, %c8_i32_41 : i32
    %92 = tpu.assume_multiple %91, 8 : i32
    %93 = arith.index_cast %92 : i32 to index
    %c0_42 = arith.constant 0 : index
    %94 = vector.load %arg10[%93, %c0_42] : memref<64x384xf32, #tpu.memory_space<vmem>>, vector<8x384xf32>
    %c32_43 = arith.constant 32 : index
    %c0_44 = arith.constant 0 : index
    %95 = vector.load %arg3[%c32_43, %c0_44] : memref<160x384xf32, #tpu.memory_space<vmem>>, vector<128x384xf32>
    %cst_45 = arith.constant dense<0.000000e+00> : vector<8x384xf32>
    %96 = tpu.matmul %90, %95, %cst_45 {dimension_numbers = #tpu.dot_dimension_numbers<[1], [0], [0], [1], [0, 0, 1, 1], [], []>} : vector<8x128xf32>, vector<128x384xf32>, vector<8x384xf32> -> vector<8x384xf32>
    %97 = vector.extract_strided_slice %94 {offsets = [0, 0], sizes = [8, 128], strides = [1, 1]} : vector<8x384xf32> to vector<8x128xf32>
    %98 = vector.extract_strided_slice %96 {offsets = [0, 0], sizes = [8, 128], strides = [1, 1]} : vector<8x384xf32> to vector<8x128xf32>
    %99 = arith.addf %97, %98 : vector<8x128xf32>
    %100 = arith.negf %99 : vector<8x128xf32>
    %101 = math.exp %100 : vector<8x128xf32>
    %cst_46 = arith.constant 1.000000e+00 : f32
    %102 = vector.broadcast %cst_46 : f32 to vector<8x128xf32>
    %103 = arith.addf %102, %101 : vector<8x128xf32>
    %104 = arith.divf %102, %103 : vector<8x128xf32>
    %105 = vector.extract_strided_slice %94 {offsets = [0, 128], sizes = [8, 128], strides = [1, 1]} : vector<8x384xf32> to vector<8x128xf32>
    %106 = vector.extract_strided_slice %96 {offsets = [0, 128], sizes = [8, 128], strides = [1, 1]} : vector<8x384xf32> to vector<8x128xf32>
    %107 = arith.addf %105, %106 : vector<8x128xf32>
    %108 = arith.negf %107 : vector<8x128xf32>
    %109 = math.exp %108 : vector<8x128xf32>
    %cst_47 = arith.constant 1.000000e+00 : f32
    %110 = vector.broadcast %cst_47 : f32 to vector<8x128xf32>
    %111 = arith.addf %110, %109 : vector<8x128xf32>
    %112 = arith.divf %110, %111 : vector<8x128xf32>
    %113 = vector.extract_strided_slice %94 {offsets = [0, 256], sizes = [8, 128], strides = [1, 1]} : vector<8x384xf32> to vector<8x128xf32>
    %114 = vector.extract_strided_slice %96 {offsets = [0, 256], sizes = [8, 128], strides = [1, 1]} : vector<8x384xf32> to vector<8x128xf32>
    %115 = arith.addf %114, %20 : vector<8x128xf32>
    %116 = arith.mulf %104, %115 : vector<8x128xf32>
    %117 = arith.addf %113, %116 : vector<8x128xf32>
    %118 = math.tanh %117 : vector<8x128xf32>
    %cst_48 = arith.constant 1.000000e+00 : f32
    %119 = vector.broadcast %cst_48 : f32 to vector<8x128xf32>
    %120 = arith.subf %119, %112 : vector<8x128xf32>
    %121 = arith.mulf %120, %118 : vector<8x128xf32>
    %122 = arith.mulf %112, %90 : vector<8x128xf32>
    %123 = arith.addf %121, %122 : vector<8x128xf32>
    %c3_i32 = arith.constant 3 : i32
    %c8_i32_49 = arith.constant 8 : i32
    %124 = arith.muli %c3_i32, %c8_i32_49 : i32
    %125 = tpu.assume_multiple %124, 8 : i32
    %126 = arith.index_cast %125 : i32 to index
    %c0_50 = arith.constant 0 : index
    %127 = vector.load %arg10[%126, %c0_50] : memref<64x384xf32, #tpu.memory_space<vmem>>, vector<8x384xf32>
    %c32_51 = arith.constant 32 : index
    %c0_52 = arith.constant 0 : index
    %128 = vector.load %arg3[%c32_51, %c0_52] : memref<160x384xf32, #tpu.memory_space<vmem>>, vector<128x384xf32>
    %cst_53 = arith.constant dense<0.000000e+00> : vector<8x384xf32>
    %129 = tpu.matmul %123, %128, %cst_53 {dimension_numbers = #tpu.dot_dimension_numbers<[1], [0], [0], [1], [0, 0, 1, 1], [], []>} : vector<8x128xf32>, vector<128x384xf32>, vector<8x384xf32> -> vector<8x384xf32>
    %130 = vector.extract_strided_slice %127 {offsets = [0, 0], sizes = [8, 128], strides = [1, 1]} : vector<8x384xf32> to vector<8x128xf32>
    %131 = vector.extract_strided_slice %129 {offsets = [0, 0], sizes = [8, 128], strides = [1, 1]} : vector<8x384xf32> to vector<8x128xf32>
    %132 = arith.addf %130, %131 : vector<8x128xf32>
    %133 = arith.negf %132 : vector<8x128xf32>
    %134 = math.exp %133 : vector<8x128xf32>
    %cst_54 = arith.constant 1.000000e+00 : f32
    %135 = vector.broadcast %cst_54 : f32 to vector<8x128xf32>
    %136 = arith.addf %135, %134 : vector<8x128xf32>
    %137 = arith.divf %135, %136 : vector<8x128xf32>
    %138 = vector.extract_strided_slice %127 {offsets = [0, 128], sizes = [8, 128], strides = [1, 1]} : vector<8x384xf32> to vector<8x128xf32>
    %139 = vector.extract_strided_slice %129 {offsets = [0, 128], sizes = [8, 128], strides = [1, 1]} : vector<8x384xf32> to vector<8x128xf32>
    %140 = arith.addf %138, %139 : vector<8x128xf32>
    %141 = arith.negf %140 : vector<8x128xf32>
    %142 = math.exp %141 : vector<8x128xf32>
    %cst_55 = arith.constant 1.000000e+00 : f32
    %143 = vector.broadcast %cst_55 : f32 to vector<8x128xf32>
    %144 = arith.addf %143, %142 : vector<8x128xf32>
    %145 = arith.divf %143, %144 : vector<8x128xf32>
    %146 = vector.extract_strided_slice %127 {offsets = [0, 256], sizes = [8, 128], strides = [1, 1]} : vector<8x384xf32> to vector<8x128xf32>
    %147 = vector.extract_strided_slice %129 {offsets = [0, 256], sizes = [8, 128], strides = [1, 1]} : vector<8x384xf32> to vector<8x128xf32>
    %148 = arith.addf %147, %20 : vector<8x128xf32>
    %149 = arith.mulf %137, %148 : vector<8x128xf32>
    %150 = arith.addf %146, %149 : vector<8x128xf32>
    %151 = math.tanh %150 : vector<8x128xf32>
    %cst_56 = arith.constant 1.000000e+00 : f32
    %152 = vector.broadcast %cst_56 : f32 to vector<8x128xf32>
    %153 = arith.subf %152, %145 : vector<8x128xf32>
    %154 = arith.mulf %153, %151 : vector<8x128xf32>
    %155 = arith.mulf %145, %123 : vector<8x128xf32>
    %156 = arith.addf %154, %155 : vector<8x128xf32>
    %c4_i32 = arith.constant 4 : i32
    %c8_i32_57 = arith.constant 8 : i32
    %157 = arith.muli %c4_i32, %c8_i32_57 : i32
    %158 = tpu.assume_multiple %157, 8 : i32
    %159 = arith.index_cast %158 : i32 to index
    %c0_58 = arith.constant 0 : index
    %160 = vector.load %arg10[%159, %c0_58] : memref<64x384xf32, #tpu.memory_space<vmem>>, vector<8x384xf32>
    %c32_59 = arith.constant 32 : index
    %c0_60 = arith.constant 0 : index
    %161 = vector.load %arg3[%c32_59, %c0_60] : memref<160x384xf32, #tpu.memory_space<vmem>>, vector<128x384xf32>
    %cst_61 = arith.constant dense<0.000000e+00> : vector<8x384xf32>
    %162 = tpu.matmul %156, %161, %cst_61 {dimension_numbers = #tpu.dot_dimension_numbers<[1], [0], [0], [1], [0, 0, 1, 1], [], []>} : vector<8x128xf32>, vector<128x384xf32>, vector<8x384xf32> -> vector<8x384xf32>
    %163 = vector.extract_strided_slice %160 {offsets = [0, 0], sizes = [8, 128], strides = [1, 1]} : vector<8x384xf32> to vector<8x128xf32>
    %164 = vector.extract_strided_slice %162 {offsets = [0, 0], sizes = [8, 128], strides = [1, 1]} : vector<8x384xf32> to vector<8x128xf32>
    %165 = arith.addf %163, %164 : vector<8x128xf32>
    %166 = arith.negf %165 : vector<8x128xf32>
    %167 = math.exp %166 : vector<8x128xf32>
    %cst_62 = arith.constant 1.000000e+00 : f32
    %168 = vector.broadcast %cst_62 : f32 to vector<8x128xf32>
    %169 = arith.addf %168, %167 : vector<8x128xf32>
    %170 = arith.divf %168, %169 : vector<8x128xf32>
    %171 = vector.extract_strided_slice %160 {offsets = [0, 128], sizes = [8, 128], strides = [1, 1]} : vector<8x384xf32> to vector<8x128xf32>
    %172 = vector.extract_strided_slice %162 {offsets = [0, 128], sizes = [8, 128], strides = [1, 1]} : vector<8x384xf32> to vector<8x128xf32>
    %173 = arith.addf %171, %172 : vector<8x128xf32>
    %174 = arith.negf %173 : vector<8x128xf32>
    %175 = math.exp %174 : vector<8x128xf32>
    %cst_63 = arith.constant 1.000000e+00 : f32
    %176 = vector.broadcast %cst_63 : f32 to vector<8x128xf32>
    %177 = arith.addf %176, %175 : vector<8x128xf32>
    %178 = arith.divf %176, %177 : vector<8x128xf32>
    %179 = vector.extract_strided_slice %160 {offsets = [0, 256], sizes = [8, 128], strides = [1, 1]} : vector<8x384xf32> to vector<8x128xf32>
    %180 = vector.extract_strided_slice %162 {offsets = [0, 256], sizes = [8, 128], strides = [1, 1]} : vector<8x384xf32> to vector<8x128xf32>
    %181 = arith.addf %180, %20 : vector<8x128xf32>
    %182 = arith.mulf %170, %181 : vector<8x128xf32>
    %183 = arith.addf %179, %182 : vector<8x128xf32>
    %184 = math.tanh %183 : vector<8x128xf32>
    %cst_64 = arith.constant 1.000000e+00 : f32
    %185 = vector.broadcast %cst_64 : f32 to vector<8x128xf32>
    %186 = arith.subf %185, %178 : vector<8x128xf32>
    %187 = arith.mulf %186, %184 : vector<8x128xf32>
    %188 = arith.mulf %178, %156 : vector<8x128xf32>
    %189 = arith.addf %187, %188 : vector<8x128xf32>
    %c5_i32 = arith.constant 5 : i32
    %c8_i32_65 = arith.constant 8 : i32
    %190 = arith.muli %c5_i32, %c8_i32_65 : i32
    %191 = tpu.assume_multiple %190, 8 : i32
    %192 = arith.index_cast %191 : i32 to index
    %c0_66 = arith.constant 0 : index
    %193 = vector.load %arg10[%192, %c0_66] : memref<64x384xf32, #tpu.memory_space<vmem>>, vector<8x384xf32>
    %c32_67 = arith.constant 32 : index
    %c0_68 = arith.constant 0 : index
    %194 = vector.load %arg3[%c32_67, %c0_68] : memref<160x384xf32, #tpu.memory_space<vmem>>, vector<128x384xf32>
    %cst_69 = arith.constant dense<0.000000e+00> : vector<8x384xf32>
    %195 = tpu.matmul %189, %194, %cst_69 {dimension_numbers = #tpu.dot_dimension_numbers<[1], [0], [0], [1], [0, 0, 1, 1], [], []>} : vector<8x128xf32>, vector<128x384xf32>, vector<8x384xf32> -> vector<8x384xf32>
    %196 = vector.extract_strided_slice %193 {offsets = [0, 0], sizes = [8, 128], strides = [1, 1]} : vector<8x384xf32> to vector<8x128xf32>
    %197 = vector.extract_strided_slice %195 {offsets = [0, 0], sizes = [8, 128], strides = [1, 1]} : vector<8x384xf32> to vector<8x128xf32>
    %198 = arith.addf %196, %197 : vector<8x128xf32>
    %199 = arith.negf %198 : vector<8x128xf32>
    %200 = math.exp %199 : vector<8x128xf32>
    %cst_70 = arith.constant 1.000000e+00 : f32
    %201 = vector.broadcast %cst_70 : f32 to vector<8x128xf32>
    %202 = arith.addf %201, %200 : vector<8x128xf32>
    %203 = arith.divf %201, %202 : vector<8x128xf32>
    %204 = vector.extract_strided_slice %193 {offsets = [0, 128], sizes = [8, 128], strides = [1, 1]} : vector<8x384xf32> to vector<8x128xf32>
    %205 = vector.extract_strided_slice %195 {offsets = [0, 128], sizes = [8, 128], strides = [1, 1]} : vector<8x384xf32> to vector<8x128xf32>
    %206 = arith.addf %204, %205 : vector<8x128xf32>
    %207 = arith.negf %206 : vector<8x128xf32>
    %208 = math.exp %207 : vector<8x128xf32>
    %cst_71 = arith.constant 1.000000e+00 : f32
    %209 = vector.broadcast %cst_71 : f32 to vector<8x128xf32>
    %210 = arith.addf %209, %208 : vector<8x128xf32>
    %211 = arith.divf %209, %210 : vector<8x128xf32>
    %212 = vector.extract_strided_slice %193 {offsets = [0, 256], sizes = [8, 128], strides = [1, 1]} : vector<8x384xf32> to vector<8x128xf32>
    %213 = vector.extract_strided_slice %195 {offsets = [0, 256], sizes = [8, 128], strides = [1, 1]} : vector<8x384xf32> to vector<8x128xf32>
    %214 = arith.addf %213, %20 : vector<8x128xf32>
    %215 = arith.mulf %203, %214 : vector<8x128xf32>
    %216 = arith.addf %212, %215 : vector<8x128xf32>
    %217 = math.tanh %216 : vector<8x128xf32>
    %cst_72 = arith.constant 1.000000e+00 : f32
    %218 = vector.broadcast %cst_72 : f32 to vector<8x128xf32>
    %219 = arith.subf %218, %211 : vector<8x128xf32>
    %220 = arith.mulf %219, %217 : vector<8x128xf32>
    %221 = arith.mulf %211, %189 : vector<8x128xf32>
    %222 = arith.addf %220, %221 : vector<8x128xf32>
    %c6_i32 = arith.constant 6 : i32
    %c8_i32_73 = arith.constant 8 : i32
    %223 = arith.muli %c6_i32, %c8_i32_73 : i32
    %224 = tpu.assume_multiple %223, 8 : i32
    %225 = arith.index_cast %224 : i32 to index
    %c0_74 = arith.constant 0 : index
    %226 = vector.load %arg10[%225, %c0_74] : memref<64x384xf32, #tpu.memory_space<vmem>>, vector<8x384xf32>
    %c32_75 = arith.constant 32 : index
    %c0_76 = arith.constant 0 : index
    %227 = vector.load %arg3[%c32_75, %c0_76] : memref<160x384xf32, #tpu.memory_space<vmem>>, vector<128x384xf32>
    %cst_77 = arith.constant dense<0.000000e+00> : vector<8x384xf32>
    %228 = tpu.matmul %222, %227, %cst_77 {dimension_numbers = #tpu.dot_dimension_numbers<[1], [0], [0], [1], [0, 0, 1, 1], [], []>} : vector<8x128xf32>, vector<128x384xf32>, vector<8x384xf32> -> vector<8x384xf32>
    %229 = vector.extract_strided_slice %226 {offsets = [0, 0], sizes = [8, 128], strides = [1, 1]} : vector<8x384xf32> to vector<8x128xf32>
    %230 = vector.extract_strided_slice %228 {offsets = [0, 0], sizes = [8, 128], strides = [1, 1]} : vector<8x384xf32> to vector<8x128xf32>
    %231 = arith.addf %229, %230 : vector<8x128xf32>
    %232 = arith.negf %231 : vector<8x128xf32>
    %233 = math.exp %232 : vector<8x128xf32>
    %cst_78 = arith.constant 1.000000e+00 : f32
    %234 = vector.broadcast %cst_78 : f32 to vector<8x128xf32>
    %235 = arith.addf %234, %233 : vector<8x128xf32>
    %236 = arith.divf %234, %235 : vector<8x128xf32>
    %237 = vector.extract_strided_slice %226 {offsets = [0, 128], sizes = [8, 128], strides = [1, 1]} : vector<8x384xf32> to vector<8x128xf32>
    %238 = vector.extract_strided_slice %228 {offsets = [0, 128], sizes = [8, 128], strides = [1, 1]} : vector<8x384xf32> to vector<8x128xf32>
    %239 = arith.addf %237, %238 : vector<8x128xf32>
    %240 = arith.negf %239 : vector<8x128xf32>
    %241 = math.exp %240 : vector<8x128xf32>
    %cst_79 = arith.constant 1.000000e+00 : f32
    %242 = vector.broadcast %cst_79 : f32 to vector<8x128xf32>
    %243 = arith.addf %242, %241 : vector<8x128xf32>
    %244 = arith.divf %242, %243 : vector<8x128xf32>
    %245 = vector.extract_strided_slice %226 {offsets = [0, 256], sizes = [8, 128], strides = [1, 1]} : vector<8x384xf32> to vector<8x128xf32>
    %246 = vector.extract_strided_slice %228 {offsets = [0, 256], sizes = [8, 128], strides = [1, 1]} : vector<8x384xf32> to vector<8x128xf32>
    %247 = arith.addf %246, %20 : vector<8x128xf32>
    %248 = arith.mulf %236, %247 : vector<8x128xf32>
    %249 = arith.addf %245, %248 : vector<8x128xf32>
    %250 = math.tanh %249 : vector<8x128xf32>
    %cst_80 = arith.constant 1.000000e+00 : f32
    %251 = vector.broadcast %cst_80 : f32 to vector<8x128xf32>
    %252 = arith.subf %251, %244 : vector<8x128xf32>
    %253 = arith.mulf %252, %250 : vector<8x128xf32>
    %254 = arith.mulf %244, %222 : vector<8x128xf32>
    %255 = arith.addf %253, %254 : vector<8x128xf32>
    %c7_i32 = arith.constant 7 : i32
    %c8_i32_81 = arith.constant 8 : i32
    %256 = arith.muli %c7_i32, %c8_i32_81 : i32
    %257 = tpu.assume_multiple %256, 8 : i32
    %258 = arith.index_cast %257 : i32 to index
    %c0_82 = arith.constant 0 : index
    %259 = vector.load %arg10[%258, %c0_82] : memref<64x384xf32, #tpu.memory_space<vmem>>, vector<8x384xf32>
    %c32_83 = arith.constant 32 : index
    %c0_84 = arith.constant 0 : index
    %260 = vector.load %arg3[%c32_83, %c0_84] : memref<160x384xf32, #tpu.memory_space<vmem>>, vector<128x384xf32>
    %cst_85 = arith.constant dense<0.000000e+00> : vector<8x384xf32>
    %261 = tpu.matmul %255, %260, %cst_85 {dimension_numbers = #tpu.dot_dimension_numbers<[1], [0], [0], [1], [0, 0, 1, 1], [], []>} : vector<8x128xf32>, vector<128x384xf32>, vector<8x384xf32> -> vector<8x384xf32>
    %262 = vector.extract_strided_slice %259 {offsets = [0, 0], sizes = [8, 128], strides = [1, 1]} : vector<8x384xf32> to vector<8x128xf32>
    %263 = vector.extract_strided_slice %261 {offsets = [0, 0], sizes = [8, 128], strides = [1, 1]} : vector<8x384xf32> to vector<8x128xf32>
    %264 = arith.addf %262, %263 : vector<8x128xf32>
    %265 = arith.negf %264 : vector<8x128xf32>
    %266 = math.exp %265 : vector<8x128xf32>
    %cst_86 = arith.constant 1.000000e+00 : f32
    %267 = vector.broadcast %cst_86 : f32 to vector<8x128xf32>
    %268 = arith.addf %267, %266 : vector<8x128xf32>
    %269 = arith.divf %267, %268 : vector<8x128xf32>
    %270 = vector.extract_strided_slice %259 {offsets = [0, 128], sizes = [8, 128], strides = [1, 1]} : vector<8x384xf32> to vector<8x128xf32>
    %271 = vector.extract_strided_slice %261 {offsets = [0, 128], sizes = [8, 128], strides = [1, 1]} : vector<8x384xf32> to vector<8x128xf32>
    %272 = arith.addf %270, %271 : vector<8x128xf32>
    %273 = arith.negf %272 : vector<8x128xf32>
    %274 = math.exp %273 : vector<8x128xf32>
    %cst_87 = arith.constant 1.000000e+00 : f32
    %275 = vector.broadcast %cst_87 : f32 to vector<8x128xf32>
    %276 = arith.addf %275, %274 : vector<8x128xf32>
    %277 = arith.divf %275, %276 : vector<8x128xf32>
    %278 = vector.extract_strided_slice %259 {offsets = [0, 256], sizes = [8, 128], strides = [1, 1]} : vector<8x384xf32> to vector<8x128xf32>
    %279 = vector.extract_strided_slice %261 {offsets = [0, 256], sizes = [8, 128], strides = [1, 1]} : vector<8x384xf32> to vector<8x128xf32>
    %280 = arith.addf %279, %20 : vector<8x128xf32>
    %281 = arith.mulf %269, %280 : vector<8x128xf32>
    %282 = arith.addf %278, %281 : vector<8x128xf32>
    %283 = math.tanh %282 : vector<8x128xf32>
    %cst_88 = arith.constant 1.000000e+00 : f32
    %284 = vector.broadcast %cst_88 : f32 to vector<8x128xf32>
    %285 = arith.subf %284, %277 : vector<8x128xf32>
    %286 = arith.mulf %285, %283 : vector<8x128xf32>
    %287 = arith.mulf %277, %255 : vector<8x128xf32>
    %288 = arith.addf %286, %287 : vector<8x128xf32>
    %c8_i32_89 = arith.constant 8 : i32
    %c32_90 = arith.constant 32 : index
    %c0_91 = arith.constant 0 : index
    %289 = vector.load %arg5[%c32_90, %c0_91] : memref<288x384xf32, #tpu.memory_space<vmem>>, vector<128x384xf32>
    %cst_92 = arith.constant dense<0.000000e+00> : vector<8x384xf32>
    %290 = tpu.matmul %288, %289, %cst_92 {dimension_numbers = #tpu.dot_dimension_numbers<[1], [0], [0], [1], [0, 0, 1, 1], [], []>} : vector<8x128xf32>, vector<128x384xf32>, vector<8x384xf32> -> vector<8x384xf32>
    %c160 = arith.constant 160 : index
    %c0_93 = arith.constant 0 : index
    %291 = vector.load %arg7[%c160, %c0_93] : memref<288x128xf32, #tpu.memory_space<vmem>>, vector<128x128xf32>
    %cst_94 = arith.constant dense<0.000000e+00> : vector<8x128xf32>
    %292 = tpu.matmul %288, %291, %cst_94 {dimension_numbers = #tpu.dot_dimension_numbers<[1], [0], [0], [1], [0, 0, 1, 1], [], []>} : vector<8x128xf32>, vector<128x128xf32>, vector<8x128xf32> -> vector<8x128xf32>
    %c0_95 = arith.constant 0 : index
    %c0_96 = arith.constant 0 : index
    %293 = vector.load %arg8[%c0_95, %c0_96] : memref<1x128xf32, #tpu.memory_space<vmem>>, vector<1x128xf32>
    %294 = vector.broadcast %293 : vector<1x128xf32> to vector<8x128xf32>
    %295 = arith.addf %292, %294 : vector<8x128xf32>
    %c0_i32_97 = arith.constant 0 : i32
    %c8_i32_98 = arith.constant 8 : i32
    %296 = arith.muli %c0_i32_97, %c8_i32_98 : i32
    %297 = tpu.assume_multiple %296, 8 : i32
    %298 = arith.index_cast %297 : i32 to index
    %c0_99 = arith.constant 0 : index
    %299 = vector.load %arg11[%298, %c0_99] : memref<56x384xf32, #tpu.memory_space<vmem>>, vector<8x384xf32>
    %300 = arith.addf %299, %290 : vector<8x384xf32>
    %c160_100 = arith.constant 160 : index
    %c0_101 = arith.constant 0 : index
    %301 = vector.load %arg5[%c160_100, %c0_101] : memref<288x384xf32, #tpu.memory_space<vmem>>, vector<128x384xf32>
    %cst_102 = arith.constant dense<0.000000e+00> : vector<8x384xf32>
    %302 = tpu.matmul %288, %301, %cst_102 {dimension_numbers = #tpu.dot_dimension_numbers<[1], [0], [0], [1], [0, 0, 1, 1], [], []>} : vector<8x128xf32>, vector<128x384xf32>, vector<8x384xf32> -> vector<8x384xf32>
    %303 = vector.extract_strided_slice %300 {offsets = [0, 0], sizes = [8, 128], strides = [1, 1]} : vector<8x384xf32> to vector<8x128xf32>
    %304 = vector.extract_strided_slice %302 {offsets = [0, 0], sizes = [8, 128], strides = [1, 1]} : vector<8x384xf32> to vector<8x128xf32>
    %305 = arith.addf %303, %304 : vector<8x128xf32>
    %306 = arith.negf %305 : vector<8x128xf32>
    %307 = math.exp %306 : vector<8x128xf32>
    %cst_103 = arith.constant 1.000000e+00 : f32
    %308 = vector.broadcast %cst_103 : f32 to vector<8x128xf32>
    %309 = arith.addf %308, %307 : vector<8x128xf32>
    %310 = arith.divf %308, %309 : vector<8x128xf32>
    %311 = vector.extract_strided_slice %300 {offsets = [0, 128], sizes = [8, 128], strides = [1, 1]} : vector<8x384xf32> to vector<8x128xf32>
    %312 = vector.extract_strided_slice %302 {offsets = [0, 128], sizes = [8, 128], strides = [1, 1]} : vector<8x384xf32> to vector<8x128xf32>
    %313 = arith.addf %311, %312 : vector<8x128xf32>
    %314 = arith.negf %313 : vector<8x128xf32>
    %315 = math.exp %314 : vector<8x128xf32>
    %cst_104 = arith.constant 1.000000e+00 : f32
    %316 = vector.broadcast %cst_104 : f32 to vector<8x128xf32>
    %317 = arith.addf %316, %315 : vector<8x128xf32>
    %318 = arith.divf %316, %317 : vector<8x128xf32>
    %319 = vector.extract_strided_slice %300 {offsets = [0, 256], sizes = [8, 128], strides = [1, 1]} : vector<8x384xf32> to vector<8x128xf32>
    %320 = vector.extract_strided_slice %302 {offsets = [0, 256], sizes = [8, 128], strides = [1, 1]} : vector<8x384xf32> to vector<8x128xf32>
    %321 = arith.addf %320, %23 : vector<8x128xf32>
    %322 = arith.mulf %310, %321 : vector<8x128xf32>
    %323 = arith.addf %319, %322 : vector<8x128xf32>
    %324 = math.tanh %323 : vector<8x128xf32>
    %cst_105 = arith.constant 1.000000e+00 : f32
    %325 = vector.broadcast %cst_105 : f32 to vector<8x128xf32>
    %326 = arith.subf %325, %318 : vector<8x128xf32>
    %327 = arith.mulf %326, %324 : vector<8x128xf32>
    %328 = arith.mulf %318, %288 : vector<8x128xf32>
    %329 = arith.addf %327, %328 : vector<8x128xf32>
    %330 = arith.index_cast %297 : i32 to index
    %c0_106 = arith.constant 0 : index
    %331 = vector.load %arg12[%330, %c0_106] : memref<56x128xf32, #tpu.memory_space<vmem>>, vector<8x128xf32>
    %c32_107 = arith.constant 32 : index
    %c0_108 = arith.constant 0 : index
    %332 = vector.load %arg7[%c32_107, %c0_108] : memref<288x128xf32, #tpu.memory_space<vmem>>, vector<128x128xf32>
    %cst_109 = arith.constant dense<0.000000e+00> : vector<8x128xf32>
    %333 = tpu.matmul %329, %332, %cst_109 {dimension_numbers = #tpu.dot_dimension_numbers<[1], [0], [0], [1], [0, 0, 1, 1], [], []>} : vector<8x128xf32>, vector<128x128xf32>, vector<8x128xf32> -> vector<8x128xf32>
    %334 = arith.addf %331, %333 : vector<8x128xf32>
    %335 = arith.addf %334, %295 : vector<8x128xf32>
    %336 = arith.index_cast %297 : i32 to index
    %c0_110 = arith.constant 0 : index
    %337 = vector.load %arg9[%336, %c0_110] : memref<56x128xf32, #tpu.memory_space<vmem>>, vector<8x128xf32>
    tpu.vector_store %arg9[%336, %c0_110], %335 {strides = array<i32>} : memref<56x128xf32, #tpu.memory_space<vmem>>, vector<8x128xf32>,
    %c1_i32_111 = arith.constant 1 : i32
    %c8_i32_112 = arith.constant 8 : i32
    %338 = arith.muli %c1_i32_111, %c8_i32_112 : i32
    %339 = tpu.assume_multiple %338, 8 : i32
    %340 = arith.index_cast %339 : i32 to index
    %c0_113 = arith.constant 0 : index
    %341 = vector.load %arg11[%340, %c0_113] : memref<56x384xf32, #tpu.memory_space<vmem>>, vector<8x384xf32>
    %342 = arith.addf %341, %290 : vector<8x384xf32>
    %c160_114 = arith.constant 160 : index
    %c0_115 = arith.constant 0 : index
    %343 = vector.load %arg5[%c160_114, %c0_115] : memref<288x384xf32, #tpu.memory_space<vmem>>, vector<128x384xf32>
    %cst_116 = arith.constant dense<0.000000e+00> : vector<8x384xf32>
    %344 = tpu.matmul %329, %343, %cst_116 {dimension_numbers = #tpu.dot_dimension_numbers<[1], [0], [0], [1], [0, 0, 1, 1], [], []>} : vector<8x128xf32>, vector<128x384xf32>, vector<8x384xf32> -> vector<8x384xf32>
    %345 = vector.extract_strided_slice %342 {offsets = [0, 0], sizes = [8, 128], strides = [1, 1]} : vector<8x384xf32> to vector<8x128xf32>
    %346 = vector.extract_strided_slice %344 {offsets = [0, 0], sizes = [8, 128], strides = [1, 1]} : vector<8x384xf32> to vector<8x128xf32>
    %347 = arith.addf %345, %346 : vector<8x128xf32>
    %348 = arith.negf %347 : vector<8x128xf32>
    %349 = math.exp %348 : vector<8x128xf32>
    %cst_117 = arith.constant 1.000000e+00 : f32
    %350 = vector.broadcast %cst_117 : f32 to vector<8x128xf32>
    %351 = arith.addf %350, %349 : vector<8x128xf32>
    %352 = arith.divf %350, %351 : vector<8x128xf32>
    %353 = vector.extract_strided_slice %342 {offsets = [0, 128], sizes = [8, 128], strides = [1, 1]} : vector<8x384xf32> to vector<8x128xf32>
    %354 = vector.extract_strided_slice %344 {offsets = [0, 128], sizes = [8, 128], strides = [1, 1]} : vector<8x384xf32> to vector<8x128xf32>
    %355 = arith.addf %353, %354 : vector<8x128xf32>
    %356 = arith.negf %355 : vector<8x128xf32>
    %357 = math.exp %356 : vector<8x128xf32>
    %cst_118 = arith.constant 1.000000e+00 : f32
    %358 = vector.broadcast %cst_118 : f32 to vector<8x128xf32>
    %359 = arith.addf %358, %357 : vector<8x128xf32>
    %360 = arith.divf %358, %359 : vector<8x128xf32>
    %361 = vector.extract_strided_slice %342 {offsets = [0, 256], sizes = [8, 128], strides = [1, 1]} : vector<8x384xf32> to vector<8x128xf32>
    %362 = vector.extract_strided_slice %344 {offsets = [0, 256], sizes = [8, 128], strides = [1, 1]} : vector<8x384xf32> to vector<8x128xf32>
    %363 = arith.addf %362, %23 : vector<8x128xf32>
    %364 = arith.mulf %352, %363 : vector<8x128xf32>
    %365 = arith.addf %361, %364 : vector<8x128xf32>
    %366 = math.tanh %365 : vector<8x128xf32>
    %cst_119 = arith.constant 1.000000e+00 : f32
    %367 = vector.broadcast %cst_119 : f32 to vector<8x128xf32>
    %368 = arith.subf %367, %360 : vector<8x128xf32>
    %369 = arith.mulf %368, %366 : vector<8x128xf32>
    %370 = arith.mulf %360, %329 : vector<8x128xf32>
    %371 = arith.addf %369, %370 : vector<8x128xf32>
    %372 = arith.index_cast %339 : i32 to index
    %c0_120 = arith.constant 0 : index
    %373 = vector.load %arg12[%372, %c0_120] : memref<56x128xf32, #tpu.memory_space<vmem>>, vector<8x128xf32>
    %c32_121 = arith.constant 32 : index
    %c0_122 = arith.constant 0 : index
    %374 = vector.load %arg7[%c32_121, %c0_122] : memref<288x128xf32, #tpu.memory_space<vmem>>, vector<128x128xf32>
    %cst_123 = arith.constant dense<0.000000e+00> : vector<8x128xf32>
    %375 = tpu.matmul %371, %374, %cst_123 {dimension_numbers = #tpu.dot_dimension_numbers<[1], [0], [0], [1], [0, 0, 1, 1], [], []>} : vector<8x128xf32>, vector<128x128xf32>, vector<8x128xf32> -> vector<8x128xf32>
    %376 = arith.addf %373, %375 : vector<8x128xf32>
    %377 = arith.addf %376, %295 : vector<8x128xf32>
    %378 = arith.index_cast %339 : i32 to index
    %c0_124 = arith.constant 0 : index
    %379 = vector.load %arg9[%378, %c0_124] : memref<56x128xf32, #tpu.memory_space<vmem>>, vector<8x128xf32>
    tpu.vector_store %arg9[%378, %c0_124], %377 {strides = array<i32>} : memref<56x128xf32, #tpu.memory_space<vmem>>, vector<8x128xf32>,
    %c2_i32_125 = arith.constant 2 : i32
    %c8_i32_126 = arith.constant 8 : i32
    %380 = arith.muli %c2_i32_125, %c8_i32_126 : i32
    %381 = tpu.assume_multiple %380, 8 : i32
    %382 = arith.index_cast %381 : i32 to index
    %c0_127 = arith.constant 0 : index
    %383 = vector.load %arg11[%382, %c0_127] : memref<56x384xf32, #tpu.memory_space<vmem>>, vector<8x384xf32>
    %384 = arith.addf %383, %290 : vector<8x384xf32>
    %c160_128 = arith.constant 160 : index
    %c0_129 = arith.constant 0 : index
    %385 = vector.load %arg5[%c160_128, %c0_129] : memref<288x384xf32, #tpu.memory_space<vmem>>, vector<128x384xf32>
    %cst_130 = arith.constant dense<0.000000e+00> : vector<8x384xf32>
    %386 = tpu.matmul %371, %385, %cst_130 {dimension_numbers = #tpu.dot_dimension_numbers<[1], [0], [0], [1], [0, 0, 1, 1], [], []>} : vector<8x128xf32>, vector<128x384xf32>, vector<8x384xf32> -> vector<8x384xf32>
    %387 = vector.extract_strided_slice %384 {offsets = [0, 0], sizes = [8, 128], strides = [1, 1]} : vector<8x384xf32> to vector<8x128xf32>
    %388 = vector.extract_strided_slice %386 {offsets = [0, 0], sizes = [8, 128], strides = [1, 1]} : vector<8x384xf32> to vector<8x128xf32>
    %389 = arith.addf %387, %388 : vector<8x128xf32>
    %390 = arith.negf %389 : vector<8x128xf32>
    %391 = math.exp %390 : vector<8x128xf32>
    %cst_131 = arith.constant 1.000000e+00 : f32
    %392 = vector.broadcast %cst_131 : f32 to vector<8x128xf32>
    %393 = arith.addf %392, %391 : vector<8x128xf32>
    %394 = arith.divf %392, %393 : vector<8x128xf32>
    %395 = vector.extract_strided_slice %384 {offsets = [0, 128], sizes = [8, 128], strides = [1, 1]} : vector<8x384xf32> to vector<8x128xf32>
    %396 = vector.extract_strided_slice %386 {offsets = [0, 128], sizes = [8, 128], strides = [1, 1]} : vector<8x384xf32> to vector<8x128xf32>
    %397 = arith.addf %395, %396 : vector<8x128xf32>
    %398 = arith.negf %397 : vector<8x128xf32>
    %399 = math.exp %398 : vector<8x128xf32>
    %cst_132 = arith.constant 1.000000e+00 : f32
    %400 = vector.broadcast %cst_132 : f32 to vector<8x128xf32>
    %401 = arith.addf %400, %399 : vector<8x128xf32>
    %402 = arith.divf %400, %401 : vector<8x128xf32>
    %403 = vector.extract_strided_slice %384 {offsets = [0, 256], sizes = [8, 128], strides = [1, 1]} : vector<8x384xf32> to vector<8x128xf32>
    %404 = vector.extract_strided_slice %386 {offsets = [0, 256], sizes = [8, 128], strides = [1, 1]} : vector<8x384xf32> to vector<8x128xf32>
    %405 = arith.addf %404, %23 : vector<8x128xf32>
    %406 = arith.mulf %394, %405 : vector<8x128xf32>
    %407 = arith.addf %403, %406 : vector<8x128xf32>
    %408 = math.tanh %407 : vector<8x128xf32>
    %cst_133 = arith.constant 1.000000e+00 : f32
    %409 = vector.broadcast %cst_133 : f32 to vector<8x128xf32>
    %410 = arith.subf %409, %402 : vector<8x128xf32>
    %411 = arith.mulf %410, %408 : vector<8x128xf32>
    %412 = arith.mulf %402, %371 : vector<8x128xf32>
    %413 = arith.addf %411, %412 : vector<8x128xf32>
    %414 = arith.index_cast %381 : i32 to index
    %c0_134 = arith.constant 0 : index
    %415 = vector.load %arg12[%414, %c0_134] : memref<56x128xf32, #tpu.memory_space<vmem>>, vector<8x128xf32>
    %c32_135 = arith.constant 32 : index
    %c0_136 = arith.constant 0 : index
    %416 = vector.load %arg7[%c32_135, %c0_136] : memref<288x128xf32, #tpu.memory_space<vmem>>, vector<128x128xf32>
    %cst_137 = arith.constant dense<0.000000e+00> : vector<8x128xf32>
    %417 = tpu.matmul %413, %416, %cst_137 {dimension_numbers = #tpu.dot_dimension_numbers<[1], [0], [0], [1], [0, 0, 1, 1], [], []>} : vector<8x128xf32>, vector<128x128xf32>, vector<8x128xf32> -> vector<8x128xf32>
    %418 = arith.addf %415, %417 : vector<8x128xf32>
    %419 = arith.addf %418, %295 : vector<8x128xf32>
    %420 = arith.index_cast %381 : i32 to index
    %c0_138 = arith.constant 0 : index
    %421 = vector.load %arg9[%420, %c0_138] : memref<56x128xf32, #tpu.memory_space<vmem>>, vector<8x128xf32>
    tpu.vector_store %arg9[%420, %c0_138], %419 {strides = array<i32>} : memref<56x128xf32, #tpu.memory_space<vmem>>, vector<8x128xf32>,
    %c3_i32_139 = arith.constant 3 : i32
    %c8_i32_140 = arith.constant 8 : i32
    %422 = arith.muli %c3_i32_139, %c8_i32_140 : i32
    %423 = tpu.assume_multiple %422, 8 : i32
    %424 = arith.index_cast %423 : i32 to index
    %c0_141 = arith.constant 0 : index
    %425 = vector.load %arg11[%424, %c0_141] : memref<56x384xf32, #tpu.memory_space<vmem>>, vector<8x384xf32>
    %426 = arith.addf %425, %290 : vector<8x384xf32>
    %c160_142 = arith.constant 160 : index
    %c0_143 = arith.constant 0 : index
    %427 = vector.load %arg5[%c160_142, %c0_143] : memref<288x384xf32, #tpu.memory_space<vmem>>, vector<128x384xf32>
    %cst_144 = arith.constant dense<0.000000e+00> : vector<8x384xf32>
    %428 = tpu.matmul %413, %427, %cst_144 {dimension_numbers = #tpu.dot_dimension_numbers<[1], [0], [0], [1], [0, 0, 1, 1], [], []>} : vector<8x128xf32>, vector<128x384xf32>, vector<8x384xf32> -> vector<8x384xf32>
    %429 = vector.extract_strided_slice %426 {offsets = [0, 0], sizes = [8, 128], strides = [1, 1]} : vector<8x384xf32> to vector<8x128xf32>
    %430 = vector.extract_strided_slice %428 {offsets = [0, 0], sizes = [8, 128], strides = [1, 1]} : vector<8x384xf32> to vector<8x128xf32>
    %431 = arith.addf %429, %430 : vector<8x128xf32>
    %432 = arith.negf %431 : vector<8x128xf32>
    %433 = math.exp %432 : vector<8x128xf32>
    %cst_145 = arith.constant 1.000000e+00 : f32
    %434 = vector.broadcast %cst_145 : f32 to vector<8x128xf32>
    %435 = arith.addf %434, %433 : vector<8x128xf32>
    %436 = arith.divf %434, %435 : vector<8x128xf32>
    %437 = vector.extract_strided_slice %426 {offsets = [0, 128], sizes = [8, 128], strides = [1, 1]} : vector<8x384xf32> to vector<8x128xf32>
    %438 = vector.extract_strided_slice %428 {offsets = [0, 128], sizes = [8, 128], strides = [1, 1]} : vector<8x384xf32> to vector<8x128xf32>
    %439 = arith.addf %437, %438 : vector<8x128xf32>
    %440 = arith.negf %439 : vector<8x128xf32>
    %441 = math.exp %440 : vector<8x128xf32>
    %cst_146 = arith.constant 1.000000e+00 : f32
    %442 = vector.broadcast %cst_146 : f32 to vector<8x128xf32>
    %443 = arith.addf %442, %441 : vector<8x128xf32>
    %444 = arith.divf %442, %443 : vector<8x128xf32>
    %445 = vector.extract_strided_slice %426 {offsets = [0, 256], sizes = [8, 128], strides = [1, 1]} : vector<8x384xf32> to vector<8x128xf32>
    %446 = vector.extract_strided_slice %428 {offsets = [0, 256], sizes = [8, 128], strides = [1, 1]} : vector<8x384xf32> to vector<8x128xf32>
    %447 = arith.addf %446, %23 : vector<8x128xf32>
    %448 = arith.mulf %436, %447 : vector<8x128xf32>
    %449 = arith.addf %445, %448 : vector<8x128xf32>
    %450 = math.tanh %449 : vector<8x128xf32>
    %cst_147 = arith.constant 1.000000e+00 : f32
    %451 = vector.broadcast %cst_147 : f32 to vector<8x128xf32>
    %452 = arith.subf %451, %444 : vector<8x128xf32>
    %453 = arith.mulf %452, %450 : vector<8x128xf32>
    %454 = arith.mulf %444, %413 : vector<8x128xf32>
    %455 = arith.addf %453, %454 : vector<8x128xf32>
    %456 = arith.index_cast %423 : i32 to index
    %c0_148 = arith.constant 0 : index
    %457 = vector.load %arg12[%456, %c0_148] : memref<56x128xf32, #tpu.memory_space<vmem>>, vector<8x128xf32>
    %c32_149 = arith.constant 32 : index
    %c0_150 = arith.constant 0 : index
    %458 = vector.load %arg7[%c32_149, %c0_150] : memref<288x128xf32, #tpu.memory_space<vmem>>, vector<128x128xf32>
    %cst_151 = arith.constant dense<0.000000e+00> : vector<8x128xf32>
    %459 = tpu.matmul %455, %458, %cst_151 {dimension_numbers = #tpu.dot_dimension_numbers<[1], [0], [0], [1], [0, 0, 1, 1], [], []>} : vector<8x128xf32>, vector<128x128xf32>, vector<8x128xf32> -> vector<8x128xf32>
    %460 = arith.addf %457, %459 : vector<8x128xf32>
    %461 = arith.addf %460, %295 : vector<8x128xf32>
    %462 = arith.index_cast %423 : i32 to index
    %c0_152 = arith.constant 0 : index
    %463 = vector.load %arg9[%462, %c0_152] : memref<56x128xf32, #tpu.memory_space<vmem>>, vector<8x128xf32>
    tpu.vector_store %arg9[%462, %c0_152], %461 {strides = array<i32>} : memref<56x128xf32, #tpu.memory_space<vmem>>, vector<8x128xf32>,
    %c4_i32_153 = arith.constant 4 : i32
    %c8_i32_154 = arith.constant 8 : i32
    %464 = arith.muli %c4_i32_153, %c8_i32_154 : i32
    %465 = tpu.assume_multiple %464, 8 : i32
    %466 = arith.index_cast %465 : i32 to index
    %c0_155 = arith.constant 0 : index
    %467 = vector.load %arg11[%466, %c0_155] : memref<56x384xf32, #tpu.memory_space<vmem>>, vector<8x384xf32>
    %468 = arith.addf %467, %290 : vector<8x384xf32>
    %c160_156 = arith.constant 160 : index
    %c0_157 = arith.constant 0 : index
    %469 = vector.load %arg5[%c160_156, %c0_157] : memref<288x384xf32, #tpu.memory_space<vmem>>, vector<128x384xf32>
    %cst_158 = arith.constant dense<0.000000e+00> : vector<8x384xf32>
    %470 = tpu.matmul %455, %469, %cst_158 {dimension_numbers = #tpu.dot_dimension_numbers<[1], [0], [0], [1], [0, 0, 1, 1], [], []>} : vector<8x128xf32>, vector<128x384xf32>, vector<8x384xf32> -> vector<8x384xf32>
    %471 = vector.extract_strided_slice %468 {offsets = [0, 0], sizes = [8, 128], strides = [1, 1]} : vector<8x384xf32> to vector<8x128xf32>
    %472 = vector.extract_strided_slice %470 {offsets = [0, 0], sizes = [8, 128], strides = [1, 1]} : vector<8x384xf32> to vector<8x128xf32>
    %473 = arith.addf %471, %472 : vector<8x128xf32>
    %474 = arith.negf %473 : vector<8x128xf32>
    %475 = math.exp %474 : vector<8x128xf32>
    %cst_159 = arith.constant 1.000000e+00 : f32
    %476 = vector.broadcast %cst_159 : f32 to vector<8x128xf32>
    %477 = arith.addf %476, %475 : vector<8x128xf32>
    %478 = arith.divf %476, %477 : vector<8x128xf32>
    %479 = vector.extract_strided_slice %468 {offsets = [0, 128], sizes = [8, 128], strides = [1, 1]} : vector<8x384xf32> to vector<8x128xf32>
    %480 = vector.extract_strided_slice %470 {offsets = [0, 128], sizes = [8, 128], strides = [1, 1]} : vector<8x384xf32> to vector<8x128xf32>
    %481 = arith.addf %479, %480 : vector<8x128xf32>
    %482 = arith.negf %481 : vector<8x128xf32>
    %483 = math.exp %482 : vector<8x128xf32>
    %cst_160 = arith.constant 1.000000e+00 : f32
    %484 = vector.broadcast %cst_160 : f32 to vector<8x128xf32>
    %485 = arith.addf %484, %483 : vector<8x128xf32>
    %486 = arith.divf %484, %485 : vector<8x128xf32>
    %487 = vector.extract_strided_slice %468 {offsets = [0, 256], sizes = [8, 128], strides = [1, 1]} : vector<8x384xf32> to vector<8x128xf32>
    %488 = vector.extract_strided_slice %470 {offsets = [0, 256], sizes = [8, 128], strides = [1, 1]} : vector<8x384xf32> to vector<8x128xf32>
    %489 = arith.addf %488, %23 : vector<8x128xf32>
    %490 = arith.mulf %478, %489 : vector<8x128xf32>
    %491 = arith.addf %487, %490 : vector<8x128xf32>
    %492 = math.tanh %491 : vector<8x128xf32>
    %cst_161 = arith.constant 1.000000e+00 : f32
    %493 = vector.broadcast %cst_161 : f32 to vector<8x128xf32>
    %494 = arith.subf %493, %486 : vector<8x128xf32>
    %495 = arith.mulf %494, %492 : vector<8x128xf32>
    %496 = arith.mulf %486, %455 : vector<8x128xf32>
    %497 = arith.addf %495, %496 : vector<8x128xf32>
    %498 = arith.index_cast %465 : i32 to index
    %c0_162 = arith.constant 0 : index
    %499 = vector.load %arg12[%498, %c0_162] : memref<56x128xf32, #tpu.memory_space<vmem>>, vector<8x128xf32>
    %c32_163 = arith.constant 32 : index
    %c0_164 = arith.constant 0 : index
    %500 = vector.load %arg7[%c32_163, %c0_164] : memref<288x128xf32, #tpu.memory_space<vmem>>, vector<128x128xf32>
    %cst_165 = arith.constant dense<0.000000e+00> : vector<8x128xf32>
    %501 = tpu.matmul %497, %500, %cst_165 {dimension_numbers = #tpu.dot_dimension_numbers<[1], [0], [0], [1], [0, 0, 1, 1], [], []>} : vector<8x128xf32>, vector<128x128xf32>, vector<8x128xf32> -> vector<8x128xf32>
    %502 = arith.addf %499, %501 : vector<8x128xf32>
    %503 = arith.addf %502, %295 : vector<8x128xf32>
    %504 = arith.index_cast %465 : i32 to index
    %c0_166 = arith.constant 0 : index
    %505 = vector.load %arg9[%504, %c0_166] : memref<56x128xf32, #tpu.memory_space<vmem>>, vector<8x128xf32>
    tpu.vector_store %arg9[%504, %c0_166], %503 {strides = array<i32>} : memref<56x128xf32, #tpu.memory_space<vmem>>, vector<8x128xf32>,
    %c5_i32_167 = arith.constant 5 : i32
    %c8_i32_168 = arith.constant 8 : i32
    %506 = arith.muli %c5_i32_167, %c8_i32_168 : i32
    %507 = tpu.assume_multiple %506, 8 : i32
    %508 = arith.index_cast %507 : i32 to index
    %c0_169 = arith.constant 0 : index
    %509 = vector.load %arg11[%508, %c0_169] : memref<56x384xf32, #tpu.memory_space<vmem>>, vector<8x384xf32>
    %510 = arith.addf %509, %290 : vector<8x384xf32>
    %c160_170 = arith.constant 160 : index
    %c0_171 = arith.constant 0 : index
    %511 = vector.load %arg5[%c160_170, %c0_171] : memref<288x384xf32, #tpu.memory_space<vmem>>, vector<128x384xf32>
    %cst_172 = arith.constant dense<0.000000e+00> : vector<8x384xf32>
    %512 = tpu.matmul %497, %511, %cst_172 {dimension_numbers = #tpu.dot_dimension_numbers<[1], [0], [0], [1], [0, 0, 1, 1], [], []>} : vector<8x128xf32>, vector<128x384xf32>, vector<8x384xf32> -> vector<8x384xf32>
    %513 = vector.extract_strided_slice %510 {offsets = [0, 0], sizes = [8, 128], strides = [1, 1]} : vector<8x384xf32> to vector<8x128xf32>
    %514 = vector.extract_strided_slice %512 {offsets = [0, 0], sizes = [8, 128], strides = [1, 1]} : vector<8x384xf32> to vector<8x128xf32>
    %515 = arith.addf %513, %514 : vector<8x128xf32>
    %516 = arith.negf %515 : vector<8x128xf32>
    %517 = math.exp %516 : vector<8x128xf32>
    %cst_173 = arith.constant 1.000000e+00 : f32
    %518 = vector.broadcast %cst_173 : f32 to vector<8x128xf32>
    %519 = arith.addf %518, %517 : vector<8x128xf32>
    %520 = arith.divf %518, %519 : vector<8x128xf32>
    %521 = vector.extract_strided_slice %510 {offsets = [0, 128], sizes = [8, 128], strides = [1, 1]} : vector<8x384xf32> to vector<8x128xf32>
    %522 = vector.extract_strided_slice %512 {offsets = [0, 128], sizes = [8, 128], strides = [1, 1]} : vector<8x384xf32> to vector<8x128xf32>
    %523 = arith.addf %521, %522 : vector<8x128xf32>
    %524 = arith.negf %523 : vector<8x128xf32>
    %525 = math.exp %524 : vector<8x128xf32>
    %cst_174 = arith.constant 1.000000e+00 : f32
    %526 = vector.broadcast %cst_174 : f32 to vector<8x128xf32>
    %527 = arith.addf %526, %525 : vector<8x128xf32>
    %528 = arith.divf %526, %527 : vector<8x128xf32>
    %529 = vector.extract_strided_slice %510 {offsets = [0, 256], sizes = [8, 128], strides = [1, 1]} : vector<8x384xf32> to vector<8x128xf32>
    %530 = vector.extract_strided_slice %512 {offsets = [0, 256], sizes = [8, 128], strides = [1, 1]} : vector<8x384xf32> to vector<8x128xf32>
    %531 = arith.addf %530, %23 : vector<8x128xf32>
    %532 = arith.mulf %520, %531 : vector<8x128xf32>
    %533 = arith.addf %529, %532 : vector<8x128xf32>
    %534 = math.tanh %533 : vector<8x128xf32>
    %cst_175 = arith.constant 1.000000e+00 : f32
    %535 = vector.broadcast %cst_175 : f32 to vector<8x128xf32>
    %536 = arith.subf %535, %528 : vector<8x128xf32>
    %537 = arith.mulf %536, %534 : vector<8x128xf32>
    %538 = arith.mulf %528, %497 : vector<8x128xf32>
    %539 = arith.addf %537, %538 : vector<8x128xf32>
    %540 = arith.index_cast %507 : i32 to index
    %c0_176 = arith.constant 0 : index
    %541 = vector.load %arg12[%540, %c0_176] : memref<56x128xf32, #tpu.memory_space<vmem>>, vector<8x128xf32>
    %c32_177 = arith.constant 32 : index
    %c0_178 = arith.constant 0 : index
    %542 = vector.load %arg7[%c32_177, %c0_178] : memref<288x128xf32, #tpu.memory_space<vmem>>, vector<128x128xf32>
    %cst_179 = arith.constant dense<0.000000e+00> : vector<8x128xf32>
    %543 = tpu.matmul %539, %542, %cst_179 {dimension_numbers = #tpu.dot_dimension_numbers<[1], [0], [0], [1], [0, 0, 1, 1], [], []>} : vector<8x128xf32>, vector<128x128xf32>, vector<8x128xf32> -> vector<8x128xf32>
    %544 = arith.addf %541, %543 : vector<8x128xf32>
    %545 = arith.addf %544, %295 : vector<8x128xf32>
    %546 = arith.index_cast %507 : i32 to index
    %c0_180 = arith.constant 0 : index
    %547 = vector.load %arg9[%546, %c0_180] : memref<56x128xf32, #tpu.memory_space<vmem>>, vector<8x128xf32>
    tpu.vector_store %arg9[%546, %c0_180], %545 {strides = array<i32>} : memref<56x128xf32, #tpu.memory_space<vmem>>, vector<8x128xf32>,
    %c6_i32_181 = arith.constant 6 : i32
    %c8_i32_182 = arith.constant 8 : i32
    %548 = arith.muli %c6_i32_181, %c8_i32_182 : i32
    %549 = tpu.assume_multiple %548, 8 : i32
    %550 = arith.index_cast %549 : i32 to index
    %c0_183 = arith.constant 0 : index
    %551 = vector.load %arg11[%550, %c0_183] : memref<56x384xf32, #tpu.memory_space<vmem>>, vector<8x384xf32>
    %552 = arith.addf %551, %290 : vector<8x384xf32>
    %c160_184 = arith.constant 160 : index
    %c0_185 = arith.constant 0 : index
    %553 = vector.load %arg5[%c160_184, %c0_185] : memref<288x384xf32, #tpu.memory_space<vmem>>, vector<128x384xf32>
    %cst_186 = arith.constant dense<0.000000e+00> : vector<8x384xf32>
    %554 = tpu.matmul %539, %553, %cst_186 {dimension_numbers = #tpu.dot_dimension_numbers<[1], [0], [0], [1], [0, 0, 1, 1], [], []>} : vector<8x128xf32>, vector<128x384xf32>, vector<8x384xf32> -> vector<8x384xf32>
    %555 = vector.extract_strided_slice %552 {offsets = [0, 0], sizes = [8, 128], strides = [1, 1]} : vector<8x384xf32> to vector<8x128xf32>
    %556 = vector.extract_strided_slice %554 {offsets = [0, 0], sizes = [8, 128], strides = [1, 1]} : vector<8x384xf32> to vector<8x128xf32>
    %557 = arith.addf %555, %556 : vector<8x128xf32>
    %558 = arith.negf %557 : vector<8x128xf32>
    %559 = math.exp %558 : vector<8x128xf32>
    %cst_187 = arith.constant 1.000000e+00 : f32
    %560 = vector.broadcast %cst_187 : f32 to vector<8x128xf32>
    %561 = arith.addf %560, %559 : vector<8x128xf32>
    %562 = arith.divf %560, %561 : vector<8x128xf32>
    %563 = vector.extract_strided_slice %552 {offsets = [0, 128], sizes = [8, 128], strides = [1, 1]} : vector<8x384xf32> to vector<8x128xf32>
    %564 = vector.extract_strided_slice %554 {offsets = [0, 128], sizes = [8, 128], strides = [1, 1]} : vector<8x384xf32> to vector<8x128xf32>
    %565 = arith.addf %563, %564 : vector<8x128xf32>
    %566 = arith.negf %565 : vector<8x128xf32>
    %567 = math.exp %566 : vector<8x128xf32>
    %cst_188 = arith.constant 1.000000e+00 : f32
    %568 = vector.broadcast %cst_188 : f32 to vector<8x128xf32>
    %569 = arith.addf %568, %567 : vector<8x128xf32>
    %570 = arith.divf %568, %569 : vector<8x128xf32>
    %571 = vector.extract_strided_slice %552 {offsets = [0, 256], sizes = [8, 128], strides = [1, 1]} : vector<8x384xf32> to vector<8x128xf32>
    %572 = vector.extract_strided_slice %554 {offsets = [0, 256], sizes = [8, 128], strides = [1, 1]} : vector<8x384xf32> to vector<8x128xf32>
    %573 = arith.addf %572, %23 : vector<8x128xf32>
    %574 = arith.mulf %562, %573 : vector<8x128xf32>
    %575 = arith.addf %571, %574 : vector<8x128xf32>
    %576 = math.tanh %575 : vector<8x128xf32>
    %cst_189 = arith.constant 1.000000e+00 : f32
    %577 = vector.broadcast %cst_189 : f32 to vector<8x128xf32>
    %578 = arith.subf %577, %570 : vector<8x128xf32>
    %579 = arith.mulf %578, %576 : vector<8x128xf32>
    %580 = arith.mulf %570, %539 : vector<8x128xf32>
    %581 = arith.addf %579, %580 : vector<8x128xf32>
    %582 = arith.index_cast %549 : i32 to index
    %c0_190 = arith.constant 0 : index
    %583 = vector.load %arg12[%582, %c0_190] : memref<56x128xf32, #tpu.memory_space<vmem>>, vector<8x128xf32>
    %c32_191 = arith.constant 32 : index
    %c0_192 = arith.constant 0 : index
    %584 = vector.load %arg7[%c32_191, %c0_192] : memref<288x128xf32, #tpu.memory_space<vmem>>, vector<128x128xf32>
    %cst_193 = arith.constant dense<0.000000e+00> : vector<8x128xf32>
    %585 = tpu.matmul %581, %584, %cst_193 {dimension_numbers = #tpu.dot_dimension_numbers<[1], [0], [0], [1], [0, 0, 1, 1], [], []>} : vector<8x128xf32>, vector<128x128xf32>, vector<8x128xf32> -> vector<8x128xf32>
    %586 = arith.addf %583, %585 : vector<8x128xf32>
    %587 = arith.addf %586, %295 : vector<8x128xf32>
    %588 = arith.index_cast %549 : i32 to index
    %c0_194 = arith.constant 0 : index
    %589 = vector.load %arg9[%588, %c0_194] : memref<56x128xf32, #tpu.memory_space<vmem>>, vector<8x128xf32>
    tpu.vector_store %arg9[%588, %c0_194], %587 {strides = array<i32>} : memref<56x128xf32, #tpu.memory_space<vmem>>, vector<8x128xf32>,
    %c7_i32_195 = arith.constant 7 : i32
    return
  }
  func.func @transform_0(%arg0: i32) -> (i32, i32) {
    %c0_i32 = arith.constant 0 : i32
    %c0_i32_0 = arith.constant 0 : i32
    %c0_i32_1 = arith.constant 0 : i32
    return %c0_i32, %c0_i32_0 : i32, i32
  }
  func.func @transform_1(%arg0: i32) -> (i32, i32) {
    %c0_i32 = arith.constant 0 : i32
    %c0_i32_0 = arith.constant 0 : i32
    %c0_i32_1 = arith.constant 0 : i32
    return %c0_i32, %c0_i32_0 : i32, i32
  }
  func.func @transform_2(%arg0: i32) -> (i32, i32) {
    %c0_i32 = arith.constant 0 : i32
    %c0_i32_0 = arith.constant 0 : i32
    %c0_i32_1 = arith.constant 0 : i32
    return %c0_i32, %c0_i32_0 : i32, i32
  }
  func.func @transform_3(%arg0: i32) -> (i32, i32) {
    %c0_i32 = arith.constant 0 : i32
    %c0_i32_0 = arith.constant 0 : i32
    %c0_i32_1 = arith.constant 0 : i32
    return %c0_i32, %c0_i32_0 : i32, i32
  }
  func.func @transform_4(%arg0: i32) -> (i32, i32) {
    %c0_i32 = arith.constant 0 : i32
    %c0_i32_0 = arith.constant 0 : i32
    %c0_i32_1 = arith.constant 0 : i32
    return %c0_i32, %c0_i32_0 : i32, i32
  }
  func.func @transform_5(%arg0: i32) -> (i32, i32) {
    %c0_i32 = arith.constant 0 : i32
    %c0_i32_0 = arith.constant 0 : i32
    %c0_i32_1 = arith.constant 0 : i32
    return %c0_i32, %c0_i32_0 : i32, i32
  }
  func.func @transform_6(%arg0: i32) -> (i32, i32) {
    %c0_i32 = arith.constant 0 : i32
    %c0_i32_0 = arith.constant 0 : i32
    %c0_i32_1 = arith.constant 0 : i32
    return %c0_i32, %c0_i32_0 : i32, i32
  }
  func.func @transform_7(%arg0: i32) -> (i32, i32) {
    %c0_i32 = arith.constant 0 : i32
    %c0_i32_0 = arith.constant 0 : i32
    %c0_i32_1 = arith.constant 0 : i32
    return %c0_i32, %c0_i32_0 : i32, i32
  }
  func.func @transform_8(%arg0: i32) -> (i32, i32) {
    %c0_i32 = arith.constant 0 : i32
    %c0_i32_0 = arith.constant 0 : i32
    %c0_i32_1 = arith.constant 0 : i32
    return %c0_i32, %c0_i32_0 : i32, i32
  }
}

</mosaic_0001>

<llo_original>
// kernel: gru_seq2seq_forward.1
$region0: #{gru_seq2seq_forward.1}
  #allocation0 [shape = 'u32[]', space=smem, size = 0x4, offset = 0x4, fixed_abs, tag = 'smem constant byte address 0x4 - core index']
  #allocation1 [shape = 'u32[72,128]{1,0:T(1,128)}', space=vmem, size = 0x9000, scoped, tag = 'internal scratch']
  #allocation2 [shape = 'f32[64,384]{1,0:T(8,128)}', space=vmem, size = 0x18000, scoped, tag = 'scratch operand']
  #allocation3 [shape = 'f32[56,384]{1,0:T(8,128)}', space=vmem, size = 0x15000, scoped, tag = 'scratch operand']
  #allocation4 [shape = 'f32[56,128]{1,0:T(8,128)}', space=vmem, size = 0x7000, scoped, tag = 'scratch operand']
  %s0 = inlined_call_operand.vmem [shape: f32[64,32], index: 0, kind: input, shape index: {}]
  %s1 = inlined_call_operand.vmem [shape: f32[56,32], index: 1, kind: input, shape index: {}]
  %s2 = inlined_call_operand.vmem [shape: f32[160,384], index: 2, kind: input, shape index: {}]
  %s3 = inlined_call_operand.vmem [shape: f32[1,512], index: 3, kind: input, shape index: {}]
  %s4 = inlined_call_operand.hbm [shape: f32[288,384], index: 4, kind: input, shape index: {}]
  %s5 = inlined_call_operand.vmem [shape: f32[1,512], index: 5, kind: input, shape index: {}]
  %s6 = inlined_call_operand.hbm [shape: f32[288,128], index: 6, kind: input, shape index: {}]
  %s7 = inlined_call_operand.vmem [shape: f32[1,128], index: 7, kind: input, shape index: {}]
  %s8 = inlined_call_operand.vmem [shape: f32[56,128], index: 8, kind: output, shape index: {}]
  %s9 = sld [smem:[#allocation0]]
  $region50: #{gru_seq2seq_forward.1} parent=0
    _
  %s11 = ssub.s32 1, %s9
  %s12 = scalar_select 0, %s11, %s9
  $region1: #{gru_seq2seq_forward.1} parent=0
    #allocation5 [shape = 'u8[442368]{0}', space=vmem, size = 0x6c000, scoped, tag = 'input window, operand 4, single buffered']
    #allocation6 [shape = 's32[1]{0}', space=sflag, size = 0x4, scoped, tag = 'scoped memory for gru_seq2seq_forward.1']
    #allocation7 [shape = 'u8[147456]{0}', space=vmem, size = 0x24000, scoped, tag = 'input window, operand 6, single buffered']
    #allocation8 [shape = 's32[1]{0}', space=sflag, size = 0x4, scoped, tag = 'scoped memory for gru_seq2seq_forward.1']
    %13 = vsyncpa [#allocation6], 0
    %14 = vsyncpa [#allocation8], 0
    // Predicated region
    $region2: #{gru_seq2seq_forward.1} parent=1 // pred_check
      _
    $region3: #{gru_seq2seq_forward.1} parent=1 // pred_check_branch
      %16 = sbr.rel (0) target = $region5
    $region4: #{gru_seq2seq_forward.1} parent=1 // pred_region
      _
    $region5: #{gru_seq2seq_forward.1} parent=1 // pred_fallthru
      _
    // Predicated region
    $region6: #{gru_seq2seq_forward.1} parent=1 // pred_check
      _
    $region7: #{gru_seq2seq_forward.1} parent=1 // pred_check_branch
      %18 = sbr.rel (0) target = $region9
    $region8: #{gru_seq2seq_forward.1} parent=1 // pred_region
      _
    $region9: #{gru_seq2seq_forward.1} parent=1 // pred_fallthru
      _
    // Predicated region
    $region10: #{gru_seq2seq_forward.1} parent=1 // pred_check
      _
    $region11: #{gru_seq2seq_forward.1} parent=1 // pred_check_branch
      %20 = sbr.rel (0) target = $region13
    $region12: #{gru_seq2seq_forward.1} parent=1 // pred_region
      _
    $region13: #{gru_seq2seq_forward.1} parent=1 // pred_fallthru
      _
    // Predicated region
    $region14: #{gru_seq2seq_forward.1} parent=1 // pred_check
      _
    $region15: #{gru_seq2seq_forward.1} parent=1 // pred_check_branch
      %22 = sbr.rel (0) target = $region17
    $region16: #{gru_seq2seq_forward.1} parent=1 // pred_region
      _
    $region17: #{gru_seq2seq_forward.1} parent=1 // pred_fallthru
      _
    // Predicated region
    $region18: #{gru_seq2seq_forward.1} parent=1 // pred_check
      _
    $region19: #{gru_seq2seq_forward.1} parent=1 // pred_check_branch
      %24 = sbr.rel (0) target = $region21
    $region20: #{gru_seq2seq_forward.1} parent=1 // pred_region
      %26 = vsyncadd [#allocation6], 0
      %s27 = sshll.u32 %s4, 4
      %s28 = int_to_ptr.hbm [resolvable:$true] %s27
      %s29 = sshll.u32 [#allocation5], 4
      %s30 = int_to_ptr.vmem [resolvable:$true] %s29
      %35 = dma.hbm_to_vmem [thread:$0]  %s28, 13824, %s30, [#allocation6], 384, 384, 24
    $region21: #{gru_seq2seq_forward.1} parent=1 // pred_fallthru
      _
    // Predicated region
    $region22: #{gru_seq2seq_forward.1} parent=1 // pred_check
      _
    $region23: #{gru_seq2seq_forward.1} parent=1 // pred_check_branch
      %37 = sbr.rel (0) target = $region25
    $region24: #{gru_seq2seq_forward.1} parent=1 // pred_region
      _
    $region25: #{gru_seq2seq_forward.1} parent=1 // pred_fallthru
      _
    // Predicated region
    $region26: #{gru_seq2seq_forward.1} parent=1 // pred_check
      _
    $region27: #{gru_seq2seq_forward.1} parent=1 // pred_check_branch
      %39 = sbr.rel (0) target = $region29
    $region28: #{gru_seq2seq_forward.1} parent=1 // pred_region
      %41 = vsyncadd [#allocation8], 0
      %s42 = sshll.u32 %s6, 4
      %s43 = int_to_ptr.hbm [resolvable:$true] %s42
      %s44 = sshll.u32 [#allocation7], 4
      %s45 = int_to_ptr.vmem [resolvable:$true] %s44
      %50 = dma.hbm_to_vmem [thread:$0]  %s43, 4608, %s45, [#allocation8], 128, 128, 8
    $region29: #{gru_seq2seq_forward.1} parent=1 // pred_fallthru
      _
    // Predicated region
    $region30: #{gru_seq2seq_forward.1} parent=1 // pred_check
      _
    $region31: #{gru_seq2seq_forward.1} parent=1 // pred_check_branch
      %52 = sbr.rel (0) target = $region33
    $region32: #{gru_seq2seq_forward.1} parent=1 // pred_region
      _
    $region33: #{gru_seq2seq_forward.1} parent=1 // pred_fallthru
      _
    // Predicated region
    $region34: #{gru_seq2seq_forward.1} parent=1 // pred_check
      _
    $region35: #{gru_seq2seq_forward.1} parent=1 // pred_check_branch
      %54 = sbr.rel (0) target = $region37
    $region36: #{gru_seq2seq_forward.1} parent=1 // pred_region
      %56 = dma.done [#allocation6], 13824
    $region37: #{gru_seq2seq_forward.1} parent=1 // pred_fallthru
      _
    // Predicated region
    $region38: #{gru_seq2seq_forward.1} parent=1 // pred_check
      _
    $region39: #{gru_seq2seq_forward.1} parent=1 // pred_check_branch
      %58 = sbr.rel (0) target = $region41
    $region40: #{gru_seq2seq_forward.1} parent=1 // pred_region
      %60 = dma.done [#allocation8], 4608
    $region41: #{gru_seq2seq_forward.1} parent=1 // pred_fallthru
      _
    %v61 = vld [vmem:[%s0] sm:$0xff]
    %v62 = vld [vmem:[%s0 + $0x8] sm:$0xff]
    %v63 = vld [vmem:[%s0 + $0x10] sm:$0xff]
    %v64 = vld [vmem:[%s0 + $0x18] sm:$0xff]
    %v65 = vld [vmem:[%s0 + $0x20] sm:$0xff]
    %v66 = vld [vmem:[%s0 + $0x28] sm:$0xff]
    %v67 = vld [vmem:[%s0 + $0x30] sm:$0xff]
    %v68 = vld [vmem:[%s0 + $0x38] sm:$0xff]
    %v69 = vld [vmem:[%s2] sm:$0xff]
    %v70 = vld [vmem:[%s2 + $0x8] sm:$0xff]
    %v71 = vld [vmem:[%s2 + $0x10] sm:$0xff]
    %v72 = vld [vmem:[%s2 + $0x18] sm:$0xff]
    %v73 = vld [vmem:[%s2 + $0x20] sm:$0xff]
    %v74 = vld [vmem:[%s2 + $0x28] sm:$0xff]
    %v75 = vld [vmem:[%s2 + $0x30] sm:$0xff]
    %v76 = vld [vmem:[%s2 + $0x38] sm:$0xff]
    %v77 = vld [vmem:[%s2 + $0x40] sm:$0xff]
    %v78 = vld [vmem:[%s2 + $0x48] sm:$0xff]
    %v79 = vld [vmem:[%s2 + $0x50] sm:$0xff]
    %v80 = vld [vmem:[%s2 + $0x58] sm:$0xff]
    %v81 = vld [vmem:[%s3] sm:$0x7]
    %v83 = vperm.slane %v81, 0
    %v84 = vperm.slane %v81, 1
    %v85 = vperm.slane %v81, 2
    %vm89 = vcmask 261120
    %v91 = vsel %vm89, %v61, 0
    %v94 = vsel %vm89, %v62, 0
    %v97 = vsel %vm89, %v63, 0
    %v100 = vsel %vm89, %v64, 0
    %v103 = vsel %vm89, %v65, 0
    %v106 = vsel %vm89, %v66, 0
    %v109 = vsel %vm89, %v67, 0
    %v112 = vsel %vm89, %v68, 0
    %114 = vmatpush.msra.mxu0 0.0
    %115 = vmatpush.msra.mxu0 0.0
    %116 = vmatpush.msra.mxu0 0.0
    %117 = vmatpush.msra.mxu0 0.0
    %118 = vmatpush.msra.mxu0 0.0
    %119 = vmatpush.msra.mxu0 0.0
    %120 = vmatpush.msra.mxu0 0.0
    %121 = vmatpush.msra.mxu0 0.0
    %122 = vmatpush.msra.mxu0 0.0
    %123 = vmatpush.msra.mxu0 0.0
    %124 = vmatpush.msra.mxu0 0.0
    %125 = vmatpush.msra.mxu0 0.0
    %126 = vmatpush.msra.mxu0 %v78
    %127 = vmatpush.msra.mxu0 %v75
    %128 = vmatpush.msra.mxu0 %v72
    %129 = vmatpush.msra.mxu0 %v69
    %130 = vmatmul.f32.gmra.mxu0 %v91
    %v131 = vpop.f32.mrf.mxu0
    %v132 = vadd.f32 %v83, %v131
    %133 = vmatmul.f32.gmra.mxu0 %v94
    %v134 = vpop.f32.mrf.mxu0
    %v135 = vadd.f32 %v83, %v134
    %136 = vmatmul.f32.gmra.mxu0 %v97
    %v137 = vpop.f32.mrf.mxu0
    %v138 = vadd.f32 %v83, %v137
    %139 = vmatmul.f32.gmra.mxu0 %v100
    %v140 = vpop.f32.mrf.mxu0
    %v141 = vadd.f32 %v83, %v140
    %142 = vmatmul.f32.gmra.mxu0 %v103
    %v143 = vpop.f32.mrf.mxu0
    %v144 = vadd.f32 %v83, %v143
    %145 = vmatmul.f32.gmra.mxu0 %v106
    %v146 = vpop.f32.mrf.mxu0
    %v147 = vadd.f32 %v83, %v146
    %148 = vmatmul.f32.gmra.mxu0 %v109
    %v149 = vpop.f32.mrf.mxu0
    %v150 = vadd.f32 %v83, %v149
    %151 = vmatmul.f32.gmra.mxu0 %v112
    %v152 = vpop.f32.mrf.mxu0
    %v153 = vadd.f32 %v83, %v152
    %154 = vdwg.mxu0
    %155 = vmatpush.msra.mxu0 0.0
    %156 = vmatpush.msra.mxu0 0.0
    %157 = vmatpush.msra.mxu0 0.0
    %158 = vmatpush.msra.mxu0 0.0
    %159 = vmatpush.msra.mxu0 0.0
    %160 = vmatpush.msra.mxu0 0.0
    %161 = vmatpush.msra.mxu0 0.0
    %162 = vmatpush.msra.mxu0 0.0
    %163 = vmatpush.msra.mxu0 0.0
    %164 = vmatpush.msra.mxu0 0.0
    %165 = vmatpush.msra.mxu0 0.0
    %166 = vmatpush.msra.mxu0 0.0
    %167 = vmatpush.msra.mxu0 %v79
    %168 = vmatpush.msra.mxu0 %v76
    %169 = vmatpush.msra.mxu0 %v73
    %170 = vmatpush.msra.mxu0 %v70
    %171 = vmatmul.f32.gmra.mxu0 %v91
    %v172 = vpop.f32.mrf.mxu0
    %v173 = vadd.f32 %v84, %v172
    %174 = vmatmul.f32.gmra.mxu0 %v94
    %v175 = vpop.f32.mrf.mxu0
    %v176 = vadd.f32 %v84, %v175
    %177 = vmatmul.f32.gmra.mxu0 %v97
    %v178 = vpop.f32.mrf.mxu0
    %v179 = vadd.f32 %v84, %v178
    %180 = vmatmul.f32.gmra.mxu0 %v100
    %v181 = vpop.f32.mrf.mxu0
    %v182 = vadd.f32 %v84, %v181
    %183 = vmatmul.f32.gmra.mxu0 %v103
    %v184 = vpop.f32.mrf.mxu0
    %v185 = vadd.f32 %v84, %v184
    %186 = vmatmul.f32.gmra.mxu0 %v106
    %v187 = vpop.f32.mrf.mxu0
    %v188 = vadd.f32 %v84, %v187
    %189 = vmatmul.f32.gmra.mxu0 %v109
    %v190 = vpop.f32.mrf.mxu0
    %v191 = vadd.f32 %v84, %v190
    %192 = vmatmul.f32.gmra.mxu0 %v112
    %v193 = vpop.f32.mrf.mxu0
    %v194 = vadd.f32 %v84, %v193
    %195 = vdwg.mxu0
    %196 = vmatpush.msra.mxu0 0.0
    %197 = vmatpush.msra.mxu0 0.0
    %198 = vmatpush.msra.mxu0 0.0
    %199 = vmatpush.msra.mxu0 0.0
    %200 = vmatpush.msra.mxu0 0.0
    %201 = vmatpush.msra.mxu0 0.0
    %202 = vmatpush.msra.mxu0 0.0
    %203 = vmatpush.msra.mxu0 0.0
    %204 = vmatpush.msra.mxu0 0.0
    %205 = vmatpush.msra.mxu0 0.0
    %206 = vmatpush.msra.mxu0 0.0
    %207 = vmatpush.msra.mxu0 0.0
    %208 = vmatpush.msra.mxu0 %v80
    %209 = vmatpush.msra.mxu0 %v77
    %210 = vmatpush.msra.mxu0 %v74
    %211 = vmatpush.msra.mxu0 %v71
    %212 = vmatmul.f32.gmra.mxu0 %v91
    %v213 = vpop.f32.mrf.mxu0
    %v214 = vadd.f32 %v85, %v213
    %215 = vmatmul.f32.gmra.mxu0 %v94
    %v216 = vpop.f32.mrf.mxu0
    %v217 = vadd.f32 %v85, %v216
    %218 = vmatmul.f32.gmra.mxu0 %v97
    %v219 = vpop.f32.mrf.mxu0
    %v220 = vadd.f32 %v85, %v219
    %221 = vmatmul.f32.gmra.mxu0 %v100
    %v222 = vpop.f32.mrf.mxu0
    %v223 = vadd.f32 %v85, %v222
    %224 = vmatmul.f32.gmra.mxu0 %v103
    %v225 = vpop.f32.mrf.mxu0
    %v226 = vadd.f32 %v85, %v225
    %227 = vmatmul.f32.gmra.mxu0 %v106
    %v228 = vpop.f32.mrf.mxu0
    %v229 = vadd.f32 %v85, %v228
    %230 = vmatmul.f32.gmra.mxu0 %v109
    %v231 = vpop.f32.mrf.mxu0
    %v232 = vadd.f32 %v85, %v231
    %233 = vmatmul.f32.gmra.mxu0 %v112
    %v234 = vpop.f32.mrf.mxu0
    %v235 = vadd.f32 %v85, %v234
    %236 = vdwg.mxu0
    %237 = vst [vmem:[#allocation2] sm:$0xff] %v132
    %238 = vst [vmem:[#allocation2 + $0x8] sm:$0xff] %v173
    %239 = vst [vmem:[#allocation2 + $0x10] sm:$0xff] %v214
    %240 = vst [vmem:[#allocation2 + $0x18] sm:$0xff] %v135
    %241 = vst [vmem:[#allocation2 + $0x20] sm:$0xff] %v176
    %242 = vst [vmem:[#allocation2 + $0x28] sm:$0xff] %v217
    %243 = vst [vmem:[#allocation2 + $0x30] sm:$0xff] %v138
    %244 = vst [vmem:[#allocation2 + $0x38] sm:$0xff] %v179
    %245 = vst [vmem:[#allocation2 + $0x40] sm:$0xff] %v220
    %246 = vst [vmem:[#allocation2 + $0x48] sm:$0xff] %v141
    %247 = vst [vmem:[#allocation2 + $0x50] sm:$0xff] %v182
    %248 = vst [vmem:[#allocation2 + $0x58] sm:$0xff] %v223
    %249 = vst [vmem:[#allocation2 + $0x60] sm:$0xff] %v144
    %250 = vst [vmem:[#allocation2 + $0x68] sm:$0xff] %v185
    %251 = vst [vmem:[#allocation2 + $0x70] sm:$0xff] %v226
    %252 = vst [vmem:[#allocation2 + $0x78] sm:$0xff] %v147
    %253 = vst [vmem:[#allocation2 + $0x80] sm:$0xff] %v188
    %254 = vst [vmem:[#allocation2 + $0x88] sm:$0xff] %v229
    %255 = vst [vmem:[#allocation2 + $0x90] sm:$0xff] %v150
    %256 = vst [vmem:[#allocation2 + $0x98] sm:$0xff] %v191
    %257 = vst [vmem:[#allocation2 + $0xa0] sm:$0xff] %v232
    %258 = vst [vmem:[#allocation2 + $0xa8] sm:$0xff] %v153
    %259 = vst [vmem:[#allocation2 + $0xb0] sm:$0xff] %v194
    %260 = vst [vmem:[#allocation2 + $0xb8] sm:$0xff] %v235
    %v261 = vld [vmem:[%s1] sm:$0xff]
    %v262 = vld [vmem:[%s1 + $0x8] sm:$0xff]
    %v263 = vld [vmem:[%s1 + $0x10] sm:$0xff]
    %v264 = vld [vmem:[%s1 + $0x18] sm:$0xff]
    %v265 = vld [vmem:[%s1 + $0x20] sm:$0xff]
    %v266 = vld [vmem:[%s1 + $0x28] sm:$0xff]
    %v267 = vld [vmem:[%s1 + $0x30] sm:$0xff]
    %v268 = vld [vmem:[#allocation5] sm:$0xff]
    %v269 = vld [vmem:[#allocation5 + $0x8] sm:$0xff]
    %v270 = vld [vmem:[#allocation5 + $0x10] sm:$0xff]
    %v271 = vld [vmem:[#allocation5 + $0x18] sm:$0xff]
    %v272 = vld [vmem:[#allocation5 + $0x20] sm:$0xff]
    %v273 = vld [vmem:[#allocation5 + $0x28] sm:$0xff]
    %v274 = vld [vmem:[#allocation5 + $0x30] sm:$0xff]
    %v275 = vld [vmem:[#allocation5 + $0x38] sm:$0xff]
    %v276 = vld [vmem:[#allocation5 + $0x40] sm:$0xff]
    %v277 = vld [vmem:[#allocation5 + $0x48] sm:$0xff]
    %v278 = vld [vmem:[#allocation5 + $0x50] sm:$0xff]
    %v279 = vld [vmem:[#allocation5 + $0x58] sm:$0xff]
    %v280 = vld [vmem:[%s5] sm:$0x7]
    %v282 = vperm.slane %v280, 0
    %v283 = vperm.slane %v280, 1
    %v284 = vperm.slane %v280, 2
    %v289 = vsel %vm89, %v261, 0
    %v292 = vsel %vm89, %v262, 0
    %v295 = vsel %vm89, %v263, 0
    %v298 = vsel %vm89, %v264, 0
    %v301 = vsel %vm89, %v265, 0
    %v304 = vsel %vm89, %v266, 0
    %v307 = vsel %vm89, %v267, 0
    %309 = vmatpush.msra.mxu0 0.0
    %310 = vmatpush.msra.mxu0 0.0
    %311 = vmatpush.msra.mxu0 0.0
    %312 = vmatpush.msra.mxu0 0.0
    %313 = vmatpush.msra.mxu0 0.0
    %314 = vmatpush.msra.mxu0 0.0
    %315 = vmatpush.msra.mxu0 0.0
    %316 = vmatpush.msra.mxu0 0.0
    %317 = vmatpush.msra.mxu0 0.0
    %318 = vmatpush.msra.mxu0 0.0
    %319 = vmatpush.msra.mxu0 0.0
    %320 = vmatpush.msra.mxu0 0.0
    %321 = vmatpush.msra.mxu0 %v277
    %322 = vmatpush.msra.mxu0 %v274
    %323 = vmatpush.msra.mxu0 %v271
    %324 = vmatpush.msra.mxu0 %v268
    %325 = vmatmul.f32.gmra.mxu0 %v289
    %v326 = vpop.f32.mrf.mxu0
    %v327 = vadd.f32 %v282, %v326
    %328 = vmatmul.f32.gmra.mxu0 %v292
    %v329 = vpop.f32.mrf.mxu0
    %v330 = vadd.f32 %v282, %v329
    %331 = vmatmul.f32.gmra.mxu0 %v295
    %v332 = vpop.f32.mrf.mxu0
    %v333 = vadd.f32 %v282, %v332
    %334 = vmatmul.f32.gmra.mxu0 %v298
    %v335 = vpop.f32.mrf.mxu0
    %v336 = vadd.f32 %v282, %v335
    %337 = vmatmul.f32.gmra.mxu0 %v301
    %v338 = vpop.f32.mrf.mxu0
    %v339 = vadd.f32 %v282, %v338
    %340 = vmatmul.f32.gmra.mxu0 %v304
    %v341 = vpop.f32.mrf.mxu0
    %v342 = vadd.f32 %v282, %v341
    %343 = vmatmul.f32.gmra.mxu0 %v307
    %v344 = vpop.f32.mrf.mxu0
    %v345 = vadd.f32 %v282, %v344
    %346 = vdwg.mxu0
    %347 = vmatpush.msra.mxu0 0.0
    %348 = vmatpush.msra.mxu0 0.0
    %349 = vmatpush.msra.mxu0 0.0
    %350 = vmatpush.msra.mxu0 0.0
    %351 = vmatpush.msra.mxu0 0.0
    %352 = vmatpush.msra.mxu0 0.0
    %353 = vmatpush.msra.mxu0 0.0
    %354 = vmatpush.msra.mxu0 0.0
    %355 = vmatpush.msra.mxu0 0.0
    %356 = vmatpush.msra.mxu0 0.0
    %357 = vmatpush.msra.mxu0 0.0
    %358 = vmatpush.msra.mxu0 0.0
    %359 = vmatpush.msra.mxu0 %v278
    %360 = vmatpush.msra.mxu0 %v275
    %361 = vmatpush.msra.mxu0 %v272
    %362 = vmatpush.msra.mxu0 %v269
    %363 = vmatmul.f32.gmra.mxu0 %v289
    %v364 = vpop.f32.mrf.mxu0
    %v365 = vadd.f32 %v283, %v364
    %366 = vmatmul.f32.gmra.mxu0 %v292
    %v367 = vpop.f32.mrf.mxu0
    %v368 = vadd.f32 %v283, %v367
    %369 = vmatmul.f32.gmra.mxu0 %v295
    %v370 = vpop.f32.mrf.mxu0
    %v371 = vadd.f32 %v283, %v370
    %372 = vmatmul.f32.gmra.mxu0 %v298
    %v373 = vpop.f32.mrf.mxu0
    %v374 = vadd.f32 %v283, %v373
    %375 = vmatmul.f32.gmra.mxu0 %v301
    %v376 = vpop.f32.mrf.mxu0
    %v377 = vadd.f32 %v283, %v376
    %378 = vmatmul.f32.gmra.mxu0 %v304
    %v379 = vpop.f32.mrf.mxu0
    %v380 = vadd.f32 %v283, %v379
    %381 = vmatmul.f32.gmra.mxu0 %v307
    %v382 = vpop.f32.mrf.mxu0
    %v383 = vadd.f32 %v283, %v382
    %384 = vdwg.mxu0
    %385 = vmatpush.msra.mxu0 0.0
    %386 = vmatpush.msra.mxu0 0.0
    %387 = vmatpush.msra.mxu0 0.0
    %388 = vmatpush.msra.mxu0 0.0
    %389 = vmatpush.msra.mxu0 0.0
    %390 = vmatpush.msra.mxu0 0.0
    %391 = vmatpush.msra.mxu0 0.0
    %392 = vmatpush.msra.mxu0 0.0
    %393 = vmatpush.msra.mxu0 0.0
    %394 = vmatpush.msra.mxu0 0.0
    %395 = vmatpush.msra.mxu0 0.0
    %396 = vmatpush.msra.mxu0 0.0
    %397 = vmatpush.msra.mxu0 %v279
    %398 = vmatpush.msra.mxu0 %v276
    %399 = vmatpush.msra.mxu0 %v273
    %400 = vmatpush.msra.mxu0 %v270
    %401 = vmatmul.f32.gmra.mxu0 %v289
    %v402 = vpop.f32.mrf.mxu0
    %v403 = vadd.f32 %v284, %v402
    %404 = vmatmul.f32.gmra.mxu0 %v292
    %v405 = vpop.f32.mrf.mxu0
    %v406 = vadd.f32 %v284, %v405
    %407 = vmatmul.f32.gmra.mxu0 %v295
    %v408 = vpop.f32.mrf.mxu0
    %v409 = vadd.f32 %v284, %v408
    %410 = vmatmul.f32.gmra.mxu0 %v298
    %v411 = vpop.f32.mrf.mxu0
    %v412 = vadd.f32 %v284, %v411
    %413 = vmatmul.f32.gmra.mxu0 %v301
    %v414 = vpop.f32.mrf.mxu0
    %v415 = vadd.f32 %v284, %v414
    %416 = vmatmul.f32.gmra.mxu0 %v304
    %v417 = vpop.f32.mrf.mxu0
    %v418 = vadd.f32 %v284, %v417
    %419 = vmatmul.f32.gmra.mxu0 %v307
    %v420 = vpop.f32.mrf.mxu0
    %v421 = vadd.f32 %v284, %v420
    %422 = vdwg.mxu0
    %423 = vst [vmem:[#allocation3] sm:$0xff] %v327
    %424 = vst [vmem:[#allocation3 + $0x8] sm:$0xff] %v365
    %425 = vst [vmem:[#allocation3 + $0x10] sm:$0xff] %v403
    %426 = vst [vmem:[#allocation3 + $0x18] sm:$0xff] %v330
    %427 = vst [vmem:[#allocation3 + $0x20] sm:$0xff] %v368
    %428 = vst [vmem:[#allocation3 + $0x28] sm:$0xff] %v406
    %429 = vst [vmem:[#allocation3 + $0x30] sm:$0xff] %v333
    %430 = vst [vmem:[#allocation3 + $0x38] sm:$0xff] %v371
    %431 = vst [vmem:[#allocation3 + $0x40] sm:$0xff] %v409
    %432 = vst [vmem:[#allocation3 + $0x48] sm:$0xff] %v336
    %433 = vst [vmem:[#allocation3 + $0x50] sm:$0xff] %v374
    %434 = vst [vmem:[#allocation3 + $0x58] sm:$0xff] %v412
    %435 = vst [vmem:[#allocation3 + $0x60] sm:$0xff] %v339
    %436 = vst [vmem:[#allocation3 + $0x68] sm:$0xff] %v377
    %437 = vst [vmem:[#allocation3 + $0x70] sm:$0xff] %v415
    %438 = vst [vmem:[#allocation3 + $0x78] sm:$0xff] %v342
    %439 = vst [vmem:[#allocation3 + $0x80] sm:$0xff] %v380
    %440 = vst [vmem:[#allocation3 + $0x88] sm:$0xff] %v418
    %441 = vst [vmem:[#allocation3 + $0x90] sm:$0xff] %v345
    %442 = vst [vmem:[#allocation3 + $0x98] sm:$0xff] %v383
    %443 = vst [vmem:[#allocation3 + $0xa0] sm:$0xff] %v421
    %v444 = vld [vmem:[%s1] sm:$0xff]
    %v445 = vld [vmem:[%s1 + $0x8] sm:$0xff]
    %v446 = vld [vmem:[%s1 + $0x10] sm:$0xff]
    %v447 = vld [vmem:[%s1 + $0x18] sm:$0xff]
    %v448 = vld [vmem:[%s1 + $0x20] sm:$0xff]
    %v449 = vld [vmem:[%s1 + $0x28] sm:$0xff]
    %v450 = vld [vmem:[%s1 + $0x30] sm:$0xff]
    %v451 = vld [vmem:[#allocation7] sm:$0xff]
    %v452 = vld [vmem:[#allocation7 + $0x8] sm:$0xff]
    %v453 = vld [vmem:[#allocation7 + $0x10] sm:$0xff]
    %v454 = vld [vmem:[#allocation7 + $0x18] sm:$0xff]
    %v456 = vsel %vm89, %v444, 0
    %v459 = vsel %vm89, %v445, 0
    %v462 = vsel %vm89, %v446, 0
    %v465 = vsel %vm89, %v447, 0
    %v468 = vsel %vm89, %v448, 0
    %v471 = vsel %vm89, %v449, 0
    %v474 = vsel %vm89, %v450, 0
    %476 = vmatpush.msra.mxu0 0.0
    %477 = vmatpush.msra.mxu0 0.0
    %478 = vmatpush.msra.mxu0 0.0
    %479 = vmatpush.msra.mxu0 0.0
    %480 = vmatpush.msra.mxu0 0.0
    %481 = vmatpush.msra.mxu0 0.0
    %482 = vmatpush.msra.mxu0 0.0
    %483 = vmatpush.msra.mxu0 0.0
    %484 = vmatpush.msra.mxu0 0.0
    %485 = vmatpush.msra.mxu0 0.0
    %486 = vmatpush.msra.mxu0 0.0
    %487 = vmatpush.msra.mxu0 0.0
    %488 = vmatpush.msra.mxu0 %v454
    %489 = vmatpush.msra.mxu0 %v453
    %490 = vmatpush.msra.mxu0 %v452
    %491 = vmatpush.msra.mxu0 %v451
    %492 = vmatmul.f32.gmra.mxu0 %v456
    %v493 = vpop.f32.mrf.mxu0
    %v494 = vadd.f32 0.0, %v493
    %495 = vmatmul.f32.gmra.mxu0 %v459
    %v496 = vpop.f32.mrf.mxu0
    %v497 = vadd.f32 0.0, %v496
    %498 = vmatmul.f32.gmra.mxu0 %v462
    %v499 = vpop.f32.mrf.mxu0
    %v500 = vadd.f32 0.0, %v499
    %501 = vmatmul.f32.gmra.mxu0 %v465
    %v502 = vpop.f32.mrf.mxu0
    %v503 = vadd.f32 0.0, %v502
    %504 = vmatmul.f32.gmra.mxu0 %v468
    %v505 = vpop.f32.mrf.mxu0
    %v506 = vadd.f32 0.0, %v505
    %507 = vmatmul.f32.gmra.mxu0 %v471
    %v508 = vpop.f32.mrf.mxu0
    %v509 = vadd.f32 0.0, %v508
    %510 = vmatmul.f32.gmra.mxu0 %v474
    %v511 = vpop.f32.mrf.mxu0
    %v512 = vadd.f32 0.0, %v511
    %513 = vdwg.mxu0
    %514 = vst [vmem:[#allocation4] sm:$0xff] %v494
    %515 = vst [vmem:[#allocation4 + $0x8] sm:$0xff] %v497
    %516 = vst [vmem:[#allocation4 + $0x10] sm:$0xff] %v500
    %517 = vst [vmem:[#allocation4 + $0x18] sm:$0xff] %v503
    %518 = vst [vmem:[#allocation4 + $0x20] sm:$0xff] %v506
    %519 = vst [vmem:[#allocation4 + $0x28] sm:$0xff] %v509
    %520 = vst [vmem:[#allocation4 + $0x30] sm:$0xff] %v512
    %v521 = vld [vmem:[%s3 + $0x3] sm:$0x1]
    %v523 = vperm.slane %v521, 0
    %v525 = vld [vmem:[%s5 + $0x3] sm:$0x1]
    %v527 = vperm.slane %v525, 0
    %s529 = smul.u32 0, 3
    %s530 = smul.addr %s529, 8
    %s531 = scalar_lea.vmem [#allocation2], %s530
    %v532 = vld [vmem:[%s531] sm:$0xff]
    %v533 = vld [vmem:[%s531 + $0x8] sm:$0xff]
    %v534 = vld [vmem:[%s531 + $0x10] sm:$0xff]
    %v535 = vld [vmem:[%s2 + $0x60] sm:$0xff]
    %v536 = vld [vmem:[%s2 + $0x68] sm:$0xff]
    %v537 = vld [vmem:[%s2 + $0x70] sm:$0xff]
    %v538 = vld [vmem:[%s2 + $0x78] sm:$0xff]
    %v539 = vld [vmem:[%s2 + $0x80] sm:$0xff]
    %v540 = vld [vmem:[%s2 + $0x88] sm:$0xff]
    %v541 = vld [vmem:[%s2 + $0x90] sm:$0xff]
    %v542 = vld [vmem:[%s2 + $0x98] sm:$0xff]
    %v543 = vld [vmem:[%s2 + $0xa0] sm:$0xff]
    %v544 = vld [vmem:[%s2 + $0xa8] sm:$0xff]
    %v545 = vld [vmem:[%s2 + $0xb0] sm:$0xff]
    %v546 = vld [vmem:[%s2 + $0xb8] sm:$0xff]
    %v547 = vld [vmem:[%s2 + $0xc0] sm:$0xff]
    %v548 = vld [vmem:[%s2 + $0xc8] sm:$0xff]
    %v549 = vld [vmem:[%s2 + $0xd0] sm:$0xff]
    %v550 = vld [vmem:[%s2 + $0xd8] sm:$0xff]
    %v551 = vld [vmem:[%s2 + $0xe0] sm:$0xff]
    %v552 = vld [vmem:[%s2 + $0xe8] sm:$0xff]
    %v553 = vld [vmem:[%s2 + $0xf0] sm:$0xff]
    %v554 = vld [vmem:[%s2 + $0xf8] sm:$0xff]
    %v555 = vld [vmem:[%s2 + $0x100] sm:$0xff]
    %v556 = vld [vmem:[%s2 + $0x108] sm:$0xff]
    %v557 = vld [vmem:[%s2 + $0x110] sm:$0xff]
    %v558 = vld [vmem:[%s2 + $0x118] sm:$0xff]
    %v559 = vld [vmem:[%s2 + $0x120] sm:$0xff]
    %v560 = vld [vmem:[%s2 + $0x128] sm:$0xff]
    %v561 = vld [vmem:[%s2 + $0x130] sm:$0xff]
    %v562 = vld [vmem:[%s2 + $0x138] sm:$0xff]
    %v563 = vld [vmem:[%s2 + $0x140] sm:$0xff]
    %v564 = vld [vmem:[%s2 + $0x148] sm:$0xff]
    %v565 = vld [vmem:[%s2 + $0x150] sm:$0xff]
    %v566 = vld [vmem:[%s2 + $0x158] sm:$0xff]
    %v567 = vld [vmem:[%s2 + $0x160] sm:$0xff]
    %v568 = vld [vmem:[%s2 + $0x168] sm:$0xff]
    %v569 = vld [vmem:[%s2 + $0x170] sm:$0xff]
    %v570 = vld [vmem:[%s2 + $0x178] sm:$0xff]
    %v571 = vld [vmem:[%s2 + $0x180] sm:$0xff]
    %v572 = vld [vmem:[%s2 + $0x188] sm:$0xff]
    %v573 = vld [vmem:[%s2 + $0x190] sm:$0xff]
    %v574 = vld [vmem:[%s2 + $0x198] sm:$0xff]
    %v575 = vld [vmem:[%s2 + $0x1a0] sm:$0xff]
    %v576 = vld [vmem:[%s2 + $0x1a8] sm:$0xff]
    %v577 = vld [vmem:[%s2 + $0x1b0] sm:$0xff]
    %v578 = vld [vmem:[%s2 + $0x1b8] sm:$0xff]
    %v579 = vld [vmem:[%s2 + $0x1c0] sm:$0xff]
    %v580 = vld [vmem:[%s2 + $0x1c8] sm:$0xff]
    %v581 = vld [vmem:[%s2 + $0x1d0] sm:$0xff]
    %v582 = vld [vmem:[%s2 + $0x1d8] sm:$0xff]
    %583 = vmatpush.msra.mxu0 %v580
    %584 = vmatpush.msra.mxu0 %v577
    %585 = vmatpush.msra.mxu0 %v574
    %586 = vmatpush.msra.mxu0 %v571
    %587 = vmatpush.msra.mxu0 %v568
    %588 = vmatpush.msra.mxu0 %v565
    %589 = vmatpush.msra.mxu0 %v562
    %590 = vmatpush.msra.mxu0 %v559
    %591 = vmatpush.msra.mxu0 %v556
    %592 = vmatpush.msra.mxu0 %v553
    %593 = vmatpush.msra.mxu0 %v550
    %594 = vmatpush.msra.mxu0 %v547
    %595 = vmatpush.msra.mxu0 %v544
    %596 = vmatpush.msra.mxu0 %v541
    %597 = vmatpush.msra.mxu0 %v538
    %598 = vmatpush.msra.mxu0 %v535
    %599 = vmatmul.f32.gmra.mxu0 0.0
    %v600 = vpop.f32.mrf.mxu0
    %v601 = vadd.f32 0.0, %v600
    %602 = vdwg.mxu0
    %603 = vmatpush.msra.mxu0 %v581
    %604 = vmatpush.msra.mxu0 %v578
    %605 = vmatpush.msra.mxu0 %v575
    %606 = vmatpush.msra.mxu0 %v572
    %607 = vmatpush.msra.mxu0 %v569
    %608 = vmatpush.msra.mxu0 %v566
    %609 = vmatpush.msra.mxu0 %v563
    %610 = vmatpush.msra.mxu0 %v560
    %611 = vmatpush.msra.mxu0 %v557
    %612 = vmatpush.msra.mxu0 %v554
    %613 = vmatpush.msra.mxu0 %v551
    %614 = vmatpush.msra.mxu0 %v548
    %615 = vmatpush.msra.mxu0 %v545
    %616 = vmatpush.msra.mxu0 %v542
    %617 = vmatpush.msra.mxu0 %v539
    %618 = vmatpush.msra.mxu0 %v536
    %619 = vmatmul.f32.gmra.mxu0 0.0
    %v620 = vpop.f32.mrf.mxu0
    %v621 = vadd.f32 0.0, %v620
    %622 = vdwg.mxu0
    %623 = vmatpush.msra.mxu0 %v582
    %624 = vmatpush.msra.mxu0 %v579
    %625 = vmatpush.msra.mxu0 %v576
    %626 = vmatpush.msra.mxu0 %v573
    %627 = vmatpush.msra.mxu0 %v570
    %628 = vmatpush.msra.mxu0 %v567
    %629 = vmatpush.msra.mxu0 %v564
    %630 = vmatpush.msra.mxu0 %v561
    %631 = vmatpush.msra.mxu0 %v558
    %632 = vmatpush.msra.mxu0 %v555
    %633 = vmatpush.msra.mxu0 %v552
    %634 = vmatpush.msra.mxu0 %v549
    %635 = vmatpush.msra.mxu0 %v546
    %636 = vmatpush.msra.mxu0 %v543
    %637 = vmatpush.msra.mxu0 %v540
    %638 = vmatpush.msra.mxu0 %v537
    %639 = vmatmul.f32.gmra.mxu0 0.0
    %v640 = vpop.f32.mrf.mxu0
    %v641 = vadd.f32 0.0, %v640
    %642 = vdwg.mxu0
    %v643 = vadd.f32 %v532, %v601
    %v644 = vxor.u32 %v643, 2147483648
    %v645 = vmul.f32 %v644, 1.442695
    %v646 = vpow.pop %v645
    %v647 = vadd.f32 %v646, 1.0
    %v648 = vrcp.pop %v647
    %v649 = vmul.f32 %v647, %v648
    %v650 = vsub.f32 1.0, %v649
    %v651 = vmul.f32 %v648, %v650
    %v652 = vadd.f32 %v648, %v651
    %vm653 = vweird.f32 %v647
    %vm654 = vweird.f32 %v648
    %vm655 = vmor %vm653, %vm654
    %v656 = vsel %vm655, %v648, %v652
    %v657 = vand.u32 2147483647, %v647
    %vm658 = vcmp.eq.f32.partialorder %v657, 8.507059e+37
    %v659 = vand.u32 %v647, 2147483648
    %v660 = vor.u32 1.1754944e-38, %v659
    %v661 = vsel %vm658, %v660, %v656
    %v662 = vmul.f32 1.0, %v661
    %v663 = vadd.f32 %v533, %v621
    %v664 = vxor.u32 %v663, 2147483648
    %v665 = vmul.f32 %v664, 1.442695
    %v666 = vpow.pop %v665
    %v667 = vadd.f32 %v666, 1.0
    %v668 = vrcp.pop %v667
    %v669 = vmul.f32 %v667, %v668
    %v670 = vsub.f32 1.0, %v669
    %v671 = vmul.f32 %v668, %v670
    %v672 = vadd.f32 %v668, %v671
    %vm673 = vweird.f32 %v667
    %vm674 = vweird.f32 %v668
    %vm675 = vmor %vm673, %vm674
    %v676 = vsel %vm675, %v668, %v672
    %v677 = vand.u32 2147483647, %v667
    %vm678 = vcmp.eq.f32.partialorder %v677, 8.507059e+37
    %v679 = vand.u32 %v667, 2147483648
    %v680 = vor.u32 1.1754944e-38, %v679
    %v681 = vsel %vm678, %v680, %v676
    %v682 = vmul.f32 1.0, %v681
    %v683 = vadd.f32 %v641, %v523
    %v684 = vmul.f32 %v662, %v683
    %v685 = vadd.f32 %v534, %v684
    %v686 = vtanh.pop %v685
    %v687 = vsub.f32 1.0, %v682
    %v688 = vmul.f32 %v687, %v686
    %v689 = vmul.f32 %v682, 0.0
    %v690 = vadd.f32 %v688, %v689
    %s691 = smul.u32 1, 3
    %s692 = smul.addr %s691, 8
    %s693 = scalar_lea.vmem [#allocation2], %s692
    %v694 = vld [vmem:[%s693] sm:$0xff]
    %v695 = vld [vmem:[%s693 + $0x8] sm:$0xff]
    %v696 = vld [vmem:[%s693 + $0x10] sm:$0xff]
    %697 = vmatpush.msra.mxu0 %v580
    %698 = vmatpush.msra.mxu0 %v577
    %699 = vmatpush.msra.mxu0 %v574
    %700 = vmatpush.msra.mxu0 %v571
    %701 = vmatpush.msra.mxu0 %v568
    %702 = vmatpush.msra.mxu0 %v565
    %703 = vmatpush.msra.mxu0 %v562
    %704 = vmatpush.msra.mxu0 %v559
    %705 = vmatpush.msra.mxu0 %v556
    %706 = vmatpush.msra.mxu0 %v553
    %707 = vmatpush.msra.mxu0 %v550
    %708 = vmatpush.msra.mxu0 %v547
    %709 = vmatpush.msra.mxu0 %v544
    %710 = vmatpush.msra.mxu0 %v541
    %711 = vmatpush.msra.mxu0 %v538
    %712 = vmatpush.msra.mxu0 %v535
    %713 = vmatmul.f32.gmra.mxu0 %v690
    %v714 = vpop.f32.mrf.mxu0
    %v715 = vadd.f32 0.0, %v714
    %716 = vdwg.mxu0
    %717 = vmatpush.msra.mxu0 %v581
    %718 = vmatpush.msra.mxu0 %v578
    %719 = vmatpush.msra.mxu0 %v575
    %720 = vmatpush.msra.mxu0 %v572
    %721 = vmatpush.msra.mxu0 %v569
    %722 = vmatpush.msra.mxu0 %v566
    %723 = vmatpush.msra.mxu0 %v563
    %724 = vmatpush.msra.mxu0 %v560
    %725 = vmatpush.msra.mxu0 %v557
    %726 = vmatpush.msra.mxu0 %v554
    %727 = vmatpush.msra.mxu0 %v551
    %728 = vmatpush.msra.mxu0 %v548
    %729 = vmatpush.msra.mxu0 %v545
    %730 = vmatpush.msra.mxu0 %v542
    %731 = vmatpush.msra.mxu0 %v539
    %732 = vmatpush.msra.mxu0 %v536
    %733 = vmatmul.f32.gmra.mxu0 %v690
    %v734 = vpop.f32.mrf.mxu0
    %v735 = vadd.f32 0.0, %v734
    %736 = vdwg.mxu0
    %737 = vmatpush.msra.mxu0 %v582
    %738 = vmatpush.msra.mxu0 %v579
    %739 = vmatpush.msra.mxu0 %v576
    %740 = vmatpush.msra.mxu0 %v573
    %741 = vmatpush.msra.mxu0 %v570
    %742 = vmatpush.msra.mxu0 %v567
    %743 = vmatpush.msra.mxu0 %v564
    %744 = vmatpush.msra.mxu0 %v561
    %745 = vmatpush.msra.mxu0 %v558
    %746 = vmatpush.msra.mxu0 %v555
    %747 = vmatpush.msra.mxu0 %v552
    %748 = vmatpush.msra.mxu0 %v549
    %749 = vmatpush.msra.mxu0 %v546
    %750 = vmatpush.msra.mxu0 %v543
    %751 = vmatpush.msra.mxu0 %v540
    %752 = vmatpush.msra.mxu0 %v537
    %753 = vmatmul.f32.gmra.mxu0 %v690
    %v754 = vpop.f32.mrf.mxu0
    %v755 = vadd.f32 0.0, %v754
    %756 = vdwg.mxu0
    %v757 = vadd.f32 %v694, %v715
    %v758 = vxor.u32 %v757, 2147483648
    %v759 = vmul.f32 %v758, 1.442695
    %v760 = vpow.pop %v759
    %v761 = vadd.f32 %v760, 1.0
    %v762 = vrcp.pop %v761
    %v763 = vmul.f32 %v761, %v762
    %v764 = vsub.f32 1.0, %v763
    %v765 = vmul.f32 %v762, %v764
    %v766 = vadd.f32 %v762, %v765
    %vm767 = vweird.f32 %v761
    %vm768 = vweird.f32 %v762
    %vm769 = vmor %vm767, %vm768
    %v770 = vsel %vm769, %v762, %v766
    %v771 = vand.u32 2147483647, %v761
    %vm772 = vcmp.eq.f32.partialorder %v771, 8.507059e+37
    %v773 = vand.u32 %v761, 2147483648
    %v774 = vor.u32 1.1754944e-38, %v773
    %v775 = vsel %vm772, %v774, %v770
    %v776 = vmul.f32 1.0, %v775
    %v777 = vadd.f32 %v695, %v735
    %v778 = vxor.u32 %v777, 2147483648
    %v779 = vmul.f32 %v778, 1.442695
    %v780 = vpow.pop %v779
    %v781 = vadd.f32 %v780, 1.0
    %v782 = vrcp.pop %v781
    %v783 = vmul.f32 %v781, %v782
    %v784 = vsub.f32 1.0, %v783
    %v785 = vmul.f32 %v782, %v784
    %v786 = vadd.f32 %v782, %v785
    %vm787 = vweird.f32 %v781
    %vm788 = vweird.f32 %v782
    %vm789 = vmor %vm787, %vm788
    %v790 = vsel %vm789, %v782, %v786
    %v791 = vand.u32 2147483647, %v781
    %vm792 = vcmp.eq.f32.partialorder %v791, 8.507059e+37
    %v793 = vand.u32 %v781, 2147483648
    %v794 = vor.u32 1.1754944e-38, %v793
    %v795 = vsel %vm792, %v794, %v790
    %v796 = vmul.f32 1.0, %v795
    %v797 = vadd.f32 %v755, %v523
    %v798 = vmul.f32 %v776, %v797
    %v799 = vadd.f32 %v696, %v798
    %v800 = vtanh.pop %v799
    %v801 = vsub.f32 1.0, %v796
    %v802 = vmul.f32 %v801, %v800
    %v803 = vmul.f32 %v796, %v690
    %v804 = vadd.f32 %v802, %v803
    %s805 = smul.u32 2, 3
    %s806 = smul.addr %s805, 8
    %s807 = scalar_lea.vmem [#allocation2], %s806
    %v808 = vld [vmem:[%s807] sm:$0xff]
    %v809 = vld [vmem:[%s807 + $0x8] sm:$0xff]
    %v810 = vld [vmem:[%s807 + $0x10] sm:$0xff]
    %811 = vmatpush.msra.mxu0 %v580
    %812 = vmatpush.msra.mxu0 %v577
    %813 = vmatpush.msra.mxu0 %v574
    %814 = vmatpush.msra.mxu0 %v571
    %815 = vmatpush.msra.mxu0 %v568
    %816 = vmatpush.msra.mxu0 %v565
    %817 = vmatpush.msra.mxu0 %v562
    %818 = vmatpush.msra.mxu0 %v559
    %819 = vmatpush.msra.mxu0 %v556
    %820 = vmatpush.msra.mxu0 %v553
    %821 = vmatpush.msra.mxu0 %v550
    %822 = vmatpush.msra.mxu0 %v547
    %823 = vmatpush.msra.mxu0 %v544
    %824 = vmatpush.msra.mxu0 %v541
    %825 = vmatpush.msra.mxu0 %v538
    %826 = vmatpush.msra.mxu0 %v535
    %827 = vmatmul.f32.gmra.mxu0 %v804
    %v828 = vpop.f32.mrf.mxu0
    %v829 = vadd.f32 0.0, %v828
    %830 = vdwg.mxu0
    %831 = vmatpush.msra.mxu0 %v581
    %832 = vmatpush.msra.mxu0 %v578
    %833 = vmatpush.msra.mxu0 %v575
    %834 = vmatpush.msra.mxu0 %v572
    %835 = vmatpush.msra.mxu0 %v569
    %836 = vmatpush.msra.mxu0 %v566
    %837 = vmatpush.msra.mxu0 %v563
    %838 = vmatpush.msra.mxu0 %v560
    %839 = vmatpush.msra.mxu0 %v557
    %840 = vmatpush.msra.mxu0 %v554
    %841 = vmatpush.msra.mxu0 %v551
    %842 = vmatpush.msra.mxu0 %v548
    %843 = vmatpush.msra.mxu0 %v545
    %844 = vmatpush.msra.mxu0 %v542
    %845 = vmatpush.msra.mxu0 %v539
    %846 = vmatpush.msra.mxu0 %v536
    %847 = vmatmul.f32.gmra.mxu0 %v804
    %v848 = vpop.f32.mrf.mxu0
    %v849 = vadd.f32 0.0, %v848
    %850 = vdwg.mxu0
    %851 = vmatpush.msra.mxu0 %v582
    %852 = vmatpush.msra.mxu0 %v579
    %853 = vmatpush.msra.mxu0 %v576
    %854 = vmatpush.msra.mxu0 %v573
    %855 = vmatpush.msra.mxu0 %v570
    %856 = vmatpush.msra.mxu0 %v567
    %857 = vmatpush.msra.mxu0 %v564
    %858 = vmatpush.msra.mxu0 %v561
    %859 = vmatpush.msra.mxu0 %v558
    %860 = vmatpush.msra.mxu0 %v555
    %861 = vmatpush.msra.mxu0 %v552
    %862 = vmatpush.msra.mxu0 %v549
    %863 = vmatpush.msra.mxu0 %v546
    %864 = vmatpush.msra.mxu0 %v543
    %865 = vmatpush.msra.mxu0 %v540
    %866 = vmatpush.msra.mxu0 %v537
    %867 = vmatmul.f32.gmra.mxu0 %v804
    %v868 = vpop.f32.mrf.mxu0
    %v869 = vadd.f32 0.0, %v868
    %870 = vdwg.mxu0
    %v871 = vadd.f32 %v808, %v829
    %v872 = vxor.u32 %v871, 2147483648
    %v873 = vmul.f32 %v872, 1.442695
    %v874 = vpow.pop %v873
    %v875 = vadd.f32 %v874, 1.0
    %v876 = vrcp.pop %v875
    %v877 = vmul.f32 %v875, %v876
    %v878 = vsub.f32 1.0, %v877
    %v879 = vmul.f32 %v876, %v878
    %v880 = vadd.f32 %v876, %v879
    %vm881 = vweird.f32 %v875
    %vm882 = vweird.f32 %v876
    %vm883 = vmor %vm881, %vm882
    %v884 = vsel %vm883, %v876, %v880
    %v885 = vand.u32 2147483647, %v875
    %vm886 = vcmp.eq.f32.partialorder %v885, 8.507059e+37
    %v887 = vand.u32 %v875, 2147483648
    %v888 = vor.u32 1.1754944e-38, %v887
    %v889 = vsel %vm886, %v888, %v884
    %v890 = vmul.f32 1.0, %v889
    %v891 = vadd.f32 %v809, %v849
    %v892 = vxor.u32 %v891, 2147483648
    %v893 = vmul.f32 %v892, 1.442695
    %v894 = vpow.pop %v893
    %v895 = vadd.f32 %v894, 1.0
    %v896 = vrcp.pop %v895
    %v897 = vmul.f32 %v895, %v896
    %v898 = vsub.f32 1.0, %v897
    %v899 = vmul.f32 %v896, %v898
    %v900 = vadd.f32 %v896, %v899
    %vm901 = vweird.f32 %v895
    %vm902 = vweird.f32 %v896
    %vm903 = vmor %vm901, %vm902
    %v904 = vsel %vm903, %v896, %v900
    %v905 = vand.u32 2147483647, %v895
    %vm906 = vcmp.eq.f32.partialorder %v905, 8.507059e+37
    %v907 = vand.u32 %v895, 2147483648
    %v908 = vor.u32 1.1754944e-38, %v907
    %v909 = vsel %vm906, %v908, %v904
    %v910 = vmul.f32 1.0, %v909
    %v911 = vadd.f32 %v869, %v523
    %v912 = vmul.f32 %v890, %v911
    %v913 = vadd.f32 %v810, %v912
    %v914 = vtanh.pop %v913
    %v915 = vsub.f32 1.0, %v910
    %v916 = vmul.f32 %v915, %v914
    %v917 = vmul.f32 %v910, %v804
    %v918 = vadd.f32 %v916, %v917
    %s919 = smul.u32 3, 3
    %s920 = smul.addr %s919, 8
    %s921 = scalar_lea.vmem [#allocation2], %s920
    %v922 = vld [vmem:[%s921] sm:$0xff]
    %v923 = vld [vmem:[%s921 + $0x8] sm:$0xff]
    %v924 = vld [vmem:[%s921 + $0x10] sm:$0xff]
    %925 = vmatpush.msra.mxu0 %v580
    %926 = vmatpush.msra.mxu0 %v577
    %927 = vmatpush.msra.mxu0 %v574
    %928 = vmatpush.msra.mxu0 %v571
    %929 = vmatpush.msra.mxu0 %v568
    %930 = vmatpush.msra.mxu0 %v565
    %931 = vmatpush.msra.mxu0 %v562
    %932 = vmatpush.msra.mxu0 %v559
    %933 = vmatpush.msra.mxu0 %v556
    %934 = vmatpush.msra.mxu0 %v553
    %935 = vmatpush.msra.mxu0 %v550
    %936 = vmatpush.msra.mxu0 %v547
    %937 = vmatpush.msra.mxu0 %v544
    %938 = vmatpush.msra.mxu0 %v541
    %939 = vmatpush.msra.mxu0 %v538
    %940 = vmatpush.msra.mxu0 %v535
    %941 = vmatmul.f32.gmra.mxu0 %v918
    %v942 = vpop.f32.mrf.mxu0
    %v943 = vadd.f32 0.0, %v942
    %944 = vdwg.mxu0
    %945 = vmatpush.msra.mxu0 %v581
    %946 = vmatpush.msra.mxu0 %v578
    %947 = vmatpush.msra.mxu0 %v575
    %948 = vmatpush.msra.mxu0 %v572
    %949 = vmatpush.msra.mxu0 %v569
    %950 = vmatpush.msra.mxu0 %v566
    %951 = vmatpush.msra.mxu0 %v563
    %952 = vmatpush.msra.mxu0 %v560
    %953 = vmatpush.msra.mxu0 %v557
    %954 = vmatpush.msra.mxu0 %v554
    %955 = vmatpush.msra.mxu0 %v551
    %956 = vmatpush.msra.mxu0 %v548
    %957 = vmatpush.msra.mxu0 %v545
    %958 = vmatpush.msra.mxu0 %v542
    %959 = vmatpush.msra.mxu0 %v539
    %960 = vmatpush.msra.mxu0 %v536
    %961 = vmatmul.f32.gmra.mxu0 %v918
    %v962 = vpop.f32.mrf.mxu0
    %v963 = vadd.f32 0.0, %v962
    %964 = vdwg.mxu0
    %965 = vmatpush.msra.mxu0 %v582
    %966 = vmatpush.msra.mxu0 %v579
    %967 = vmatpush.msra.mxu0 %v576
    %968 = vmatpush.msra.mxu0 %v573
    %969 = vmatpush.msra.mxu0 %v570
    %970 = vmatpush.msra.mxu0 %v567
    %971 = vmatpush.msra.mxu0 %v564
    %972 = vmatpush.msra.mxu0 %v561
    %973 = vmatpush.msra.mxu0 %v558
    %974 = vmatpush.msra.mxu0 %v555
    %975 = vmatpush.msra.mxu0 %v552
    %976 = vmatpush.msra.mxu0 %v549
    %977 = vmatpush.msra.mxu0 %v546
    %978 = vmatpush.msra.mxu0 %v543
    %979 = vmatpush.msra.mxu0 %v540
    %980 = vmatpush.msra.mxu0 %v537
    %981 = vmatmul.f32.gmra.mxu0 %v918
    %v982 = vpop.f32.mrf.mxu0
    %v983 = vadd.f32 0.0, %v982
    %984 = vdwg.mxu0
    %v985 = vadd.f32 %v922, %v943
    %v986 = vxor.u32 %v985, 2147483648
    %v987 = vmul.f32 %v986, 1.442695
    %v988 = vpow.pop %v987
    %v989 = vadd.f32 %v988, 1.0
    %v990 = vrcp.pop %v989
    %v991 = vmul.f32 %v989, %v990
    %v992 = vsub.f32 1.0, %v991
    %v993 = vmul.f32 %v990, %v992
    %v994 = vadd.f32 %v990, %v993
    %vm995 = vweird.f32 %v989
    %vm996 = vweird.f32 %v990
    %vm997 = vmor %vm995, %vm996
    %v998 = vsel %vm997, %v990, %v994
    %v999 = vand.u32 2147483647, %v989
    %vm1000 = vcmp.eq.f32.partialorder %v999, 8.507059e+37
    %v1001 = vand.u32 %v989, 2147483648
    %v1002 = vor.u32 1.1754944e-38, %v1001
    %v1003 = vsel %vm1000, %v1002, %v998
    %v1004 = vmul.f32 1.0, %v1003
    %v1005 = vadd.f32 %v923, %v963
    %v1006 = vxor.u32 %v1005, 2147483648
    %v1007 = vmul.f32 %v1006, 1.442695
    %v1008 = vpow.pop %v1007
    %v1009 = vadd.f32 %v1008, 1.0
    %v1010 = vrcp.pop %v1009
    %v1011 = vmul.f32 %v1009, %v1010
    %v1012 = vsub.f32 1.0, %v1011
    %v1013 = vmul.f32 %v1010, %v1012
    %v1014 = vadd.f32 %v1010, %v1013
    %vm1015 = vweird.f32 %v1009
    %vm1016 = vweird.f32 %v1010
    %vm1017 = vmor %vm1015, %vm1016
    %v1018 = vsel %vm1017, %v1010, %v1014
    %v1019 = vand.u32 2147483647, %v1009
    %vm1020 = vcmp.eq.f32.partialorder %v1019, 8.507059e+37
    %v1021 = vand.u32 %v1009, 2147483648
    %v1022 = vor.u32 1.1754944e-38, %v1021
    %v1023 = vsel %vm1020, %v1022, %v1018
    %v1024 = vmul.f32 1.0, %v1023
    %v1025 = vadd.f32 %v983, %v523
    %v1026 = vmul.f32 %v1004, %v1025
    %v1027 = vadd.f32 %v924, %v1026
    %v1028 = vtanh.pop %v1027
    %v1029 = vsub.f32 1.0, %v1024
    %v1030 = vmul.f32 %v1029, %v1028
    %v1031 = vmul.f32 %v1024, %v918
    %v1032 = vadd.f32 %v1030, %v1031
    %s1033 = smul.u32 4, 3
    %s1034 = smul.addr %s1033, 8
    %s1035 = scalar_lea.vmem [#allocation2], %s1034
    %v1036 = vld [vmem:[%s1035] sm:$0xff]
    %v1037 = vld [vmem:[%s1035 + $0x8] sm:$0xff]
    %v1038 = vld [vmem:[%s1035 + $0x10] sm:$0xff]
    %1039 = vmatpush.msra.mxu0 %v580
    %1040 = vmatpush.msra.mxu0 %v577
    %1041 = vmatpush.msra.mxu0 %v574
    %1042 = vmatpush.msra.mxu0 %v571
    %1043 = vmatpush.msra.mxu0 %v568
    %1044 = vmatpush.msra.mxu0 %v565
    %1045 = vmatpush.msra.mxu0 %v562
    %1046 = vmatpush.msra.mxu0 %v559
    %1047 = vmatpush.msra.mxu0 %v556
    %1048 = vmatpush.msra.mxu0 %v553
    %1049 = vmatpush.msra.mxu0 %v550
    %1050 = vmatpush.msra.mxu0 %v547
    %1051 = vmatpush.msra.mxu0 %v544
    %1052 = vmatpush.msra.mxu0 %v541
    %1053 = vmatpush.msra.mxu0 %v538
    %1054 = vmatpush.msra.mxu0 %v535
    %1055 = vmatmul.f32.gmra.mxu0 %v1032
    %v1056 = vpop.f32.mrf.mxu0
    %v1057 = vadd.f32 0.0, %v1056
    %1058 = vdwg.mxu0
    %1059 = vmatpush.msra.mxu0 %v581
    %1060 = vmatpush.msra.mxu0 %v578
    %1061 = vmatpush.msra.mxu0 %v575
    %1062 = vmatpush.msra.mxu0 %v572
    %1063 = vmatpush.msra.mxu0 %v569
    %1064 = vmatpush.msra.mxu0 %v566
    %1065 = vmatpush.msra.mxu0 %v563
    %1066 = vmatpush.msra.mxu0 %v560
    %1067 = vmatpush.msra.mxu0 %v557
    %1068 = vmatpush.msra.mxu0 %v554
    %1069 = vmatpush.msra.mxu0 %v551
    %1070 = vmatpush.msra.mxu0 %v548
    %1071 = vmatpush.msra.mxu0 %v545
    %1072 = vmatpush.msra.mxu0 %v542
    %1073 = vmatpush.msra.mxu0 %v539
    %1074 = vmatpush.msra.mxu0 %v536
    %1075 = vmatmul.f32.gmra.mxu0 %v1032
    %v1076 = vpop.f32.mrf.mxu0
    %v1077 = vadd.f32 0.0, %v1076
    %1078 = vdwg.mxu0
    %1079 = vmatpush.msra.mxu0 %v582
    %1080 = vmatpush.msra.mxu0 %v579
    %1081 = vmatpush.msra.mxu0 %v576
    %1082 = vmatpush.msra.mxu0 %v573
    %1083 = vmatpush.msra.mxu0 %v570
    %1084 = vmatpush.msra.mxu0 %v567
    %1085 = vmatpush.msra.mxu0 %v564
    %1086 = vmatpush.msra.mxu0 %v561
    %1087 = vmatpush.msra.mxu0 %v558
    %1088 = vmatpush.msra.mxu0 %v555
    %1089 = vmatpush.msra.mxu0 %v552
    %1090 = vmatpush.msra.mxu0 %v549
    %1091 = vmatpush.msra.mxu0 %v546
    %1092 = vmatpush.msra.mxu0 %v543
    %1093 = vmatpush.msra.mxu0 %v540
    %1094 = vmatpush.msra.mxu0 %v537
    %1095 = vmatmul.f32.gmra.mxu0 %v1032
    %v1096 = vpop.f32.mrf.mxu0
    %v1097 = vadd.f32 0.0, %v1096
    %1098 = vdwg.mxu0
    %v1099 = vadd.f32 %v1036, %v1057
    %v1100 = vxor.u32 %v1099, 2147483648
    %v1101 = vmul.f32 %v1100, 1.442695
    %v1102 = vpow.pop %v1101
    %v1103 = vadd.f32 %v1102, 1.0
    %v1104 = vrcp.pop %v1103
    %v1105 = vmul.f32 %v1103, %v1104
    %v1106 = vsub.f32 1.0, %v1105
    %v1107 = vmul.f32 %v1104, %v1106
    %v1108 = vadd.f32 %v1104, %v1107
    %vm1109 = vweird.f32 %v1103
    %vm1110 = vweird.f32 %v1104
    %vm1111 = vmor %vm1109, %vm1110
    %v1112 = vsel %vm1111, %v1104, %v1108
    %v1113 = vand.u32 2147483647, %v1103
    %vm1114 = vcmp.eq.f32.partialorder %v1113, 8.507059e+37
    %v1115 = vand.u32 %v1103, 2147483648
    %v1116 = vor.u32 1.1754944e-38, %v1115
    %v1117 = vsel %vm1114, %v1116, %v1112
    %v1118 = vmul.f32 1.0, %v1117
    %v1119 = vadd.f32 %v1037, %v1077
    %v1120 = vxor.u32 %v1119, 2147483648
    %v1121 = vmul.f32 %v1120, 1.442695
    %v1122 = vpow.pop %v1121
    %v1123 = vadd.f32 %v1122, 1.0
    %v1124 = vrcp.pop %v1123
    %v1125 = vmul.f32 %v1123, %v1124
    %v1126 = vsub.f32 1.0, %v1125
    %v1127 = vmul.f32 %v1124, %v1126
    %v1128 = vadd.f32 %v1124, %v1127
    %vm1129 = vweird.f32 %v1123
    %vm1130 = vweird.f32 %v1124
    %vm1131 = vmor %vm1129, %vm1130
    %v1132 = vsel %vm1131, %v1124, %v1128
    %v1133 = vand.u32 2147483647, %v1123
    %vm1134 = vcmp.eq.f32.partialorder %v1133, 8.507059e+37
    %v1135 = vand.u32 %v1123, 2147483648
    %v1136 = vor.u32 1.1754944e-38, %v1135
    %v1137 = vsel %vm1134, %v1136, %v1132
    %v1138 = vmul.f32 1.0, %v1137
    %v1139 = vadd.f32 %v1097, %v523
    %v1140 = vmul.f32 %v1118, %v1139
    %v1141 = vadd.f32 %v1038, %v1140
    %v1142 = vtanh.pop %v1141
    %v1143 = vsub.f32 1.0, %v1138
    %v1144 = vmul.f32 %v1143, %v1142
    %v1145 = vmul.f32 %v1138, %v1032
    %v1146 = vadd.f32 %v1144, %v1145
    %s1147 = smul.u32 5, 3
    %s1148 = smul.addr %s1147, 8
    %s1149 = scalar_lea.vmem [#allocation2], %s1148
    %v1150 = vld [vmem:[%s1149] sm:$0xff]
    %v1151 = vld [vmem:[%s1149 + $0x8] sm:$0xff]
    %v1152 = vld [vmem:[%s1149 + $0x10] sm:$0xff]
    %1153 = vmatpush.msra.mxu0 %v580
    %1154 = vmatpush.msra.mxu0 %v577
    %1155 = vmatpush.msra.mxu0 %v574
    %1156 = vmatpush.msra.mxu0 %v571
    %1157 = vmatpush.msra.mxu0 %v568
    %1158 = vmatpush.msra.mxu0 %v565
    %1159 = vmatpush.msra.mxu0 %v562
    %1160 = vmatpush.msra.mxu0 %v559
    %1161 = vmatpush.msra.mxu0 %v556
    %1162 = vmatpush.msra.mxu0 %v553
    %1163 = vmatpush.msra.mxu0 %v550
    %1164 = vmatpush.msra.mxu0 %v547
    %1165 = vmatpush.msra.mxu0 %v544
    %1166 = vmatpush.msra.mxu0 %v541
    %1167 = vmatpush.msra.mxu0 %v538
    %1168 = vmatpush.msra.mxu0 %v535
    %1169 = vmatmul.f32.gmra.mxu0 %v1146
    %v1170 = vpop.f32.mrf.mxu0
    %v1171 = vadd.f32 0.0, %v1170
    %1172 = vdwg.mxu0
    %1173 = vmatpush.msra.mxu0 %v581
    %1174 = vmatpush.msra.mxu0 %v578
    %1175 = vmatpush.msra.mxu0 %v575
    %1176 = vmatpush.msra.mxu0 %v572
    %1177 = vmatpush.msra.mxu0 %v569
    %1178 = vmatpush.msra.mxu0 %v566
    %1179 = vmatpush.msra.mxu0 %v563
    %1180 = vmatpush.msra.mxu0 %v560
    %1181 = vmatpush.msra.mxu0 %v557
    %1182 = vmatpush.msra.mxu0 %v554
    %1183 = vmatpush.msra.mxu0 %v551
    %1184 = vmatpush.msra.mxu0 %v548
    %1185 = vmatpush.msra.mxu0 %v545
    %1186 = vmatpush.msra.mxu0 %v542
    %1187 = vmatpush.msra.mxu0 %v539
    %1188 = vmatpush.msra.mxu0 %v536
    %1189 = vmatmul.f32.gmra.mxu0 %v1146
    %v1190 = vpop.f32.mrf.mxu0
    %v1191 = vadd.f32 0.0, %v1190
    %1192 = vdwg.mxu0
    %1193 = vmatpush.msra.mxu0 %v582
    %1194 = vmatpush.msra.mxu0 %v579
    %1195 = vmatpush.msra.mxu0 %v576
    %1196 = vmatpush.msra.mxu0 %v573
    %1197 = vmatpush.msra.mxu0 %v570
    %1198 = vmatpush.msra.mxu0 %v567
    %1199 = vmatpush.msra.mxu0 %v564
    %1200 = vmatpush.msra.mxu0 %v561
    %1201 = vmatpush.msra.mxu0 %v558
    %1202 = vmatpush.msra.mxu0 %v555
    %1203 = vmatpush.msra.mxu0 %v552
    %1204 = vmatpush.msra.mxu0 %v549
    %1205 = vmatpush.msra.mxu0 %v546
    %1206 = vmatpush.msra.mxu0 %v543
    %1207 = vmatpush.msra.mxu0 %v540
    %1208 = vmatpush.msra.mxu0 %v537
    %1209 = vmatmul.f32.gmra.mxu0 %v1146
    %v1210 = vpop.f32.mrf.mxu0
    %v1211 = vadd.f32 0.0, %v1210
    %1212 = vdwg.mxu0
    %v1213 = vadd.f32 %v1150, %v1171
    %v1214 = vxor.u32 %v1213, 2147483648
    %v1215 = vmul.f32 %v1214, 1.442695
    %v1216 = vpow.pop %v1215
    %v1217 = vadd.f32 %v1216, 1.0
    %v1218 = vrcp.pop %v1217
    %v1219 = vmul.f32 %v1217, %v1218
    %v1220 = vsub.f32 1.0, %v1219
    %v1221 = vmul.f32 %v1218, %v1220
    %v1222 = vadd.f32 %v1218, %v1221
    %vm1223 = vweird.f32 %v1217
    %vm1224 = vweird.f32 %v1218
    %vm1225 = vmor %vm1223, %vm1224
    %v1226 = vsel %vm1225, %v1218, %v1222
    %v1227 = vand.u32 2147483647, %v1217
    %vm1228 = vcmp.eq.f32.partialorder %v1227, 8.507059e+37
    %v1229 = vand.u32 %v1217, 2147483648
    %v1230 = vor.u32 1.1754944e-38, %v1229
    %v1231 = vsel %vm1228, %v1230, %v1226
    %v1232 = vmul.f32 1.0, %v1231
    %v1233 = vadd.f32 %v1151, %v1191
    %v1234 = vxor.u32 %v1233, 2147483648
    %v1235 = vmul.f32 %v1234, 1.442695
    %v1236 = vpow.pop %v1235
    %v1237 = vadd.f32 %v1236, 1.0
    %v1238 = vrcp.pop %v1237
    %v1239 = vmul.f32 %v1237, %v1238
    %v1240 = vsub.f32 1.0, %v1239
    %v1241 = vmul.f32 %v1238, %v1240
    %v1242 = vadd.f32 %v1238, %v1241
    %vm1243 = vweird.f32 %v1237
    %vm1244 = vweird.f32 %v1238
    %vm1245 = vmor %vm1243, %vm1244
    %v1246 = vsel %vm1245, %v1238, %v1242
    %v1247 = vand.u32 2147483647, %v1237
    %vm1248 = vcmp.eq.f32.partialorder %v1247, 8.507059e+37
    %v1249 = vand.u32 %v1237, 2147483648
    %v1250 = vor.u32 1.1754944e-38, %v1249
    %v1251 = vsel %vm1248, %v1250, %v1246
    %v1252 = vmul.f32 1.0, %v1251
    %v1253 = vadd.f32 %v1211, %v523
    %v1254 = vmul.f32 %v1232, %v1253
    %v1255 = vadd.f32 %v1152, %v1254
    %v1256 = vtanh.pop %v1255
    %v1257 = vsub.f32 1.0, %v1252
    %v1258 = vmul.f32 %v1257, %v1256
    %v1259 = vmul.f32 %v1252, %v1146
    %v1260 = vadd.f32 %v1258, %v1259
    %s1261 = smul.u32 6, 3
    %s1262 = smul.addr %s1261, 8
    %s1263 = scalar_lea.vmem [#allocation2], %s1262
    %v1264 = vld [vmem:[%s1263] sm:$0xff]
    %v1265 = vld [vmem:[%s1263 + $0x8] sm:$0xff]
    %v1266 = vld [vmem:[%s1263 + $0x10] sm:$0xff]
    %1267 = vmatpush.msra.mxu0 %v580
    %1268 = vmatpush.msra.mxu0 %v577
    %1269 = vmatpush.msra.mxu0 %v574
    %1270 = vmatpush.msra.mxu0 %v571
    %1271 = vmatpush.msra.mxu0 %v568
    %1272 = vmatpush.msra.mxu0 %v565
    %1273 = vmatpush.msra.mxu0 %v562
    %1274 = vmatpush.msra.mxu0 %v559
    %1275 = vmatpush.msra.mxu0 %v556
    %1276 = vmatpush.msra.mxu0 %v553
    %1277 = vmatpush.msra.mxu0 %v550
    %1278 = vmatpush.msra.mxu0 %v547
    %1279 = vmatpush.msra.mxu0 %v544
    %1280 = vmatpush.msra.mxu0 %v541
    %1281 = vmatpush.msra.mxu0 %v538
    %1282 = vmatpush.msra.mxu0 %v535
    %1283 = vmatmul.f32.gmra.mxu0 %v1260
    %v1284 = vpop.f32.mrf.mxu0
    %v1285 = vadd.f32 0.0, %v1284
    %1286 = vdwg.mxu0
    %1287 = vmatpush.msra.mxu0 %v581
    %1288 = vmatpush.msra.mxu0 %v578
    %1289 = vmatpush.msra.mxu0 %v575
    %1290 = vmatpush.msra.mxu0 %v572
    %1291 = vmatpush.msra.mxu0 %v569
    %1292 = vmatpush.msra.mxu0 %v566
    %1293 = vmatpush.msra.mxu0 %v563
    %1294 = vmatpush.msra.mxu0 %v560
    %1295 = vmatpush.msra.mxu0 %v557
    %1296 = vmatpush.msra.mxu0 %v554
    %1297 = vmatpush.msra.mxu0 %v551
    %1298 = vmatpush.msra.mxu0 %v548
    %1299 = vmatpush.msra.mxu0 %v545
    %1300 = vmatpush.msra.mxu0 %v542
    %1301 = vmatpush.msra.mxu0 %v539
    %1302 = vmatpush.msra.mxu0 %v536
    %1303 = vmatmul.f32.gmra.mxu0 %v1260
    %v1304 = vpop.f32.mrf.mxu0
    %v1305 = vadd.f32 0.0, %v1304
    %1306 = vdwg.mxu0
    %1307 = vmatpush.msra.mxu0 %v582
    %1308 = vmatpush.msra.mxu0 %v579
    %1309 = vmatpush.msra.mxu0 %v576
    %1310 = vmatpush.msra.mxu0 %v573
    %1311 = vmatpush.msra.mxu0 %v570
    %1312 = vmatpush.msra.mxu0 %v567
    %1313 = vmatpush.msra.mxu0 %v564
    %1314 = vmatpush.msra.mxu0 %v561
    %1315 = vmatpush.msra.mxu0 %v558
    %1316 = vmatpush.msra.mxu0 %v555
    %1317 = vmatpush.msra.mxu0 %v552
    %1318 = vmatpush.msra.mxu0 %v549
    %1319 = vmatpush.msra.mxu0 %v546
    %1320 = vmatpush.msra.mxu0 %v543
    %1321 = vmatpush.msra.mxu0 %v540
    %1322 = vmatpush.msra.mxu0 %v537
    %1323 = vmatmul.f32.gmra.mxu0 %v1260
    %v1324 = vpop.f32.mrf.mxu0
    %v1325 = vadd.f32 0.0, %v1324
    %1326 = vdwg.mxu0
    %v1327 = vadd.f32 %v1264, %v1285
    %v1328 = vxor.u32 %v1327, 2147483648
    %v1329 = vmul.f32 %v1328, 1.442695
    %v1330 = vpow.pop %v1329
    %v1331 = vadd.f32 %v1330, 1.0
    %v1332 = vrcp.pop %v1331
    %v1333 = vmul.f32 %v1331, %v1332
    %v1334 = vsub.f32 1.0, %v1333
    %v1335 = vmul.f32 %v1332, %v1334
    %v1336 = vadd.f32 %v1332, %v1335
    %vm1337 = vweird.f32 %v1331
    %vm1338 = vweird.f32 %v1332
    %vm1339 = vmor %vm1337, %vm1338
    %v1340 = vsel %vm1339, %v1332, %v1336
    %v1341 = vand.u32 2147483647, %v1331
    %vm1342 = vcmp.eq.f32.partialorder %v1341, 8.507059e+37
    %v1343 = vand.u32 %v1331, 2147483648
    %v1344 = vor.u32 1.1754944e-38, %v1343
    %v1345 = vsel %vm1342, %v1344, %v1340
    %v1346 = vmul.f32 1.0, %v1345
    %v1347 = vadd.f32 %v1265, %v1305
    %v1348 = vxor.u32 %v1347, 2147483648
    %v1349 = vmul.f32 %v1348, 1.442695
    %v1350 = vpow.pop %v1349
    %v1351 = vadd.f32 %v1350, 1.0
    %v1352 = vrcp.pop %v1351
    %v1353 = vmul.f32 %v1351, %v1352
    %v1354 = vsub.f32 1.0, %v1353
    %v1355 = vmul.f32 %v1352, %v1354
    %v1356 = vadd.f32 %v1352, %v1355
    %vm1357 = vweird.f32 %v1351
    %vm1358 = vweird.f32 %v1352
    %vm1359 = vmor %vm1357, %vm1358
    %v1360 = vsel %vm1359, %v1352, %v1356
    %v1361 = vand.u32 2147483647, %v1351
    %vm1362 = vcmp.eq.f32.partialorder %v1361, 8.507059e+37
    %v1363 = vand.u32 %v1351, 2147483648
    %v1364 = vor.u32 1.1754944e-38, %v1363
    %v1365 = vsel %vm1362, %v1364, %v1360
    %v1366 = vmul.f32 1.0, %v1365
    %v1367 = vadd.f32 %v1325, %v523
    %v1368 = vmul.f32 %v1346, %v1367
    %v1369 = vadd.f32 %v1266, %v1368
    %v1370 = vtanh.pop %v1369
    %v1371 = vsub.f32 1.0, %v1366
    %v1372 = vmul.f32 %v1371, %v1370
    %v1373 = vmul.f32 %v1366, %v1260
    %v1374 = vadd.f32 %v1372, %v1373
    %s1375 = smul.u32 7, 3
    %s1376 = smul.addr %s1375, 8
    %s1377 = scalar_lea.vmem [#allocation2], %s1376
    %v1378 = vld [vmem:[%s1377] sm:$0xff]
    %v1379 = vld [vmem:[%s1377 + $0x8] sm:$0xff]
    %v1380 = vld [vmem:[%s1377 + $0x10] sm:$0xff]
    %1381 = vmatpush.msra.mxu0 %v580
    %1382 = vmatpush.msra.mxu0 %v577
    %1383 = vmatpush.msra.mxu0 %v574
    %1384 = vmatpush.msra.mxu0 %v571
    %1385 = vmatpush.msra.mxu0 %v568
    %1386 = vmatpush.msra.mxu0 %v565
    %1387 = vmatpush.msra.mxu0 %v562
    %1388 = vmatpush.msra.mxu0 %v559
    %1389 = vmatpush.msra.mxu0 %v556
    %1390 = vmatpush.msra.mxu0 %v553
    %1391 = vmatpush.msra.mxu0 %v550
    %1392 = vmatpush.msra.mxu0 %v547
    %1393 = vmatpush.msra.mxu0 %v544
    %1394 = vmatpush.msra.mxu0 %v541
    %1395 = vmatpush.msra.mxu0 %v538
    %1396 = vmatpush.msra.mxu0 %v535
    %1397 = vmatmul.f32.gmra.mxu0 %v1374
    %v1398 = vpop.f32.mrf.mxu0
    %v1399 = vadd.f32 0.0, %v1398
    %1400 = vdwg.mxu0
    %1401 = vmatpush.msra.mxu0 %v581
    %1402 = vmatpush.msra.mxu0 %v578
    %1403 = vmatpush.msra.mxu0 %v575
    %1404 = vmatpush.msra.mxu0 %v572
    %1405 = vmatpush.msra.mxu0 %v569
    %1406 = vmatpush.msra.mxu0 %v566
    %1407 = vmatpush.msra.mxu0 %v563
    %1408 = vmatpush.msra.mxu0 %v560
    %1409 = vmatpush.msra.mxu0 %v557
    %1410 = vmatpush.msra.mxu0 %v554
    %1411 = vmatpush.msra.mxu0 %v551
    %1412 = vmatpush.msra.mxu0 %v548
    %1413 = vmatpush.msra.mxu0 %v545
    %1414 = vmatpush.msra.mxu0 %v542
    %1415 = vmatpush.msra.mxu0 %v539
    %1416 = vmatpush.msra.mxu0 %v536
    %1417 = vmatmul.f32.gmra.mxu0 %v1374
    %v1418 = vpop.f32.mrf.mxu0
    %v1419 = vadd.f32 0.0, %v1418
    %1420 = vdwg.mxu0
    %1421 = vmatpush.msra.mxu0 %v582
    %1422 = vmatpush.msra.mxu0 %v579
    %1423 = vmatpush.msra.mxu0 %v576
    %1424 = vmatpush.msra.mxu0 %v573
    %1425 = vmatpush.msra.mxu0 %v570
    %1426 = vmatpush.msra.mxu0 %v567
    %1427 = vmatpush.msra.mxu0 %v564
    %1428 = vmatpush.msra.mxu0 %v561
    %1429 = vmatpush.msra.mxu0 %v558
    %1430 = vmatpush.msra.mxu0 %v555
    %1431 = vmatpush.msra.mxu0 %v552
    %1432 = vmatpush.msra.mxu0 %v549
    %1433 = vmatpush.msra.mxu0 %v546
    %1434 = vmatpush.msra.mxu0 %v543
    %1435 = vmatpush.msra.mxu0 %v540
    %1436 = vmatpush.msra.mxu0 %v537
    %1437 = vmatmul.f32.gmra.mxu0 %v1374
    %v1438 = vpop.f32.mrf.mxu0
    %v1439 = vadd.f32 0.0, %v1438
    %1440 = vdwg.mxu0
    %v1441 = vadd.f32 %v1378, %v1399
    %v1442 = vxor.u32 %v1441, 2147483648
    %v1443 = vmul.f32 %v1442, 1.442695
    %v1444 = vpow.pop %v1443
    %v1445 = vadd.f32 %v1444, 1.0
    %v1446 = vrcp.pop %v1445
    %v1447 = vmul.f32 %v1445, %v1446
    %v1448 = vsub.f32 1.0, %v1447
    %v1449 = vmul.f32 %v1446, %v1448
    %v1450 = vadd.f32 %v1446, %v1449
    %vm1451 = vweird.f32 %v1445
    %vm1452 = vweird.f32 %v1446
    %vm1453 = vmor %vm1451, %vm1452
    %v1454 = vsel %vm1453, %v1446, %v1450
    %v1455 = vand.u32 2147483647, %v1445
    %vm1456 = vcmp.eq.f32.partialorder %v1455, 8.507059e+37
    %v1457 = vand.u32 %v1445, 2147483648
    %v1458 = vor.u32 1.1754944e-38, %v1457
    %v1459 = vsel %vm1456, %v1458, %v1454
    %v1460 = vmul.f32 1.0, %v1459
    %v1461 = vadd.f32 %v1379, %v1419
    %v1462 = vxor.u32 %v1461, 2147483648
    %v1463 = vmul.f32 %v1462, 1.442695
    %v1464 = vpow.pop %v1463
    %v1465 = vadd.f32 %v1464, 1.0
    %v1466 = vrcp.pop %v1465
    %v1467 = vmul.f32 %v1465, %v1466
    %v1468 = vsub.f32 1.0, %v1467
    %v1469 = vmul.f32 %v1466, %v1468
    %v1470 = vadd.f32 %v1466, %v1469
    %vm1471 = vweird.f32 %v1465
    %vm1472 = vweird.f32 %v1466
    %vm1473 = vmor %vm1471, %vm1472
    %v1474 = vsel %vm1473, %v1466, %v1470
    %v1475 = vand.u32 2147483647, %v1465
    %vm1476 = vcmp.eq.f32.partialorder %v1475, 8.507059e+37
    %v1477 = vand.u32 %v1465, 2147483648
    %v1478 = vor.u32 1.1754944e-38, %v1477
    %v1479 = vsel %vm1476, %v1478, %v1474
    %v1480 = vmul.f32 1.0, %v1479
    %v1481 = vadd.f32 %v1439, %v523
    %v1482 = vmul.f32 %v1460, %v1481
    %v1483 = vadd.f32 %v1380, %v1482
    %v1484 = vtanh.pop %v1483
    %v1485 = vsub.f32 1.0, %v1480
    %v1486 = vmul.f32 %v1485, %v1484
    %v1487 = vmul.f32 %v1480, %v1374
    %v1488 = vadd.f32 %v1486, %v1487
    %v1489 = vld [vmem:[#allocation5 + $0x60] sm:$0xff]
    %v1490 = vld [vmem:[#allocation5 + $0x68] sm:$0xff]
    %v1491 = vld [vmem:[#allocation5 + $0x70] sm:$0xff]
    %v1492 = vld [vmem:[#allocation5 + $0x78] sm:$0xff]
    %v1493 = vld [vmem:[#allocation5 + $0x80] sm:$0xff]
    %v1494 = vld [vmem:[#allocation5 + $0x88] sm:$0xff]
    %v1495 = vld [vmem:[#allocation5 + $0x90] sm:$0xff]
    %v1496 = vld [vmem:[#allocation5 + $0x98] sm:$0xff]
    %v1497 = vld [vmem:[#allocation5 + $0xa0] sm:$0xff]
    %v1498 = vld [vmem:[#allocation5 + $0xa8] sm:$0xff]
    %v1499 = vld [vmem:[#allocation5 + $0xb0] sm:$0xff]
    %v1500 = vld [vmem:[#allocation5 + $0xb8] sm:$0xff]
    %v1501 = vld [vmem:[#allocation5 + $0xc0] sm:$0xff]
    %v1502 = vld [vmem:[#allocation5 + $0xc8] sm:$0xff]
    %v1503 = vld [vmem:[#allocation5 + $0xd0] sm:$0xff]
    %v1504 = vld [vmem:[#allocation5 + $0xd8] sm:$0xff]
    %v1505 = vld [vmem:[#allocation5 + $0xe0] sm:$0xff]
    %v1506 = vld [vmem:[#allocation5 + $0xe8] sm:$0xff]
    %v1507 = vld [vmem:[#allocation5 + $0xf0] sm:$0xff]
    %v1508 = vld [vmem:[#allocation5 + $0xf8] sm:$0xff]
    %v1509 = vld [vmem:[#allocation5 + $0x100] sm:$0xff]
    %v1510 = vld [vmem:[#allocation5 + $0x108] sm:$0xff]
    %v1511 = vld [vmem:[#allocation5 + $0x110] sm:$0xff]
    %v1512 = vld [vmem:[#allocation5 + $0x118] sm:$0xff]
    %v1513 = vld [vmem:[#allocation5 + $0x120] sm:$0xff]
    %v1514 = vld [vmem:[#allocation5 + $0x128] sm:$0xff]
    %v1515 = vld [vmem:[#allocation5 + $0x130] sm:$0xff]
    %v1516 = vld [vmem:[#allocation5 + $0x138] sm:$0xff]
    %v1517 = vld [vmem:[#allocation5 + $0x140] sm:$0xff]
    %v1518 = vld [vmem:[#allocation5 + $0x148] sm:$0xff]
    %v1519 = vld [vmem:[#allocation5 + $0x150] sm:$0xff]
    %v1520 = vld [vmem:[#allocation5 + $0x158] sm:$0xff]
    %v1521 = vld [vmem:[#allocation5 + $0x160] sm:$0xff]
    %v1522 = vld [vmem:[#allocation5 + $0x168] sm:$0xff]
    %v1523 = vld [vmem:[#allocation5 + $0x170] sm:$0xff]
    %v1524 = vld [vmem:[#allocation5 + $0x178] sm:$0xff]
    %v1525 = vld [vmem:[#allocation5 + $0x180] sm:$0xff]
    %v1526 = vld [vmem:[#allocation5 + $0x188] sm:$0xff]
    %v1527 = vld [vmem:[#allocation5 + $0x190] sm:$0xff]
    %v1528 = vld [vmem:[#allocation5 + $0x198] sm:$0xff]
    %v1529 = vld [vmem:[#allocation5 + $0x1a0] sm:$0xff]
    %v1530 = vld [vmem:[#allocation5 + $0x1a8] sm:$0xff]
    %v1531 = vld [vmem:[#allocation5 + $0x1b0] sm:$0xff]
    %v1532 = vld [vmem:[#allocation5 + $0x1b8] sm:$0xff]
    %v1533 = vld [vmem:[#allocation5 + $0x1c0] sm:$0xff]
    %v1534 = vld [vmem:[#allocation5 + $0x1c8] sm:$0xff]
    %v1535 = vld [vmem:[#allocation5 + $0x1d0] sm:$0xff]
    %v1536 = vld [vmem:[#allocation5 + $0x1d8] sm:$0xff]
    %1537 = vmatpush.msra.mxu0 %v1534
    %1538 = vmatpush.msra.mxu0 %v1531
    %1539 = vmatpush.msra.mxu0 %v1528
    %1540 = vmatpush.msra.mxu0 %v1525
    %1541 = vmatpush.msra.mxu0 %v1522
    %1542 = vmatpush.msra.mxu0 %v1519
    %1543 = vmatpush.msra.mxu0 %v1516
    %1544 = vmatpush.msra.mxu0 %v1513
    %1545 = vmatpush.msra.mxu0 %v1510
    %1546 = vmatpush.msra.mxu0 %v1507
    %1547 = vmatpush.msra.mxu0 %v1504
    %1548 = vmatpush.msra.mxu0 %v1501
    %1549 = vmatpush.msra.mxu0 %v1498
    %1550 = vmatpush.msra.mxu0 %v1495
    %1551 = vmatpush.msra.mxu0 %v1492
    %1552 = vmatpush.msra.mxu0 %v1489
    %1553 = vmatmul.f32.gmra.mxu0 %v1488
    %v1554 = vpop.f32.mrf.mxu0
    %v1555 = vadd.f32 0.0, %v1554
    %1556 = vdwg.mxu0
    %1557 = vmatpush.msra.mxu0 %v1535
    %1558 = vmatpush.msra.mxu0 %v1532
    %1559 = vmatpush.msra.mxu0 %v1529
    %1560 = vmatpush.msra.mxu0 %v1526
    %1561 = vmatpush.msra.mxu0 %v1523
    %1562 = vmatpush.msra.mxu0 %v1520
    %1563 = vmatpush.msra.mxu0 %v1517
    %1564 = vmatpush.msra.mxu0 %v1514
    %1565 = vmatpush.msra.mxu0 %v1511
    %1566 = vmatpush.msra.mxu0 %v1508
    %1567 = vmatpush.msra.mxu0 %v1505
    %1568 = vmatpush.msra.mxu0 %v1502
    %1569 = vmatpush.msra.mxu0 %v1499
    %1570 = vmatpush.msra.mxu0 %v1496
    %1571 = vmatpush.msra.mxu0 %v1493
    %1572 = vmatpush.msra.mxu0 %v1490
    %1573 = vmatmul.f32.gmra.mxu0 %v1488
    %v1574 = vpop.f32.mrf.mxu0
    %v1575 = vadd.f32 0.0, %v1574
    %1576 = vdwg.mxu0
    %1577 = vmatpush.msra.mxu0 %v1536
    %1578 = vmatpush.msra.mxu0 %v1533
    %1579 = vmatpush.msra.mxu0 %v1530
    %1580 = vmatpush.msra.mxu0 %v1527
    %1581 = vmatpush.msra.mxu0 %v1524
    %1582 = vmatpush.msra.mxu0 %v1521
    %1583 = vmatpush.msra.mxu0 %v1518
    %1584 = vmatpush.msra.mxu0 %v1515
    %1585 = vmatpush.msra.mxu0 %v1512
    %1586 = vmatpush.msra.mxu0 %v1509
    %1587 = vmatpush.msra.mxu0 %v1506
    %1588 = vmatpush.msra.mxu0 %v1503
    %1589 = vmatpush.msra.mxu0 %v1500
    %1590 = vmatpush.msra.mxu0 %v1497
    %1591 = vmatpush.msra.mxu0 %v1494
    %1592 = vmatpush.msra.mxu0 %v1491
    %1593 = vmatmul.f32.gmra.mxu0 %v1488
    %v1594 = vpop.f32.mrf.mxu0
    %v1595 = vadd.f32 0.0, %v1594
    %1596 = vdwg.mxu0
    %v1597 = vld [vmem:[#allocation7 + $0xa0] sm:$0xff]
    %v1598 = vld [vmem:[#allocation7 + $0xa8] sm:$0xff]
    %v1599 = vld [vmem:[#allocation7 + $0xb0] sm:$0xff]
    %v1600 = vld [vmem:[#allocation7 + $0xb8] sm:$0xff]
    %v1601 = vld [vmem:[#allocation7 + $0xc0] sm:$0xff]
    %v1602 = vld [vmem:[#allocation7 + $0xc8] sm:$0xff]
    %v1603 = vld [vmem:[#allocation7 + $0xd0] sm:$0xff]
    %v1604 = vld [vmem:[#allocation7 + $0xd8] sm:$0xff]
    %v1605 = vld [vmem:[#allocation7 + $0xe0] sm:$0xff]
    %v1606 = vld [vmem:[#allocation7 + $0xe8] sm:$0xff]
    %v1607 = vld [vmem:[#allocation7 + $0xf0] sm:$0xff]
    %v1608 = vld [vmem:[#allocation7 + $0xf8] sm:$0xff]
    %v1609 = vld [vmem:[#allocation7 + $0x100] sm:$0xff]
    %v1610 = vld [vmem:[#allocation7 + $0x108] sm:$0xff]
    %v1611 = vld [vmem:[#allocation7 + $0x110] sm:$0xff]
    %v1612 = vld [vmem:[#allocation7 + $0x118] sm:$0xff]
    %v1613 = vld [vmem:[%s7] sm:$0x1]
    %v1615 = vperm.slane %v1613, 0
    %1617 = vmatpush.msra.mxu0 %v1612
    %1618 = vmatpush.msra.mxu0 %v1611
    %1619 = vmatpush.msra.mxu0 %v1610
    %1620 = vmatpush.msra.mxu0 %v1609
    %1621 = vmatpush.msra.mxu0 %v1608
    %1622 = vmatpush.msra.mxu0 %v1607
    %1623 = vmatpush.msra.mxu0 %v1606
    %1624 = vmatpush.msra.mxu0 %v1605
    %1625 = vmatpush.msra.mxu0 %v1604
    %1626 = vmatpush.msra.mxu0 %v1603
    %1627 = vmatpush.msra.mxu0 %v1602
    %1628 = vmatpush.msra.mxu0 %v1601
    %1629 = vmatpush.msra.mxu0 %v1600
    %1630 = vmatpush.msra.mxu0 %v1599
    %1631 = vmatpush.msra.mxu0 %v1598
    %1632 = vmatpush.msra.mxu0 %v1597
    %1633 = vmatmul.f32.gmra.mxu0 %v1488
    %v1634 = vpop.f32.mrf.mxu0
    %v1635 = vadd.f32 %v1615, %v1634
    %1636 = vdwg.mxu0
    %s1637 = smul.addr %s529, 8
    %s1638 = scalar_lea.vmem [#allocation3], %s1637
    %v1639 = vld [vmem:[%s1638] sm:$0xff]
    %v1640 = vld [vmem:[%s1638 + $0x8] sm:$0xff]
    %v1641 = vld [vmem:[%s1638 + $0x10] sm:$0xff]
    %v1642 = vadd.f32 %v1639, %v1555
    %v1643 = vadd.f32 %v1640, %v1575
    %v1644 = vadd.f32 %v1641, %v1595
    %v1645 = vld [vmem:[#allocation5 + $0x1e0] sm:$0xff]
    %v1646 = vld [vmem:[#allocation5 + $0x1e8] sm:$0xff]
    %v1647 = vld [vmem:[#allocation5 + $0x1f0] sm:$0xff]
    %v1648 = vld [vmem:[#allocation5 + $0x1f8] sm:$0xff]
    %v1649 = vld [vmem:[#allocation5 + $0x200] sm:$0xff]
    %v1650 = vld [vmem:[#allocation5 + $0x208] sm:$0xff]
    %v1651 = vld [vmem:[#allocation5 + $0x210] sm:$0xff]
    %v1652 = vld [vmem:[#allocation5 + $0x218] sm:$0xff]
    %v1653 = vld [vmem:[#allocation5 + $0x220] sm:$0xff]
    %v1654 = vld [vmem:[#allocation5 + $0x228] sm:$0xff]
    %v1655 = vld [vmem:[#allocation5 + $0x230] sm:$0xff]
    %v1656 = vld [vmem:[#allocation5 + $0x238] sm:$0xff]
    %v1657 = vld [vmem:[#allocation5 + $0x240] sm:$0xff]
    %v1658 = vld [vmem:[#allocation5 + $0x248] sm:$0xff]
    %v1659 = vld [vmem:[#allocation5 + $0x250] sm:$0xff]
    %v1660 = vld [vmem:[#allocation5 + $0x258] sm:$0xff]
    %v1661 = vld [vmem:[#allocation5 + $0x260] sm:$0xff]
    %v1662 = vld [vmem:[#allocation5 + $0x268] sm:$0xff]
    %v1663 = vld [vmem:[#allocation5 + $0x270] sm:$0xff]
    %v1664 = vld [vmem:[#allocation5 + $0x278] sm:$0xff]
    %v1665 = vld [vmem:[#allocation5 + $0x280] sm:$0xff]
    %v1666 = vld [vmem:[#allocation5 + $0x288] sm:$0xff]
    %v1667 = vld [vmem:[#allocation5 + $0x290] sm:$0xff]
    %v1668 = vld [vmem:[#allocation5 + $0x298] sm:$0xff]
    %v1669 = vld [vmem:[#allocation5 + $0x2a0] sm:$0xff]
    %v1670 = vld [vmem:[#allocation5 + $0x2a8] sm:$0xff]
    %v1671 = vld [vmem:[#allocation5 + $0x2b0] sm:$0xff]
    %v1672 = vld [vmem:[#allocation5 + $0x2b8] sm:$0xff]
    %v1673 = vld [vmem:[#allocation5 + $0x2c0] sm:$0xff]
    %v1674 = vld [vmem:[#allocation5 + $0x2c8] sm:$0xff]
    %v1675 = vld [vmem:[#allocation5 + $0x2d0] sm:$0xff]
    %v1676 = vld [vmem:[#allocation5 + $0x2d8] sm:$0xff]
    %v1677 = vld [vmem:[#allocation5 + $0x2e0] sm:$0xff]
    %v1678 = vld [vmem:[#allocation5 + $0x2e8] sm:$0xff]
    %v1679 = vld [vmem:[#allocation5 + $0x2f0] sm:$0xff]
    %v1680 = vld [vmem:[#allocation5 + $0x2f8] sm:$0xff]
    %v1681 = vld [vmem:[#allocation5 + $0x300] sm:$0xff]
    %v1682 = vld [vmem:[#allocation5 + $0x308] sm:$0xff]
    %v1683 = vld [vmem:[#allocation5 + $0x310] sm:$0xff]
    %v1684 = vld [vmem:[#allocation5 + $0x318] sm:$0xff]
    %v1685 = vld [vmem:[#allocation5 + $0x320] sm:$0xff]
    %v1686 = vld [vmem:[#allocation5 + $0x328] sm:$0xff]
    %v1687 = vld [vmem:[#allocation5 + $0x330] sm:$0xff]
    %v1688 = vld [vmem:[#allocation5 + $0x338] sm:$0xff]
    %v1689 = vld [vmem:[#allocation5 + $0x340] sm:$0xff]
    %v1690 = vld [vmem:[#allocation5 + $0x348] sm:$0xff]
    %v1691 = vld [vmem:[#allocation5 + $0x350] sm:$0xff]
    %v1692 = vld [vmem:[#allocation5 + $0x358] sm:$0xff]
    %1693 = vmatpush.msra.mxu0 %v1690
    %1694 = vmatpush.msra.mxu0 %v1687
    %1695 = vmatpush.msra.mxu0 %v1684
    %1696 = vmatpush.msra.mxu0 %v1681
    %1697 = vmatpush.msra.mxu0 %v1678
    %1698 = vmatpush.msra.mxu0 %v1675
    %1699 = vmatpush.msra.mxu0 %v1672
    %1700 = vmatpush.msra.mxu0 %v1669
    %1701 = vmatpush.msra.mxu0 %v1666
    %1702 = vmatpush.msra.mxu0 %v1663
    %1703 = vmatpush.msra.mxu0 %v1660
    %1704 = vmatpush.msra.mxu0 %v1657
    %1705 = vmatpush.msra.mxu0 %v1654
    %1706 = vmatpush.msra.mxu0 %v1651
    %1707 = vmatpush.msra.mxu0 %v1648
    %1708 = vmatpush.msra.mxu0 %v1645
    %1709 = vmatmul.f32.gmra.mxu0 %v1488
    %v1710 = vpop.f32.mrf.mxu0
    %v1711 = vadd.f32 0.0, %v1710
    %1712 = vdwg.mxu0
    %1713 = vmatpush.msra.mxu0 %v1691
    %1714 = vmatpush.msra.mxu0 %v1688
    %1715 = vmatpush.msra.mxu0 %v1685
    %1716 = vmatpush.msra.mxu0 %v1682
    %1717 = vmatpush.msra.mxu0 %v1679
    %1718 = vmatpush.msra.mxu0 %v1676
    %1719 = vmatpush.msra.mxu0 %v1673
    %1720 = vmatpush.msra.mxu0 %v1670
    %1721 = vmatpush.msra.mxu0 %v1667
    %1722 = vmatpush.msra.mxu0 %v1664
    %1723 = vmatpush.msra.mxu0 %v1661
    %1724 = vmatpush.msra.mxu0 %v1658
    %1725 = vmatpush.msra.mxu0 %v1655
    %1726 = vmatpush.msra.mxu0 %v1652
    %1727 = vmatpush.msra.mxu0 %v1649
    %1728 = vmatpush.msra.mxu0 %v1646
    %1729 = vmatmul.f32.gmra.mxu0 %v1488
    %v1730 = vpop.f32.mrf.mxu0
    %v1731 = vadd.f32 0.0, %v1730
    %1732 = vdwg.mxu0
    %1733 = vmatpush.msra.mxu0 %v1692
    %1734 = vmatpush.msra.mxu0 %v1689
    %1735 = vmatpush.msra.mxu0 %v1686
    %1736 = vmatpush.msra.mxu0 %v1683
    %1737 = vmatpush.msra.mxu0 %v1680
    %1738 = vmatpush.msra.mxu0 %v1677
    %1739 = vmatpush.msra.mxu0 %v1674
    %1740 = vmatpush.msra.mxu0 %v1671
    %1741 = vmatpush.msra.mxu0 %v1668
    %1742 = vmatpush.msra.mxu0 %v1665
    %1743 = vmatpush.msra.mxu0 %v1662
    %1744 = vmatpush.msra.mxu0 %v1659
    %1745 = vmatpush.msra.mxu0 %v1656
    %1746 = vmatpush.msra.mxu0 %v1653
    %1747 = vmatpush.msra.mxu0 %v1650
    %1748 = vmatpush.msra.mxu0 %v1647
    %1749 = vmatmul.f32.gmra.mxu0 %v1488
    %v1750 = vpop.f32.mrf.mxu0
    %v1751 = vadd.f32 0.0, %v1750
    %1752 = vdwg.mxu0
    %v1753 = vadd.f32 %v1642, %v1711
    %v1754 = vxor.u32 %v1753, 2147483648
    %v1755 = vmul.f32 %v1754, 1.442695
    %v1756 = vpow.pop %v1755
    %v1757 = vadd.f32 %v1756, 1.0
    %v1758 = vrcp.pop %v1757
    %v1759 = vmul.f32 %v1757, %v1758
    %v1760 = vsub.f32 1.0, %v1759
    %v1761 = vmul.f32 %v1758, %v1760
    %v1762 = vadd.f32 %v1758, %v1761
    %vm1763 = vweird.f32 %v1757
    %vm1764 = vweird.f32 %v1758
    %vm1765 = vmor %vm1763, %vm1764
    %v1766 = vsel %vm1765, %v1758, %v1762
    %v1767 = vand.u32 2147483647, %v1757
    %vm1768 = vcmp.eq.f32.partialorder %v1767, 8.507059e+37
    %v1769 = vand.u32 %v1757, 2147483648
    %v1770 = vor.u32 1.1754944e-38, %v1769
    %v1771 = vsel %vm1768, %v1770, %v1766
    %v1772 = vmul.f32 1.0, %v1771
    %v1773 = vadd.f32 %v1643, %v1731
    %v1774 = vxor.u32 %v1773, 2147483648
    %v1775 = vmul.f32 %v1774, 1.442695
    %v1776 = vpow.pop %v1775
    %v1777 = vadd.f32 %v1776, 1.0
    %v1778 = vrcp.pop %v1777
    %v1779 = vmul.f32 %v1777, %v1778
    %v1780 = vsub.f32 1.0, %v1779
    %v1781 = vmul.f32 %v1778, %v1780
    %v1782 = vadd.f32 %v1778, %v1781
    %vm1783 = vweird.f32 %v1777
    %vm1784 = vweird.f32 %v1778
    %vm1785 = vmor %vm1783, %vm1784
    %v1786 = vsel %vm1785, %v1778, %v1782
    %v1787 = vand.u32 2147483647, %v1777
    %vm1788 = vcmp.eq.f32.partialorder %v1787, 8.507059e+37
    %v1789 = vand.u32 %v1777, 2147483648
    %v1790 = vor.u32 1.1754944e-38, %v1789
    %v1791 = vsel %vm1788, %v1790, %v1786
    %v1792 = vmul.f32 1.0, %v1791
    %v1793 = vadd.f32 %v1751, %v527
    %v1794 = vmul.f32 %v1772, %v1793
    %v1795 = vadd.f32 %v1644, %v1794
    %v1796 = vtanh.pop %v1795
    %v1797 = vsub.f32 1.0, %v1792
    %v1798 = vmul.f32 %v1797, %v1796
    %v1799 = vmul.f32 %v1792, %v1488
    %v1800 = vadd.f32 %v1798, %v1799
    %v1801 = vld [vmem:[#allocation4] sm:$0xff]
    %v1802 = vld [vmem:[#allocation7 + $0x20] sm:$0xff]
    %v1803 = vld [vmem:[#allocation7 + $0x28] sm:$0xff]
    %v1804 = vld [vmem:[#allocation7 + $0x30] sm:$0xff]
    %v1805 = vld [vmem:[#allocation7 + $0x38] sm:$0xff]
    %v1806 = vld [vmem:[#allocation7 + $0x40] sm:$0xff]
    %v1807 = vld [vmem:[#allocation7 + $0x48] sm:$0xff]
    %v1808 = vld [vmem:[#allocation7 + $0x50] sm:$0xff]
    %v1809 = vld [vmem:[#allocation7 + $0x58] sm:$0xff]
    %v1810 = vld [vmem:[#allocation7 + $0x60] sm:$0xff]
    %v1811 = vld [vmem:[#allocation7 + $0x68] sm:$0xff]
    %v1812 = vld [vmem:[#allocation7 + $0x70] sm:$0xff]
    %v1813 = vld [vmem:[#allocation7 + $0x78] sm:$0xff]
    %v1814 = vld [vmem:[#allocation7 + $0x80] sm:$0xff]
    %v1815 = vld [vmem:[#allocation7 + $0x88] sm:$0xff]
    %v1816 = vld [vmem:[#allocation7 + $0x90] sm:$0xff]
    %v1817 = vld [vmem:[#allocation7 + $0x98] sm:$0xff]
    %1818 = vmatpush.msra.mxu0 %v1817
    %1819 = vmatpush.msra.mxu0 %v1816
    %1820 = vmatpush.msra.mxu0 %v1815
    %1821 = vmatpush.msra.mxu0 %v1814
    %1822 = vmatpush.msra.mxu0 %v1813
    %1823 = vmatpush.msra.mxu0 %v1812
    %1824 = vmatpush.msra.mxu0 %v1811
    %1825 = vmatpush.msra.mxu0 %v1810
    %1826 = vmatpush.msra.mxu0 %v1809
    %1827 = vmatpush.msra.mxu0 %v1808
    %1828 = vmatpush.msra.mxu0 %v1807
    %1829 = vmatpush.msra.mxu0 %v1806
    %1830 = vmatpush.msra.mxu0 %v1805
    %1831 = vmatpush.msra.mxu0 %v1804
    %1832 = vmatpush.msra.mxu0 %v1803
    %1833 = vmatpush.msra.mxu0 %v1802
    %1834 = vmatmul.f32.gmra.mxu0 %v1800
    %v1835 = vpop.f32.mrf.mxu0
    %v1836 = vadd.f32 0.0, %v1835
    %1837 = vdwg.mxu0
    %v1838 = vadd.f32 %v1801, %v1836
    %v1839 = vadd.f32 %v1838, %v1635
    %1840 = vst [vmem:[%s8] sm:$0xff] %v1839
    %s1841 = smul.addr %s691, 8
    %s1842 = scalar_lea.vmem [#allocation3], %s1841
    %v1843 = vld [vmem:[%s1842] sm:$0xff]
    %v1844 = vld [vmem:[%s1842 + $0x8] sm:$0xff]
    %v1845 = vld [vmem:[%s1842 + $0x10] sm:$0xff]
    %v1846 = vadd.f32 %v1843, %v1555
    %v1847 = vadd.f32 %v1844, %v1575
    %v1848 = vadd.f32 %v1845, %v1595
    %v1849 = vld [vmem:[#allocation5 + $0x1e0] sm:$0xff]
    %v1850 = vld [vmem:[#allocation5 + $0x1e8] sm:$0xff]
    %v1851 = vld [vmem:[#allocation5 + $0x1f0] sm:$0xff]
    %v1852 = vld [vmem:[#allocation5 + $0x1f8] sm:$0xff]
    %v1853 = vld [vmem:[#allocation5 + $0x200] sm:$0xff]
    %v1854 = vld [vmem:[#allocation5 + $0x208] sm:$0xff]
    %v1855 = vld [vmem:[#allocation5 + $0x210] sm:$0xff]
    %v1856 = vld [vmem:[#allocation5 + $0x218] sm:$0xff]
    %v1857 = vld [vmem:[#allocation5 + $0x220] sm:$0xff]
    %v1858 = vld [vmem:[#allocation5 + $0x228] sm:$0xff]
    %v1859 = vld [vmem:[#allocation5 + $0x230] sm:$0xff]
    %v1860 = vld [vmem:[#allocation5 + $0x238] sm:$0xff]
    %v1861 = vld [vmem:[#allocation5 + $0x240] sm:$0xff]
    %v1862 = vld [vmem:[#allocation5 + $0x248] sm:$0xff]
    %v1863 = vld [vmem:[#allocation5 + $0x250] sm:$0xff]
    %v1864 = vld [vmem:[#allocation5 + $0x258] sm:$0xff]
    %v1865 = vld [vmem:[#allocation5 + $0x260] sm:$0xff]
    %v1866 = vld [vmem:[#allocation5 + $0x268] sm:$0xff]
    %v1867 = vld [vmem:[#allocation5 + $0x270] sm:$0xff]
    %v1868 = vld [vmem:[#allocation5 + $0x278] sm:$0xff]
    %v1869 = vld [vmem:[#allocation5 + $0x280] sm:$0xff]
    %v1870 = vld [vmem:[#allocation5 + $0x288] sm:$0xff]
    %v1871 = vld [vmem:[#allocation5 + $0x290] sm:$0xff]
    %v1872 = vld [vmem:[#allocation5 + $0x298] sm:$0xff]
    %v1873 = vld [vmem:[#allocation5 + $0x2a0] sm:$0xff]
    %v1874 = vld [vmem:[#allocation5 + $0x2a8] sm:$0xff]
    %v1875 = vld [vmem:[#allocation5 + $0x2b0] sm:$0xff]
    %v1876 = vld [vmem:[#allocation5 + $0x2b8] sm:$0xff]
    %v1877 = vld [vmem:[#allocation5 + $0x2c0] sm:$0xff]
    %v1878 = vld [vmem:[#allocation5 + $0x2c8] sm:$0xff]
    %v1879 = vld [vmem:[#allocation5 + $0x2d0] sm:$0xff]
    %v1880 = vld [vmem:[#allocation5 + $0x2d8] sm:$0xff]
    %v1881 = vld [vmem:[#allocation5 + $0x2e0] sm:$0xff]
    %v1882 = vld [vmem:[#allocation5 + $0x2e8] sm:$0xff]
    %v1883 = vld [vmem:[#allocation5 + $0x2f0] sm:$0xff]
    %v1884 = vld [vmem:[#allocation5 + $0x2f8] sm:$0xff]
    %v1885 = vld [vmem:[#allocation5 + $0x300] sm:$0xff]
    %v1886 = vld [vmem:[#allocation5 + $0x308] sm:$0xff]
    %v1887 = vld [vmem:[#allocation5 + $0x310] sm:$0xff]
    %v1888 = vld [vmem:[#allocation5 + $0x318] sm:$0xff]
    %v1889 = vld [vmem:[#allocation5 + $0x320] sm:$0xff]
    %v1890 = vld [vmem:[#allocation5 + $0x328] sm:$0xff]
    %v1891 = vld [vmem:[#allocation5 + $0x330] sm:$0xff]
    %v1892 = vld [vmem:[#allocation5 + $0x338] sm:$0xff]
    %v1893 = vld [vmem:[#allocation5 + $0x340] sm:$0xff]
    %v1894 = vld [vmem:[#allocation5 + $0x348] sm:$0xff]
    %v1895 = vld [vmem:[#allocation5 + $0x350] sm:$0xff]
    %v1896 = vld [vmem:[#allocation5 + $0x358] sm:$0xff]
    %1897 = vmatpush.msra.mxu0 %v1894
    %1898 = vmatpush.msra.mxu0 %v1891
    %1899 = vmatpush.msra.mxu0 %v1888
    %1900 = vmatpush.msra.mxu0 %v1885
    %1901 = vmatpush.msra.mxu0 %v1882
    %1902 = vmatpush.msra.mxu0 %v1879
    %1903 = vmatpush.msra.mxu0 %v1876
    %1904 = vmatpush.msra.mxu0 %v1873
    %1905 = vmatpush.msra.mxu0 %v1870
    %1906 = vmatpush.msra.mxu0 %v1867
    %1907 = vmatpush.msra.mxu0 %v1864
    %1908 = vmatpush.msra.mxu0 %v1861
    %1909 = vmatpush.msra.mxu0 %v1858
    %1910 = vmatpush.msra.mxu0 %v1855
    %1911 = vmatpush.msra.mxu0 %v1852
    %1912 = vmatpush.msra.mxu0 %v1849
    %1913 = vmatmul.f32.gmra.mxu0 %v1800
    %v1914 = vpop.f32.mrf.mxu0
    %v1915 = vadd.f32 0.0, %v1914
    %1916 = vdwg.mxu0
    %1917 = vmatpush.msra.mxu0 %v1895
    %1918 = vmatpush.msra.mxu0 %v1892
    %1919 = vmatpush.msra.mxu0 %v1889
    %1920 = vmatpush.msra.mxu0 %v1886
    %1921 = vmatpush.msra.mxu0 %v1883
    %1922 = vmatpush.msra.mxu0 %v1880
    %1923 = vmatpush.msra.mxu0 %v1877
    %1924 = vmatpush.msra.mxu0 %v1874
    %1925 = vmatpush.msra.mxu0 %v1871
    %1926 = vmatpush.msra.mxu0 %v1868
    %1927 = vmatpush.msra.mxu0 %v1865
    %1928 = vmatpush.msra.mxu0 %v1862
    %1929 = vmatpush.msra.mxu0 %v1859
    %1930 = vmatpush.msra.mxu0 %v1856
    %1931 = vmatpush.msra.mxu0 %v1853
    %1932 = vmatpush.msra.mxu0 %v1850
    %1933 = vmatmul.f32.gmra.mxu0 %v1800
    %v1934 = vpop.f32.mrf.mxu0
    %v1935 = vadd.f32 0.0, %v1934
    %1936 = vdwg.mxu0
    %1937 = vmatpush.msra.mxu0 %v1896
    %1938 = vmatpush.msra.mxu0 %v1893
    %1939 = vmatpush.msra.mxu0 %v1890
    %1940 = vmatpush.msra.mxu0 %v1887
    %1941 = vmatpush.msra.mxu0 %v1884
    %1942 = vmatpush.msra.mxu0 %v1881
    %1943 = vmatpush.msra.mxu0 %v1878
    %1944 = vmatpush.msra.mxu0 %v1875
    %1945 = vmatpush.msra.mxu0 %v1872
    %1946 = vmatpush.msra.mxu0 %v1869
    %1947 = vmatpush.msra.mxu0 %v1866
    %1948 = vmatpush.msra.mxu0 %v1863
    %1949 = vmatpush.msra.mxu0 %v1860
    %1950 = vmatpush.msra.mxu0 %v1857
    %1951 = vmatpush.msra.mxu0 %v1854
    %1952 = vmatpush.msra.mxu0 %v1851
    %1953 = vmatmul.f32.gmra.mxu0 %v1800
    %v1954 = vpop.f32.mrf.mxu0
    %v1955 = vadd.f32 0.0, %v1954
    %1956 = vdwg.mxu0
    %v1957 = vadd.f32 %v1846, %v1915
    %v1958 = vxor.u32 %v1957, 2147483648
    %v1959 = vmul.f32 %v1958, 1.442695
    %v1960 = vpow.pop %v1959
    %v1961 = vadd.f32 %v1960, 1.0
    %v1962 = vrcp.pop %v1961
    %v1963 = vmul.f32 %v1961, %v1962
    %v1964 = vsub.f32 1.0, %v1963
    %v1965 = vmul.f32 %v1962, %v1964
    %v1966 = vadd.f32 %v1962, %v1965
    %vm1967 = vweird.f32 %v1961
    %vm1968 = vweird.f32 %v1962
    %vm1969 = vmor %vm1967, %vm1968
    %v1970 = vsel %vm1969, %v1962, %v1966
    %v1971 = vand.u32 2147483647, %v1961
    %vm1972 = vcmp.eq.f32.partialorder %v1971, 8.507059e+37
    %v1973 = vand.u32 %v1961, 2147483648
    %v1974 = vor.u32 1.1754944e-38, %v1973
    %v1975 = vsel %vm1972, %v1974, %v1970
    %v1976 = vmul.f32 1.0, %v1975
    %v1977 = vadd.f32 %v1847, %v1935
    %v1978 = vxor.u32 %v1977, 2147483648
    %v1979 = vmul.f32 %v1978, 1.442695
    %v1980 = vpow.pop %v1979
    %v1981 = vadd.f32 %v1980, 1.0
    %v1982 = vrcp.pop %v1981
    %v1983 = vmul.f32 %v1981, %v1982
    %v1984 = vsub.f32 1.0, %v1983
    %v1985 = vmul.f32 %v1982, %v1984
    %v1986 = vadd.f32 %v1982, %v1985
    %vm1987 = vweird.f32 %v1981
    %vm1988 = vweird.f32 %v1982
    %vm1989 = vmor %vm1987, %vm1988
    %v1990 = vsel %vm1989, %v1982, %v1986
    %v1991 = vand.u32 2147483647, %v1981
    %vm1992 = vcmp.eq.f32.partialorder %v1991, 8.507059e+37
    %v1993 = vand.u32 %v1981, 2147483648
    %v1994 = vor.u32 1.1754944e-38, %v1993
    %v1995 = vsel %vm1992, %v1994, %v1990
    %v1996 = vmul.f32 1.0, %v1995
    %v1997 = vadd.f32 %v1955, %v527
    %v1998 = vmul.f32 %v1976, %v1997
    %v1999 = vadd.f32 %v1848, %v1998
    %v2000 = vtanh.pop %v1999
    %v2001 = vsub.f32 1.0, %v1996
    %v2002 = vmul.f32 %v2001, %v2000
    %v2003 = vmul.f32 %v1996, %v1800
    %v2004 = vadd.f32 %v2002, %v2003
    %s2005 = scalar_lea.vmem [#allocation4], 8
    %v2006 = vld [vmem:[%s2005] sm:$0xff]
    %v2007 = vld [vmem:[#allocation7 + $0x20] sm:$0xff]
    %v2008 = vld [vmem:[#allocation7 + $0x28] sm:$0xff]
    %v2009 = vld [vmem:[#allocation7 + $0x30] sm:$0xff]
    %v2010 = vld [vmem:[#allocation7 + $0x38] sm:$0xff]
    %v2011 = vld [vmem:[#allocation7 + $0x40] sm:$0xff]
    %v2012 = vld [vmem:[#allocation7 + $0x48] sm:$0xff]
    %v2013 = vld [vmem:[#allocation7 + $0x50] sm:$0xff]
    %v2014 = vld [vmem:[#allocation7 + $0x58] sm:$0xff]
    %v2015 = vld [vmem:[#allocation7 + $0x60] sm:$0xff]
    %v2016 = vld [vmem:[#allocation7 + $0x68] sm:$0xff]
    %v2017 = vld [vmem:[#allocation7 + $0x70] sm:$0xff]
    %v2018 = vld [vmem:[#allocation7 + $0x78] sm:$0xff]
    %v2019 = vld [vmem:[#allocation7 + $0x80] sm:$0xff]
    %v2020 = vld [vmem:[#allocation7 + $0x88] sm:$0xff]
    %v2021 = vld [vmem:[#allocation7 + $0x90] sm:$0xff]
    %v2022 = vld [vmem:[#allocation7 + $0x98] sm:$0xff]
    %2023 = vmatpush.msra.mxu0 %v2022
    %2024 = vmatpush.msra.mxu0 %v2021
    %2025 = vmatpush.msra.mxu0 %v2020
    %2026 = vmatpush.msra.mxu0 %v2019
    %2027 = vmatpush.msra.mxu0 %v2018
    %2028 = vmatpush.msra.mxu0 %v2017
    %2029 = vmatpush.msra.mxu0 %v2016
    %2030 = vmatpush.msra.mxu0 %v2015
    %2031 = vmatpush.msra.mxu0 %v2014
    %2032 = vmatpush.msra.mxu0 %v2013
    %2033 = vmatpush.msra.mxu0 %v2012
    %2034 = vmatpush.msra.mxu0 %v2011
    %2035 = vmatpush.msra.mxu0 %v2010
    %2036 = vmatpush.msra.mxu0 %v2009
    %2037 = vmatpush.msra.mxu0 %v2008
    %2038 = vmatpush.msra.mxu0 %v2007
    %2039 = vmatmul.f32.gmra.mxu0 %v2004
    %v2040 = vpop.f32.mrf.mxu0
    %v2041 = vadd.f32 0.0, %v2040
    %2042 = vdwg.mxu0
    %v2043 = vadd.f32 %v2006, %v2041
    %v2044 = vadd.f32 %v2043, %v1635
    %s2045 = scalar_lea.vmem %s8, 8
    %2046 = vst [vmem:[%s2045] sm:$0xff] %v2044
    %s2047 = smul.addr %s805, 8
    %s2048 = scalar_lea.vmem [#allocation3], %s2047
    %v2049 = vld [vmem:[%s2048] sm:$0xff]
    %v2050 = vld [vmem:[%s2048 + $0x8] sm:$0xff]
    %v2051 = vld [vmem:[%s2048 + $0x10] sm:$0xff]
    %v2052 = vadd.f32 %v2049, %v1555
    %v2053 = vadd.f32 %v2050, %v1575
    %v2054 = vadd.f32 %v2051, %v1595
    %v2055 = vld [vmem:[#allocation5 + $0x1e0] sm:$0xff]
    %v2056 = vld [vmem:[#allocation5 + $0x1e8] sm:$0xff]
    %v2057 = vld [vmem:[#allocation5 + $0x1f0] sm:$0xff]
    %v2058 = vld [vmem:[#allocation5 + $0x1f8] sm:$0xff]
    %v2059 = vld [vmem:[#allocation5 + $0x200] sm:$0xff]
    %v2060 = vld [vmem:[#allocation5 + $0x208] sm:$0xff]
    %v2061 = vld [vmem:[#allocation5 + $0x210] sm:$0xff]
    %v2062 = vld [vmem:[#allocation5 + $0x218] sm:$0xff]
    %v2063 = vld [vmem:[#allocation5 + $0x220] sm:$0xff]
    %v2064 = vld [vmem:[#allocation5 + $0x228] sm:$0xff]
    %v2065 = vld [vmem:[#allocation5 + $0x230] sm:$0xff]
    %v2066 = vld [vmem:[#allocation5 + $0x238] sm:$0xff]
    %v2067 = vld [vmem:[#allocation5 + $0x240] sm:$0xff]
    %v2068 = vld [vmem:[#allocation5 + $0x248] sm:$0xff]
    %v2069 = vld [vmem:[#allocation5 + $0x250] sm:$0xff]
    %v2070 = vld [vmem:[#allocation5 + $0x258] sm:$0xff]
    %v2071 = vld [vmem:[#allocation5 + $0x260] sm:$0xff]
    %v2072 = vld [vmem:[#allocation5 + $0x268] sm:$0xff]
    %v2073 = vld [vmem:[#allocation5 + $0x270] sm:$0xff]
    %v2074 = vld [vmem:[#allocation5 + $0x278] sm:$0xff]
    %v2075 = vld [vmem:[#allocation5 + $0x280] sm:$0xff]
    %v2076 = vld [vmem:[#allocation5 + $0x288] sm:$0xff]
    %v2077 = vld [vmem:[#allocation5 + $0x290] sm:$0xff]
    %v2078 = vld [vmem:[#allocation5 + $0x298] sm:$0xff]
    %v2079 = vld [vmem:[#allocation5 + $0x2a0] sm:$0xff]
    %v2080 = vld [vmem:[#allocation5 + $0x2a8] sm:$0xff]
    %v2081 = vld [vmem:[#allocation5 + $0x2b0] sm:$0xff]
    %v2082 = vld [vmem:[#allocation5 + $0x2b8] sm:$0xff]
    %v2083 = vld [vmem:[#allocation5 + $0x2c0] sm:$0xff]
    %v2084 = vld [vmem:[#allocation5 + $0x2c8] sm:$0xff]
    %v2085 = vld [vmem:[#allocation5 + $0x2d0] sm:$0xff]
    %v2086 = vld [vmem:[#allocation5 + $0x2d8] sm:$0xff]
    %v2087 = vld [vmem:[#allocation5 + $0x2e0] sm:$0xff]
    %v2088 = vld [vmem:[#allocation5 + $0x2e8] sm:$0xff]
    %v2089 = vld [vmem:[#allocation5 + $0x2f0] sm:$0xff]
    %v2090 = vld [vmem:[#allocation5 + $0x2f8] sm:$0xff]
    %v2091 = vld [vmem:[#allocation5 + $0x300] sm:$0xff]
    %v2092 = vld [vmem:[#allocation5 + $0x308] sm:$0xff]
    %v2093 = vld [vmem:[#allocation5 + $0x310] sm:$0xff]
    %v2094 = vld [vmem:[#allocation5 + $0x318] sm:$0xff]
    %v2095 = vld [vmem:[#allocation5 + $0x320] sm:$0xff]
    %v2096 = vld [vmem:[#allocation5 + $0x328] sm:$0xff]
    %v2097 = vld [vmem:[#allocation5 + $0x330] sm:$0xff]
    %v2098 = vld [vmem:[#allocation5 + $0x338] sm:$0xff]
    %v2099 = vld [vmem:[#allocation5 + $0x340] sm:$0xff]
    %v2100 = vld [vmem:[#allocation5 + $0x348] sm:$0xff]
    %v2101 = vld [vmem:[#allocation5 + $0x350] sm:$0xff]
    %v2102 = vld [vmem:[#allocation5 + $0x358] sm:$0xff]
    %2103 = vmatpush.msra.mxu0 %v2100
    %2104 = vmatpush.msra.mxu0 %v2097
    %2105 = vmatpush.msra.mxu0 %v2094
    %2106 = vmatpush.msra.mxu0 %v2091
    %2107 = vmatpush.msra.mxu0 %v2088
    %2108 = vmatpush.msra.mxu0 %v2085
    %2109 = vmatpush.msra.mxu0 %v2082
    %2110 = vmatpush.msra.mxu0 %v2079
    %2111 = vmatpush.msra.mxu0 %v2076
    %2112 = vmatpush.msra.mxu0 %v2073
    %2113 = vmatpush.msra.mxu0 %v2070
    %2114 = vmatpush.msra.mxu0 %v2067
    %2115 = vmatpush.msra.mxu0 %v2064
    %2116 = vmatpush.msra.mxu0 %v2061
    %2117 = vmatpush.msra.mxu0 %v2058
    %2118 = vmatpush.msra.mxu0 %v2055
    %2119 = vmatmul.f32.gmra.mxu0 %v2004
    %v2120 = vpop.f32.mrf.mxu0
    %v2121 = vadd.f32 0.0, %v2120
    %2122 = vdwg.mxu0
    %2123 = vmatpush.msra.mxu0 %v2101
    %2124 = vmatpush.msra.mxu0 %v2098
    %2125 = vmatpush.msra.mxu0 %v2095
    %2126 = vmatpush.msra.mxu0 %v2092
    %2127 = vmatpush.msra.mxu0 %v2089
    %2128 = vmatpush.msra.mxu0 %v2086
    %2129 = vmatpush.msra.mxu0 %v2083
    %2130 = vmatpush.msra.mxu0 %v2080
    %2131 = vmatpush.msra.mxu0 %v2077
    %2132 = vmatpush.msra.mxu0 %v2074
    %2133 = vmatpush.msra.mxu0 %v2071
    %2134 = vmatpush.msra.mxu0 %v2068
    %2135 = vmatpush.msra.mxu0 %v2065
    %2136 = vmatpush.msra.mxu0 %v2062
    %2137 = vmatpush.msra.mxu0 %v2059
    %2138 = vmatpush.msra.mxu0 %v2056
    %2139 = vmatmul.f32.gmra.mxu0 %v2004
    %v2140 = vpop.f32.mrf.mxu0
    %v2141 = vadd.f32 0.0, %v2140
    %2142 = vdwg.mxu0
    %2143 = vmatpush.msra.mxu0 %v2102
    %2144 = vmatpush.msra.mxu0 %v2099
    %2145 = vmatpush.msra.mxu0 %v2096
    %2146 = vmatpush.msra.mxu0 %v2093
    %2147 = vmatpush.msra.mxu0 %v2090
    %2148 = vmatpush.msra.mxu0 %v2087
    %2149 = vmatpush.msra.mxu0 %v2084
    %2150 = vmatpush.msra.mxu0 %v2081
    %2151 = vmatpush.msra.mxu0 %v2078
    %2152 = vmatpush.msra.mxu0 %v2075
    %2153 = vmatpush.msra.mxu0 %v2072
    %2154 = vmatpush.msra.mxu0 %v2069
    %2155 = vmatpush.msra.mxu0 %v2066
    %2156 = vmatpush.msra.mxu0 %v2063
    %2157 = vmatpush.msra.mxu0 %v2060
    %2158 = vmatpush.msra.mxu0 %v2057
    %2159 = vmatmul.f32.gmra.mxu0 %v2004
    %v2160 = vpop.f32.mrf.mxu0
    %v2161 = vadd.f32 0.0, %v2160
    %2162 = vdwg.mxu0
    %v2163 = vadd.f32 %v2052, %v2121
    %v2164 = vxor.u32 %v2163, 2147483648
    %v2165 = vmul.f32 %v2164, 1.442695
    %v2166 = vpow.pop %v2165
    %v2167 = vadd.f32 %v2166, 1.0
    %v2168 = vrcp.pop %v2167
    %v2169 = vmul.f32 %v2167, %v2168
    %v2170 = vsub.f32 1.0, %v2169
    %v2171 = vmul.f32 %v2168, %v2170
    %v2172 = vadd.f32 %v2168, %v2171
    %vm2173 = vweird.f32 %v2167
    %vm2174 = vweird.f32 %v2168
    %vm2175 = vmor %vm2173, %vm2174
    %v2176 = vsel %vm2175, %v2168, %v2172
    %v2177 = vand.u32 2147483647, %v2167
    %vm2178 = vcmp.eq.f32.partialorder %v2177, 8.507059e+37
    %v2179 = vand.u32 %v2167, 2147483648
    %v2180 = vor.u32 1.1754944e-38, %v2179
    %v2181 = vsel %vm2178, %v2180, %v2176
    %v2182 = vmul.f32 1.0, %v2181
    %v2183 = vadd.f32 %v2053, %v2141
    %v2184 = vxor.u32 %v2183, 2147483648
    %v2185 = vmul.f32 %v2184, 1.442695
    %v2186 = vpow.pop %v2185
    %v2187 = vadd.f32 %v2186, 1.0
    %v2188 = vrcp.pop %v2187
    %v2189 = vmul.f32 %v2187, %v2188
    %v2190 = vsub.f32 1.0, %v2189
    %v2191 = vmul.f32 %v2188, %v2190
    %v2192 = vadd.f32 %v2188, %v2191
    %vm2193 = vweird.f32 %v2187
    %vm2194 = vweird.f32 %v2188
    %vm2195 = vmor %vm2193, %vm2194
    %v2196 = vsel %vm2195, %v2188, %v2192
    %v2197 = vand.u32 2147483647, %v2187
    %vm2198 = vcmp.eq.f32.partialorder %v2197, 8.507059e+37
    %v2199 = vand.u32 %v2187, 2147483648
    %v2200 = vor.u32 1.1754944e-38, %v2199
    %v2201 = vsel %vm2198, %v2200, %v2196
    %v2202 = vmul.f32 1.0, %v2201
    %v2203 = vadd.f32 %v2161, %v527
    %v2204 = vmul.f32 %v2182, %v2203
    %v2205 = vadd.f32 %v2054, %v2204
    %v2206 = vtanh.pop %v2205
    %v2207 = vsub.f32 1.0, %v2202
    %v2208 = vmul.f32 %v2207, %v2206
    %v2209 = vmul.f32 %v2202, %v2004
    %v2210 = vadd.f32 %v2208, %v2209
    %s2211 = scalar_lea.vmem [#allocation4], 16
    %v2212 = vld [vmem:[%s2211] sm:$0xff]
    %v2213 = vld [vmem:[#allocation7 + $0x20] sm:$0xff]
    %v2214 = vld [vmem:[#allocation7 + $0x28] sm:$0xff]
    %v2215 = vld [vmem:[#allocation7 + $0x30] sm:$0xff]
    %v2216 = vld [vmem:[#allocation7 + $0x38] sm:$0xff]
    %v2217 = vld [vmem:[#allocation7 + $0x40] sm:$0xff]
    %v2218 = vld [vmem:[#allocation7 + $0x48] sm:$0xff]
    %v2219 = vld [vmem:[#allocation7 + $0x50] sm:$0xff]
    %v2220 = vld [vmem:[#allocation7 + $0x58] sm:$0xff]
    %v2221 = vld [vmem:[#allocation7 + $0x60] sm:$0xff]
    %v2222 = vld [vmem:[#allocation7 + $0x68] sm:$0xff]
    %v2223 = vld [vmem:[#allocation7 + $0x70] sm:$0xff]
    %v2224 = vld [vmem:[#allocation7 + $0x78] sm:$0xff]
    %v2225 = vld [vmem:[#allocation7 + $0x80] sm:$0xff]
    %v2226 = vld [vmem:[#allocation7 + $0x88] sm:$0xff]
    %v2227 = vld [vmem:[#allocation7 + $0x90] sm:$0xff]
    %v2228 = vld [vmem:[#allocation7 + $0x98] sm:$0xff]
    %2229 = vmatpush.msra.mxu0 %v2228
    %2230 = vmatpush.msra.mxu0 %v2227
    %2231 = vmatpush.msra.mxu0 %v2226
    %2232 = vmatpush.msra.mxu0 %v2225
    %2233 = vmatpush.msra.mxu0 %v2224
    %2234 = vmatpush.msra.mxu0 %v2223
    %2235 = vmatpush.msra.mxu0 %v2222
    %2236 = vmatpush.msra.mxu0 %v2221
    %2237 = vmatpush.msra.mxu0 %v2220
    %2238 = vmatpush.msra.mxu0 %v2219
    %2239 = vmatpush.msra.mxu0 %v2218
    %2240 = vmatpush.msra.mxu0 %v2217
    %2241 = vmatpush.msra.mxu0 %v2216
    %2242 = vmatpush.msra.mxu0 %v2215
    %2243 = vmatpush.msra.mxu0 %v2214
    %2244 = vmatpush.msra.mxu0 %v2213
    %2245 = vmatmul.f32.gmra.mxu0 %v2210
    %v2246 = vpop.f32.mrf.mxu0
    %v2247 = vadd.f32 0.0, %v2246
    %2248 = vdwg.mxu0
    %v2249 = vadd.f32 %v2212, %v2247
    %v2250 = vadd.f32 %v2249, %v1635
    %s2251 = scalar_lea.vmem %s8, 16
    %2252 = vst [vmem:[%s2251] sm:$0xff] %v2250
    %s2253 = smul.addr %s919, 8
    %s2254 = scalar_lea.vmem [#allocation3], %s2253
    %v2255 = vld [vmem:[%s2254] sm:$0xff]
    %v2256 = vld [vmem:[%s2254 + $0x8] sm:$0xff]
    %v2257 = vld [vmem:[%s2254 + $0x10] sm:$0xff]
    %v2258 = vadd.f32 %v2255, %v1555
    %v2259 = vadd.f32 %v2256, %v1575
    %v2260 = vadd.f32 %v2257, %v1595
    %v2261 = vld [vmem:[#allocation5 + $0x1e0] sm:$0xff]
    %v2262 = vld [vmem:[#allocation5 + $0x1e8] sm:$0xff]
    %v2263 = vld [vmem:[#allocation5 + $0x1f0] sm:$0xff]
    %v2264 = vld [vmem:[#allocation5 + $0x1f8] sm:$0xff]
    %v2265 = vld [vmem:[#allocation5 + $0x200] sm:$0xff]
    %v2266 = vld [vmem:[#allocation5 + $0x208] sm:$0xff]
    %v2267 = vld [vmem:[#allocation5 + $0x210] sm:$0xff]
    %v2268 = vld [vmem:[#allocation5 + $0x218] sm:$0xff]
    %v2269 = vld [vmem:[#allocation5 + $0x220] sm:$0xff]
    %v2270 = vld [vmem:[#allocation5 + $0x228] sm:$0xff]
    %v2271 = vld [vmem:[#allocation5 + $0x230] sm:$0xff]
    %v2272 = vld [vmem:[#allocation5 + $0x238] sm:$0xff]
    %v2273 = vld [vmem:[#allocation5 + $0x240] sm:$0xff]
    %v2274 = vld [vmem:[#allocation5 + $0x248] sm:$0xff]
    %v2275 = vld [vmem:[#allocation5 + $0x250] sm:$0xff]
    %v2276 = vld [vmem:[#allocation5 + $0x258] sm:$0xff]
    %v2277 = vld [vmem:[#allocation5 + $0x260] sm:$0xff]
    %v2278 = vld [vmem:[#allocation5 + $0x268] sm:$0xff]
    %v2279 = vld [vmem:[#allocation5 + $0x270] sm:$0xff]
    %v2280 = vld [vmem:[#allocation5 + $0x278] sm:$0xff]
    %v2281 = vld [vmem:[#allocation5 + $0x280] sm:$0xff]
    %v2282 = vld [vmem:[#allocation5 + $0x288] sm:$0xff]
    %v2283 = vld [vmem:[#allocation5 + $0x290] sm:$0xff]
    %v2284 = vld [vmem:[#allocation5 + $0x298] sm:$0xff]
    %v2285 = vld [vmem:[#allocation5 + $0x2a0] sm:$0xff]
    %v2286 = vld [vmem:[#allocation5 + $0x2a8] sm:$0xff]
    %v2287 = vld [vmem:[#allocation5 + $0x2b0] sm:$0xff]
    %v2288 = vld [vmem:[#allocation5 + $0x2b8] sm:$0xff]
    %v2289 = vld [vmem:[#allocation5 + $0x2c0] sm:$0xff]
    %v2290 = vld [vmem:[#allocation5 + $0x2c8] sm:$0xff]
    %v2291 = vld [vmem:[#allocation5 + $0x2d0] sm:$0xff]
    %v2292 = vld [vmem:[#allocation5 + $0x2d8] sm:$0xff]
    %v2293 = vld [vmem:[#allocation5 + $0x2e0] sm:$0xff]
    %v2294 = vld [vmem:[#allocation5 + $0x2e8] sm:$0xff]
    %v2295 = vld [vmem:[#allocation5 + $0x2f0] sm:$0xff]
    %v2296 = vld [vmem:[#allocation5 + $0x2f8] sm:$0xff]
    %v2297 = vld [vmem:[#allocation5 + $0x300] sm:$0xff]
    %v2298 = vld [vmem:[#allocation5 + $0x308] sm:$0xff]
    %v2299 = vld [vmem:[#allocation5 + $0x310] sm:$0xff]
    %v2300 = vld [vmem:[#allocation5 + $0x318] sm:$0xff]
    %v2301 = vld [vmem:[#allocation5 + $0x320] sm:$0xff]
    %v2302 = vld [vmem:[#allocation5 + $0x328] sm:$0xff]
    %v2303 = vld [vmem:[#allocation5 + $0x330] sm:$0xff]
    %v2304 = vld [vmem:[#allocation5 + $0x338] sm:$0xff]
    %v2305 = vld [vmem:[#allocation5 + $0x340] sm:$0xff]
    %v2306 = vld [vmem:[#allocation5 + $0x348] sm:$0xff]
    %v2307 = vld [vmem:[#allocation5 + $0x350] sm:$0xff]
    %v2308 = vld [vmem:[#allocation5 + $0x358] sm:$0xff]
    %2309 = vmatpush.msra.mxu0 %v2306
    %2310 = vmatpush.msra.mxu0 %v2303
    %2311 = vmatpush.msra.mxu0 %v2300
    %2312 = vmatpush.msra.mxu0 %v2297
    %2313 = vmatpush.msra.mxu0 %v2294
    %2314 = vmatpush.msra.mxu0 %v2291
    %2315 = vmatpush.msra.mxu0 %v2288
    %2316 = vmatpush.msra.mxu0 %v2285
    %2317 = vmatpush.msra.mxu0 %v2282
    %2318 = vmatpush.msra.mxu0 %v2279
    %2319 = vmatpush.msra.mxu0 %v2276
    %2320 = vmatpush.msra.mxu0 %v2273
    %2321 = vmatpush.msra.mxu0 %v2270
    %2322 = vmatpush.msra.mxu0 %v2267
    %2323 = vmatpush.msra.mxu0 %v2264
    %2324 = vmatpush.msra.mxu0 %v2261
    %2325 = vmatmul.f32.gmra.mxu0 %v2210
    %v2326 = vpop.f32.mrf.mxu0
    %v2327 = vadd.f32 0.0, %v2326
    %2328 = vdwg.mxu0
    %2329 = vmatpush.msra.mxu0 %v2307
    %2330 = vmatpush.msra.mxu0 %v2304
    %2331 = vmatpush.msra.mxu0 %v2301
    %2332 = vmatpush.msra.mxu0 %v2298
    %2333 = vmatpush.msra.mxu0 %v2295
    %2334 = vmatpush.msra.mxu0 %v2292
    %2335 = vmatpush.msra.mxu0 %v2289
    %2336 = vmatpush.msra.mxu0 %v2286
    %2337 = vmatpush.msra.mxu0 %v2283
    %2338 = vmatpush.msra.mxu0 %v2280
    %2339 = vmatpush.msra.mxu0 %v2277
    %2340 = vmatpush.msra.mxu0 %v2274
    %2341 = vmatpush.msra.mxu0 %v2271
    %2342 = vmatpush.msra.mxu0 %v2268
    %2343 = vmatpush.msra.mxu0 %v2265
    %2344 = vmatpush.msra.mxu0 %v2262
    %2345 = vmatmul.f32.gmra.mxu0 %v2210
    %v2346 = vpop.f32.mrf.mxu0
    %v2347 = vadd.f32 0.0, %v2346
    %2348 = vdwg.mxu0
    %2349 = vmatpush.msra.mxu0 %v2308
    %2350 = vmatpush.msra.mxu0 %v2305
    %2351 = vmatpush.msra.mxu0 %v2302
    %2352 = vmatpush.msra.mxu0 %v2299
    %2353 = vmatpush.msra.mxu0 %v2296
    %2354 = vmatpush.msra.mxu0 %v2293
    %2355 = vmatpush.msra.mxu0 %v2290
    %2356 = vmatpush.msra.mxu0 %v2287
    %2357 = vmatpush.msra.mxu0 %v2284
    %2358 = vmatpush.msra.mxu0 %v2281
    %2359 = vmatpush.msra.mxu0 %v2278
    %2360 = vmatpush.msra.mxu0 %v2275
    %2361 = vmatpush.msra.mxu0 %v2272
    %2362 = vmatpush.msra.mxu0 %v2269
    %2363 = vmatpush.msra.mxu0 %v2266
    %2364 = vmatpush.msra.mxu0 %v2263
    %2365 = vmatmul.f32.gmra.mxu0 %v2210
    %v2366 = vpop.f32.mrf.mxu0
    %v2367 = vadd.f32 0.0, %v2366
    %2368 = vdwg.mxu0
    %v2369 = vadd.f32 %v2258, %v2327
    %v2370 = vxor.u32 %v2369, 2147483648
    %v2371 = vmul.f32 %v2370, 1.442695
    %v2372 = vpow.pop %v2371
    %v2373 = vadd.f32 %v2372, 1.0
    %v2374 = vrcp.pop %v2373
    %v2375 = vmul.f32 %v2373, %v2374
    %v2376 = vsub.f32 1.0, %v2375
    %v2377 = vmul.f32 %v2374, %v2376
    %v2378 = vadd.f32 %v2374, %v2377
    %vm2379 = vweird.f32 %v2373
    %vm2380 = vweird.f32 %v2374
    %vm2381 = vmor %vm2379, %vm2380
    %v2382 = vsel %vm2381, %v2374, %v2378
    %v2383 = vand.u32 2147483647, %v2373
    %vm2384 = vcmp.eq.f32.partialorder %v2383, 8.507059e+37
    %v2385 = vand.u32 %v2373, 2147483648
    %v2386 = vor.u32 1.1754944e-38, %v2385
    %v2387 = vsel %vm2384, %v2386, %v2382
    %v2388 = vmul.f32 1.0, %v2387
    %v2389 = vadd.f32 %v2259, %v2347
    %v2390 = vxor.u32 %v2389, 2147483648
    %v2391 = vmul.f32 %v2390, 1.442695
    %v2392 = vpow.pop %v2391
    %v2393 = vadd.f32 %v2392, 1.0
    %v2394 = vrcp.pop %v2393
    %v2395 = vmul.f32 %v2393, %v2394
    %v2396 = vsub.f32 1.0, %v2395
    %v2397 = vmul.f32 %v2394, %v2396
    %v2398 = vadd.f32 %v2394, %v2397
    %vm2399 = vweird.f32 %v2393
    %vm2400 = vweird.f32 %v2394
    %vm2401 = vmor %vm2399, %vm2400
    %v2402 = vsel %vm2401, %v2394, %v2398
    %v2403 = vand.u32 2147483647, %v2393
    %vm2404 = vcmp.eq.f32.partialorder %v2403, 8.507059e+37
    %v2405 = vand.u32 %v2393, 2147483648
    %v2406 = vor.u32 1.1754944e-38, %v2405
    %v2407 = vsel %vm2404, %v2406, %v2402
    %v2408 = vmul.f32 1.0, %v2407
    %v2409 = vadd.f32 %v2367, %v527
    %v2410 = vmul.f32 %v2388, %v2409
    %v2411 = vadd.f32 %v2260, %v2410
    %v2412 = vtanh.pop %v2411
    %v2413 = vsub.f32 1.0, %v2408
    %v2414 = vmul.f32 %v2413, %v2412
    %v2415 = vmul.f32 %v2408, %v2210
    %v2416 = vadd.f32 %v2414, %v2415
    %s2417 = scalar_lea.vmem [#allocation4], 24
    %v2418 = vld [vmem:[%s2417] sm:$0xff]
    %v2419 = vld [vmem:[#allocation7 + $0x20] sm:$0xff]
    %v2420 = vld [vmem:[#allocation7 + $0x28] sm:$0xff]
    %v2421 = vld [vmem:[#allocation7 + $0x30] sm:$0xff]
    %v2422 = vld [vmem:[#allocation7 + $0x38] sm:$0xff]
    %v2423 = vld [vmem:[#allocation7 + $0x40] sm:$0xff]
    %v2424 = vld [vmem:[#allocation7 + $0x48] sm:$0xff]
    %v2425 = vld [vmem:[#allocation7 + $0x50] sm:$0xff]
    %v2426 = vld [vmem:[#allocation7 + $0x58] sm:$0xff]
    %v2427 = vld [vmem:[#allocation7 + $0x60] sm:$0xff]
    %v2428 = vld [vmem:[#allocation7 + $0x68] sm:$0xff]
    %v2429 = vld [vmem:[#allocation7 + $0x70] sm:$0xff]
    %v2430 = vld [vmem:[#allocation7 + $0x78] sm:$0xff]
    %v2431 = vld [vmem:[#allocation7 + $0x80] sm:$0xff]
    %v2432 = vld [vmem:[#allocation7 + $0x88] sm:$0xff]
    %v2433 = vld [vmem:[#allocation7 + $0x90] sm:$0xff]
    %v2434 = vld [vmem:[#allocation7 + $0x98] sm:$0xff]
    %2435 = vmatpush.msra.mxu0 %v2434
    %2436 = vmatpush.msra.mxu0 %v2433
    %2437 = vmatpush.msra.mxu0 %v2432
    %2438 = vmatpush.msra.mxu0 %v2431
    %2439 = vmatpush.msra.mxu0 %v2430
    %2440 = vmatpush.msra.mxu0 %v2429
    %2441 = vmatpush.msra.mxu0 %v2428
    %2442 = vmatpush.msra.mxu0 %v2427
    %2443 = vmatpush.msra.mxu0 %v2426
    %2444 = vmatpush.msra.mxu0 %v2425
    %2445 = vmatpush.msra.mxu0 %v2424
    %2446 = vmatpush.msra.mxu0 %v2423
    %2447 = vmatpush.msra.mxu0 %v2422
    %2448 = vmatpush.msra.mxu0 %v2421
    %2449 = vmatpush.msra.mxu0 %v2420
    %2450 = vmatpush.msra.mxu0 %v2419
    %2451 = vmatmul.f32.gmra.mxu0 %v2416
    %v2452 = vpop.f32.mrf.mxu0
    %v2453 = vadd.f32 0.0, %v2452
    %2454 = vdwg.mxu0
    %v2455 = vadd.f32 %v2418, %v2453
    %v2456 = vadd.f32 %v2455, %v1635
    %s2457 = scalar_lea.vmem %s8, 24
    %2458 = vst [vmem:[%s2457] sm:$0xff] %v2456
    %s2459 = smul.addr %s1033, 8
    %s2460 = scalar_lea.vmem [#allocation3], %s2459
    %v2461 = vld [vmem:[%s2460] sm:$0xff]
    %v2462 = vld [vmem:[%s2460 + $0x8] sm:$0xff]
    %v2463 = vld [vmem:[%s2460 + $0x10] sm:$0xff]
    %v2464 = vadd.f32 %v2461, %v1555
    %v2465 = vadd.f32 %v2462, %v1575
    %v2466 = vadd.f32 %v2463, %v1595
    %v2467 = vld [vmem:[#allocation5 + $0x1e0] sm:$0xff]
    %v2468 = vld [vmem:[#allocation5 + $0x1e8] sm:$0xff]
    %v2469 = vld [vmem:[#allocation5 + $0x1f0] sm:$0xff]
    %v2470 = vld [vmem:[#allocation5 + $0x1f8] sm:$0xff]
    %v2471 = vld [vmem:[#allocation5 + $0x200] sm:$0xff]
    %v2472 = vld [vmem:[#allocation5 + $0x208] sm:$0xff]
    %v2473 = vld [vmem:[#allocation5 + $0x210] sm:$0xff]
    %v2474 = vld [vmem:[#allocation5 + $0x218] sm:$0xff]
    %v2475 = vld [vmem:[#allocation5 + $0x220] sm:$0xff]
    %v2476 = vld [vmem:[#allocation5 + $0x228] sm:$0xff]
    %v2477 = vld [vmem:[#allocation5 + $0x230] sm:$0xff]
    %v2478 = vld [vmem:[#allocation5 + $0x238] sm:$0xff]
    %v2479 = vld [vmem:[#allocation5 + $0x240] sm:$0xff]
    %v2480 = vld [vmem:[#allocation5 + $0x248] sm:$0xff]
    %v2481 = vld [vmem:[#allocation5 + $0x250] sm:$0xff]
    %v2482 = vld [vmem:[#allocation5 + $0x258] sm:$0xff]
    %v2483 = vld [vmem:[#allocation5 + $0x260] sm:$0xff]
    %v2484 = vld [vmem:[#allocation5 + $0x268] sm:$0xff]
    %v2485 = vld [vmem:[#allocation5 + $0x270] sm:$0xff]
    %v2486 = vld [vmem:[#allocation5 + $0x278] sm:$0xff]
    %v2487 = vld [vmem:[#allocation5 + $0x280] sm:$0xff]
    %v2488 = vld [vmem:[#allocation5 + $0x288] sm:$0xff]
    %v2489 = vld [vmem:[#allocation5 + $0x290] sm:$0xff]
    %v2490 = vld [vmem:[#allocation5 + $0x298] sm:$0xff]
    %v2491 = vld [vmem:[#allocation5 + $0x2a0] sm:$0xff]
    %v2492 = vld [vmem:[#allocation5 + $0x2a8] sm:$0xff]
    %v2493 = vld [vmem:[#allocation5 + $0x2b0] sm:$0xff]
    %v2494 = vld [vmem:[#allocation5 + $0x2b8] sm:$0xff]
    %v2495 = vld [vmem:[#allocation5 + $0x2c0] sm:$0xff]
    %v2496 = vld [vmem:[#allocation5 + $0x2c8] sm:$0xff]
    %v2497 = vld [vmem:[#allocation5 + $0x2d0] sm:$0xff]
    %v2498 = vld [vmem:[#allocation5 + $0x2d8] sm:$0xff]
    %v2499 = vld [vmem:[#allocation5 + $0x2e0] sm:$0xff]
    %v2500 = vld [vmem:[#allocation5 + $0x2e8] sm:$0xff]
    %v2501 = vld [vmem:[#allocation5 + $0x2f0] sm:$0xff]
    %v2502 = vld [vmem:[#allocation5 + $0x2f8] sm:$0xff]
    %v2503 = vld [vmem:[#allocation5 + $0x300] sm:$0xff]
    %v2504 = vld [vmem:[#allocation5 + $0x308] sm:$0xff]
    %v2505 = vld [vmem:[#allocation5 + $0x310] sm:$0xff]
    %v2506 = vld [vmem:[#allocation5 + $0x318] sm:$0xff]
    %v2507 = vld [vmem:[#allocation5 + $0x320] sm:$0xff]
    %v2508 = vld [vmem:[#allocation5 + $0x328] sm:$0xff]
    %v2509 = vld [vmem:[#allocation5 + $0x330] sm:$0xff]
    %v2510 = vld [vmem:[#allocation5 + $0x338] sm:$0xff]
    %v2511 = vld [vmem:[#allocation5 + $0x340] sm:$0xff]
    %v2512 = vld [vmem:[#allocation5 + $0x348] sm:$0xff]
    %v2513 = vld [vmem:[#allocation5 + $0x350] sm:$0xff]
    %v2514 = vld [vmem:[#allocation5 + $0x358] sm:$0xff]
    %2515 = vmatpush.msra.mxu0 %v2512
    %2516 = vmatpush.msra.mxu0 %v2509
    %2517 = vmatpush.msra.mxu0 %v2506
    %2518 = vmatpush.msra.mxu0 %v2503
    %2519 = vmatpush.msra.mxu0 %v2500
    %2520 = vmatpush.msra.mxu0 %v2497
    %2521 = vmatpush.msra.mxu0 %v2494
    %2522 = vmatpush.msra.mxu0 %v2491
    %2523 = vmatpush.msra.mxu0 %v2488
    %2524 = vmatpush.msra.mxu0 %v2485
    %2525 = vmatpush.msra.mxu0 %v2482
    %2526 = vmatpush.msra.mxu0 %v2479
    %2527 = vmatpush.msra.mxu0 %v2476
    %2528 = vmatpush.msra.mxu0 %v2473
    %2529 = vmatpush.msra.mxu0 %v2470
    %2530 = vmatpush.msra.mxu0 %v2467
    %2531 = vmatmul.f32.gmra.mxu0 %v2416
    %v2532 = vpop.f32.mrf.mxu0
    %v2533 = vadd.f32 0.0, %v2532
    %2534 = vdwg.mxu0
    %2535 = vmatpush.msra.mxu0 %v2513
    %2536 = vmatpush.msra.mxu0 %v2510
    %2537 = vmatpush.msra.mxu0 %v2507
    %2538 = vmatpush.msra.mxu0 %v2504
    %2539 = vmatpush.msra.mxu0 %v2501
    %2540 = vmatpush.msra.mxu0 %v2498
    %2541 = vmatpush.msra.mxu0 %v2495
    %2542 = vmatpush.msra.mxu0 %v2492
    %2543 = vmatpush.msra.mxu0 %v2489
    %2544 = vmatpush.msra.mxu0 %v2486
    %2545 = vmatpush.msra.mxu0 %v2483
    %2546 = vmatpush.msra.mxu0 %v2480
    %2547 = vmatpush.msra.mxu0 %v2477
    %2548 = vmatpush.msra.mxu0 %v2474
    %2549 = vmatpush.msra.mxu0 %v2471
    %2550 = vmatpush.msra.mxu0 %v2468
    %2551 = vmatmul.f32.gmra.mxu0 %v2416
    %v2552 = vpop.f32.mrf.mxu0
    %v2553 = vadd.f32 0.0, %v2552
    %2554 = vdwg.mxu0
    %2555 = vmatpush.msra.mxu0 %v2514
    %2556 = vmatpush.msra.mxu0 %v2511
    %2557 = vmatpush.msra.mxu0 %v2508
    %2558 = vmatpush.msra.mxu0 %v2505
    %2559 = vmatpush.msra.mxu0 %v2502
    %2560 = vmatpush.msra.mxu0 %v2499
    %2561 = vmatpush.msra.mxu0 %v2496
    %2562 = vmatpush.msra.mxu0 %v2493
    %2563 = vmatpush.msra.mxu0 %v2490
    %2564 = vmatpush.msra.mxu0 %v2487
    %2565 = vmatpush.msra.mxu0 %v2484
    %2566 = vmatpush.msra.mxu0 %v2481
    %2567 = vmatpush.msra.mxu0 %v2478
    %2568 = vmatpush.msra.mxu0 %v2475
    %2569 = vmatpush.msra.mxu0 %v2472
    %2570 = vmatpush.msra.mxu0 %v2469
    %2571 = vmatmul.f32.gmra.mxu0 %v2416
    %v2572 = vpop.f32.mrf.mxu0
    %v2573 = vadd.f32 0.0, %v2572
    %2574 = vdwg.mxu0
    %v2575 = vadd.f32 %v2464, %v2533
    %v2576 = vxor.u32 %v2575, 2147483648
    %v2577 = vmul.f32 %v2576, 1.442695
    %v2578 = vpow.pop %v2577
    %v2579 = vadd.f32 %v2578, 1.0
    %v2580 = vrcp.pop %v2579
    %v2581 = vmul.f32 %v2579, %v2580
    %v2582 = vsub.f32 1.0, %v2581
    %v2583 = vmul.f32 %v2580, %v2582
    %v2584 = vadd.f32 %v2580, %v2583
    %vm2585 = vweird.f32 %v2579
    %vm2586 = vweird.f32 %v2580
    %vm2587 = vmor %vm2585, %vm2586
    %v2588 = vsel %vm2587, %v2580, %v2584
    %v2589 = vand.u32 2147483647, %v2579
    %vm2590 = vcmp.eq.f32.partialorder %v2589, 8.507059e+37
    %v2591 = vand.u32 %v2579, 2147483648
    %v2592 = vor.u32 1.1754944e-38, %v2591
    %v2593 = vsel %vm2590, %v2592, %v2588
    %v2594 = vmul.f32 1.0, %v2593
    %v2595 = vadd.f32 %v2465, %v2553
    %v2596 = vxor.u32 %v2595, 2147483648
    %v2597 = vmul.f32 %v2596, 1.442695
    %v2598 = vpow.pop %v2597
    %v2599 = vadd.f32 %v2598, 1.0
    %v2600 = vrcp.pop %v2599
    %v2601 = vmul.f32 %v2599, %v2600
    %v2602 = vsub.f32 1.0, %v2601
    %v2603 = vmul.f32 %v2600, %v2602
    %v2604 = vadd.f32 %v2600, %v2603
    %vm2605 = vweird.f32 %v2599
    %vm2606 = vweird.f32 %v2600
    %vm2607 = vmor %vm2605, %vm2606
    %v2608 = vsel %vm2607, %v2600, %v2604
    %v2609 = vand.u32 2147483647, %v2599
    %vm2610 = vcmp.eq.f32.partialorder %v2609, 8.507059e+37
    %v2611 = vand.u32 %v2599, 2147483648
    %v2612 = vor.u32 1.1754944e-38, %v2611
    %v2613 = vsel %vm2610, %v2612, %v2608
    %v2614 = vmul.f32 1.0, %v2613
    %v2615 = vadd.f32 %v2573, %v527
    %v2616 = vmul.f32 %v2594, %v2615
    %v2617 = vadd.f32 %v2466, %v2616
    %v2618 = vtanh.pop %v2617
    %v2619 = vsub.f32 1.0, %v2614
    %v2620 = vmul.f32 %v2619, %v2618
    %v2621 = vmul.f32 %v2614, %v2416
    %v2622 = vadd.f32 %v2620, %v2621
    %s2623 = scalar_lea.vmem [#allocation4], 32
    %v2624 = vld [vmem:[%s2623] sm:$0xff]
    %v2625 = vld [vmem:[#allocation7 + $0x20] sm:$0xff]
    %v2626 = vld [vmem:[#allocation7 + $0x28] sm:$0xff]
    %v2627 = vld [vmem:[#allocation7 + $0x30] sm:$0xff]
    %v2628 = vld [vmem:[#allocation7 + $0x38] sm:$0xff]
    %v2629 = vld [vmem:[#allocation7 + $0x40] sm:$0xff]
    %v2630 = vld [vmem:[#allocation7 + $0x48] sm:$0xff]
    %v2631 = vld [vmem:[#allocation7 + $0x50] sm:$0xff]
    %v2632 = vld [vmem:[#allocation7 + $0x58] sm:$0xff]
    %v2633 = vld [vmem:[#allocation7 + $0x60] sm:$0xff]
    %v2634 = vld [vmem:[#allocation7 + $0x68] sm:$0xff]
    %v2635 = vld [vmem:[#allocation7 + $0x70] sm:$0xff]
    %v2636 = vld [vmem:[#allocation7 + $0x78] sm:$0xff]
    %v2637 = vld [vmem:[#allocation7 + $0x80] sm:$0xff]
    %v2638 = vld [vmem:[#allocation7 + $0x88] sm:$0xff]
    %v2639 = vld [vmem:[#allocation7 + $0x90] sm:$0xff]
    %v2640 = vld [vmem:[#allocation7 + $0x98] sm:$0xff]
    %2641 = vmatpush.msra.mxu0 %v2640
    %2642 = vmatpush.msra.mxu0 %v2639
    %2643 = vmatpush.msra.mxu0 %v2638
    %2644 = vmatpush.msra.mxu0 %v2637
    %2645 = vmatpush.msra.mxu0 %v2636
    %2646 = vmatpush.msra.mxu0 %v2635
    %2647 = vmatpush.msra.mxu0 %v2634
    %2648 = vmatpush.msra.mxu0 %v2633
    %2649 = vmatpush.msra.mxu0 %v2632
    %2650 = vmatpush.msra.mxu0 %v2631
    %2651 = vmatpush.msra.mxu0 %v2630
    %2652 = vmatpush.msra.mxu0 %v2629
    %2653 = vmatpush.msra.mxu0 %v2628
    %2654 = vmatpush.msra.mxu0 %v2627
    %2655 = vmatpush.msra.mxu0 %v2626
    %2656 = vmatpush.msra.mxu0 %v2625
    %2657 = vmatmul.f32.gmra.mxu0 %v2622
    %v2658 = vpop.f32.mrf.mxu0
    %v2659 = vadd.f32 0.0, %v2658
    %2660 = vdwg.mxu0
    %v2661 = vadd.f32 %v2624, %v2659
    %v2662 = vadd.f32 %v2661, %v1635
    %s2663 = scalar_lea.vmem %s8, 32
    %2664 = vst [vmem:[%s2663] sm:$0xff] %v2662
    %s2665 = smul.addr %s1147, 8
    %s2666 = scalar_lea.vmem [#allocation3], %s2665
    %v2667 = vld [vmem:[%s2666] sm:$0xff]
    %v2668 = vld [vmem:[%s2666 + $0x8] sm:$0xff]
    %v2669 = vld [vmem:[%s2666 + $0x10] sm:$0xff]
    %v2670 = vadd.f32 %v2667, %v1555
    %v2671 = vadd.f32 %v2668, %v1575
    %v2672 = vadd.f32 %v2669, %v1595
    %v2673 = vld [vmem:[#allocation5 + $0x1e0] sm:$0xff]
    %v2674 = vld [vmem:[#allocation5 + $0x1e8] sm:$0xff]
    %v2675 = vld [vmem:[#allocation5 + $0x1f0] sm:$0xff]
    %v2676 = vld [vmem:[#allocation5 + $0x1f8] sm:$0xff]
    %v2677 = vld [vmem:[#allocation5 + $0x200] sm:$0xff]
    %v2678 = vld [vmem:[#allocation5 + $0x208] sm:$0xff]
    %v2679 = vld [vmem:[#allocation5 + $0x210] sm:$0xff]
    %v2680 = vld [vmem:[#allocation5 + $0x218] sm:$0xff]
    %v2681 = vld [vmem:[#allocation5 + $0x220] sm:$0xff]
    %v2682 = vld [vmem:[#allocation5 + $0x228] sm:$0xff]
    %v2683 = vld [vmem:[#allocation5 + $0x230] sm:$0xff]
    %v2684 = vld [vmem:[#allocation5 + $0x238] sm:$0xff]
    %v2685 = vld [vmem:[#allocation5 + $0x240] sm:$0xff]
    %v2686 = vld [vmem:[#allocation5 + $0x248] sm:$0xff]
    %v2687 = vld [vmem:[#allocation5 + $0x250] sm:$0xff]
    %v2688 = vld [vmem:[#allocation5 + $0x258] sm:$0xff]
    %v2689 = vld [vmem:[#allocation5 + $0x260] sm:$0xff]
    %v2690 = vld [vmem:[#allocation5 + $0x268] sm:$0xff]
    %v2691 = vld [vmem:[#allocation5 + $0x270] sm:$0xff]
    %v2692 = vld [vmem:[#allocation5 + $0x278] sm:$0xff]
    %v2693 = vld [vmem:[#allocation5 + $0x280] sm:$0xff]
    %v2694 = vld [vmem:[#allocation5 + $0x288] sm:$0xff]
    %v2695 = vld [vmem:[#allocation5 + $0x290] sm:$0xff]
    %v2696 = vld [vmem:[#allocation5 + $0x298] sm:$0xff]
    %v2697 = vld [vmem:[#allocation5 + $0x2a0] sm:$0xff]
    %v2698 = vld [vmem:[#allocation5 + $0x2a8] sm:$0xff]
    %v2699 = vld [vmem:[#allocation5 + $0x2b0] sm:$0xff]
    %v2700 = vld [vmem:[#allocation5 + $0x2b8] sm:$0xff]
    %v2701 = vld [vmem:[#allocation5 + $0x2c0] sm:$0xff]
    %v2702 = vld [vmem:[#allocation5 + $0x2c8] sm:$0xff]
    %v2703 = vld [vmem:[#allocation5 + $0x2d0] sm:$0xff]
    %v2704 = vld [vmem:[#allocation5 + $0x2d8] sm:$0xff]
    %v2705 = vld [vmem:[#allocation5 + $0x2e0] sm:$0xff]
    %v2706 = vld [vmem:[#allocation5 + $0x2e8] sm:$0xff]
    %v2707 = vld [vmem:[#allocation5 + $0x2f0] sm:$0xff]
    %v2708 = vld [vmem:[#allocation5 + $0x2f8] sm:$0xff]
    %v2709 = vld [vmem:[#allocation5 + $0x300] sm:$0xff]
    %v2710 = vld [vmem:[#allocation5 + $0x308] sm:$0xff]
    %v2711 = vld [vmem:[#allocation5 + $0x310] sm:$0xff]
    %v2712 = vld [vmem:[#allocation5 + $0x318] sm:$0xff]
    %v2713 = vld [vmem:[#allocation5 + $0x320] sm:$0xff]
    %v2714 = vld [vmem:[#allocation5 + $0x328] sm:$0xff]
    %v2715 = vld [vmem:[#allocation5 + $0x330] sm:$0xff]
    %v2716 = vld [vmem:[#allocation5 + $0x338] sm:$0xff]
    %v2717 = vld [vmem:[#allocation5 + $0x340] sm:$0xff]
    %v2718 = vld [vmem:[#allocation5 + $0x348] sm:$0xff]
    %v2719 = vld [vmem:[#allocation5 + $0x350] sm:$0xff]
    %v2720 = vld [vmem:[#allocation5 + $0x358] sm:$0xff]
    %2721 = vmatpush.msra.mxu0 %v2718
    %2722 = vmatpush.msra.mxu0 %v2715
    %2723 = vmatpush.msra.mxu0 %v2712
    %2724 = vmatpush.msra.mxu0 %v2709
    %2725 = vmatpush.msra.mxu0 %v2706
    %2726 = vmatpush.msra.mxu0 %v2703
    %2727 = vmatpush.msra.mxu0 %v2700
    %2728 = vmatpush.msra.mxu0 %v2697
    %2729 = vmatpush.msra.mxu0 %v2694
    %2730 = vmatpush.msra.mxu0 %v2691
    %2731 = vmatpush.msra.mxu0 %v2688
    %2732 = vmatpush.msra.mxu0 %v2685
    %2733 = vmatpush.msra.mxu0 %v2682
    %2734 = vmatpush.msra.mxu0 %v2679
    %2735 = vmatpush.msra.mxu0 %v2676
    %2736 = vmatpush.msra.mxu0 %v2673
    %2737 = vmatmul.f32.gmra.mxu0 %v2622
    %v2738 = vpop.f32.mrf.mxu0
    %v2739 = vadd.f32 0.0, %v2738
    %2740 = vdwg.mxu0
    %2741 = vmatpush.msra.mxu0 %v2719
    %2742 = vmatpush.msra.mxu0 %v2716
    %2743 = vmatpush.msra.mxu0 %v2713
    %2744 = vmatpush.msra.mxu0 %v2710
    %2745 = vmatpush.msra.mxu0 %v2707
    %2746 = vmatpush.msra.mxu0 %v2704
    %2747 = vmatpush.msra.mxu0 %v2701
    %2748 = vmatpush.msra.mxu0 %v2698
    %2749 = vmatpush.msra.mxu0 %v2695
    %2750 = vmatpush.msra.mxu0 %v2692
    %2751 = vmatpush.msra.mxu0 %v2689
    %2752 = vmatpush.msra.mxu0 %v2686
    %2753 = vmatpush.msra.mxu0 %v2683
    %2754 = vmatpush.msra.mxu0 %v2680
    %2755 = vmatpush.msra.mxu0 %v2677
    %2756 = vmatpush.msra.mxu0 %v2674
    %2757 = vmatmul.f32.gmra.mxu0 %v2622
    %v2758 = vpop.f32.mrf.mxu0
    %v2759 = vadd.f32 0.0, %v2758
    %2760 = vdwg.mxu0
    %2761 = vmatpush.msra.mxu0 %v2720
    %2762 = vmatpush.msra.mxu0 %v2717
    %2763 = vmatpush.msra.mxu0 %v2714
    %2764 = vmatpush.msra.mxu0 %v2711
    %2765 = vmatpush.msra.mxu0 %v2708
    %2766 = vmatpush.msra.mxu0 %v2705
    %2767 = vmatpush.msra.mxu0 %v2702
    %2768 = vmatpush.msra.mxu0 %v2699
    %2769 = vmatpush.msra.mxu0 %v2696
    %2770 = vmatpush.msra.mxu0 %v2693
    %2771 = vmatpush.msra.mxu0 %v2690
    %2772 = vmatpush.msra.mxu0 %v2687
    %2773 = vmatpush.msra.mxu0 %v2684
    %2774 = vmatpush.msra.mxu0 %v2681
    %2775 = vmatpush.msra.mxu0 %v2678
    %2776 = vmatpush.msra.mxu0 %v2675
    %2777 = vmatmul.f32.gmra.mxu0 %v2622
    %v2778 = vpop.f32.mrf.mxu0
    %v2779 = vadd.f32 0.0, %v2778
    %2780 = vdwg.mxu0
    %v2781 = vadd.f32 %v2670, %v2739
    %v2782 = vxor.u32 %v2781, 2147483648
    %v2783 = vmul.f32 %v2782, 1.442695
    %v2784 = vpow.pop %v2783
    %v2785 = vadd.f32 %v2784, 1.0
    %v2786 = vrcp.pop %v2785
    %v2787 = vmul.f32 %v2785, %v2786
    %v2788 = vsub.f32 1.0, %v2787
    %v2789 = vmul.f32 %v2786, %v2788
    %v2790 = vadd.f32 %v2786, %v2789
    %vm2791 = vweird.f32 %v2785
    %vm2792 = vweird.f32 %v2786
    %vm2793 = vmor %vm2791, %vm2792
    %v2794 = vsel %vm2793, %v2786, %v2790
    %v2795 = vand.u32 2147483647, %v2785
    %vm2796 = vcmp.eq.f32.partialorder %v2795, 8.507059e+37
    %v2797 = vand.u32 %v2785, 2147483648
    %v2798 = vor.u32 1.1754944e-38, %v2797
    %v2799 = vsel %vm2796, %v2798, %v2794
    %v2800 = vmul.f32 1.0, %v2799
    %v2801 = vadd.f32 %v2671, %v2759
    %v2802 = vxor.u32 %v2801, 2147483648
    %v2803 = vmul.f32 %v2802, 1.442695
    %v2804 = vpow.pop %v2803
    %v2805 = vadd.f32 %v2804, 1.0
    %v2806 = vrcp.pop %v2805
    %v2807 = vmul.f32 %v2805, %v2806
    %v2808 = vsub.f32 1.0, %v2807
    %v2809 = vmul.f32 %v2806, %v2808
    %v2810 = vadd.f32 %v2806, %v2809
    %vm2811 = vweird.f32 %v2805
    %vm2812 = vweird.f32 %v2806
    %vm2813 = vmor %vm2811, %vm2812
    %v2814 = vsel %vm2813, %v2806, %v2810
    %v2815 = vand.u32 2147483647, %v2805
    %vm2816 = vcmp.eq.f32.partialorder %v2815, 8.507059e+37
    %v2817 = vand.u32 %v2805, 2147483648
    %v2818 = vor.u32 1.1754944e-38, %v2817
    %v2819 = vsel %vm2816, %v2818, %v2814
    %v2820 = vmul.f32 1.0, %v2819
    %v2821 = vadd.f32 %v2779, %v527
    %v2822 = vmul.f32 %v2800, %v2821
    %v2823 = vadd.f32 %v2672, %v2822
    %v2824 = vtanh.pop %v2823
    %v2825 = vsub.f32 1.0, %v2820
    %v2826 = vmul.f32 %v2825, %v2824
    %v2827 = vmul.f32 %v2820, %v2622
    %v2828 = vadd.f32 %v2826, %v2827
    %s2829 = scalar_lea.vmem [#allocation4], 40
    %v2830 = vld [vmem:[%s2829] sm:$0xff]
    %v2831 = vld [vmem:[#allocation7 + $0x20] sm:$0xff]
    %v2832 = vld [vmem:[#allocation7 + $0x28] sm:$0xff]
    %v2833 = vld [vmem:[#allocation7 + $0x30] sm:$0xff]
    %v2834 = vld [vmem:[#allocation7 + $0x38] sm:$0xff]
    %v2835 = vld [vmem:[#allocation7 + $0x40] sm:$0xff]
    %v2836 = vld [vmem:[#allocation7 + $0x48] sm:$0xff]
    %v2837 = vld [vmem:[#allocation7 + $0x50] sm:$0xff]
    %v2838 = vld [vmem:[#allocation7 + $0x58] sm:$0xff]
    %v2839 = vld [vmem:[#allocation7 + $0x60] sm:$0xff]
    %v2840 = vld [vmem:[#allocation7 + $0x68] sm:$0xff]
    %v2841 = vld [vmem:[#allocation7 + $0x70] sm:$0xff]
    %v2842 = vld [vmem:[#allocation7 + $0x78] sm:$0xff]
    %v2843 = vld [vmem:[#allocation7 + $0x80] sm:$0xff]
    %v2844 = vld [vmem:[#allocation7 + $0x88] sm:$0xff]
    %v2845 = vld [vmem:[#allocation7 + $0x90] sm:$0xff]
    %v2846 = vld [vmem:[#allocation7 + $0x98] sm:$0xff]
    %2847 = vmatpush.msra.mxu0 %v2846
    %2848 = vmatpush.msra.mxu0 %v2845
    %2849 = vmatpush.msra.mxu0 %v2844
    %2850 = vmatpush.msra.mxu0 %v2843
    %2851 = vmatpush.msra.mxu0 %v2842
    %2852 = vmatpush.msra.mxu0 %v2841
    %2853 = vmatpush.msra.mxu0 %v2840
    %2854 = vmatpush.msra.mxu0 %v2839
    %2855 = vmatpush.msra.mxu0 %v2838
    %2856 = vmatpush.msra.mxu0 %v2837
    %2857 = vmatpush.msra.mxu0 %v2836
    %2858 = vmatpush.msra.mxu0 %v2835
    %2859 = vmatpush.msra.mxu0 %v2834
    %2860 = vmatpush.msra.mxu0 %v2833
    %2861 = vmatpush.msra.mxu0 %v2832
    %2862 = vmatpush.msra.mxu0 %v2831
    %2863 = vmatmul.f32.gmra.mxu0 %v2828
    %v2864 = vpop.f32.mrf.mxu0
    %v2865 = vadd.f32 0.0, %v2864
    %2866 = vdwg.mxu0
    %v2867 = vadd.f32 %v2830, %v2865
    %v2868 = vadd.f32 %v2867, %v1635
    %s2869 = scalar_lea.vmem %s8, 40
    %2870 = vst [vmem:[%s2869] sm:$0xff] %v2868
    %s2871 = smul.addr %s1261, 8
    %s2872 = scalar_lea.vmem [#allocation3], %s2871
    %v2873 = vld [vmem:[%s2872] sm:$0xff]
    %v2874 = vld [vmem:[%s2872 + $0x8] sm:$0xff]
    %v2875 = vld [vmem:[%s2872 + $0x10] sm:$0xff]
    %v2876 = vadd.f32 %v2873, %v1555
    %v2877 = vadd.f32 %v2874, %v1575
    %v2878 = vadd.f32 %v2875, %v1595
    %v2879 = vld [vmem:[#allocation5 + $0x1e0] sm:$0xff]
    %v2880 = vld [vmem:[#allocation5 + $0x1e8] sm:$0xff]
    %v2881 = vld [vmem:[#allocation5 + $0x1f0] sm:$0xff]
    %v2882 = vld [vmem:[#allocation5 + $0x1f8] sm:$0xff]
    %v2883 = vld [vmem:[#allocation5 + $0x200] sm:$0xff]
    %v2884 = vld [vmem:[#allocation5 + $0x208] sm:$0xff]
    %v2885 = vld [vmem:[#allocation5 + $0x210] sm:$0xff]
    %v2886 = vld [vmem:[#allocation5 + $0x218] sm:$0xff]
    %v2887 = vld [vmem:[#allocation5 + $0x220] sm:$0xff]
    %v2888 = vld [vmem:[#allocation5 + $0x228] sm:$0xff]
    %v2889 = vld [vmem:[#allocation5 + $0x230] sm:$0xff]
    %v2890 = vld [vmem:[#allocation5 + $0x238] sm:$0xff]
    %v2891 = vld [vmem:[#allocation5 + $0x240] sm:$0xff]
    %v2892 = vld [vmem:[#allocation5 + $0x248] sm:$0xff]
    %v2893 = vld [vmem:[#allocation5 + $0x250] sm:$0xff]
    %v2894 = vld [vmem:[#allocation5 + $0x258] sm:$0xff]
    %v2895 = vld [vmem:[#allocation5 + $0x260] sm:$0xff]
    %v2896 = vld [vmem:[#allocation5 + $0x268] sm:$0xff]
    %v2897 = vld [vmem:[#allocation5 + $0x270] sm:$0xff]
    %v2898 = vld [vmem:[#allocation5 + $0x278] sm:$0xff]
    %v2899 = vld [vmem:[#allocation5 + $0x280] sm:$0xff]
    %v2900 = vld [vmem:[#allocation5 + $0x288] sm:$0xff]
    %v2901 = vld [vmem:[#allocation5 + $0x290] sm:$0xff]
    %v2902 = vld [vmem:[#allocation5 + $0x298] sm:$0xff]
    %v2903 = vld [vmem:[#allocation5 + $0x2a0] sm:$0xff]
    %v2904 = vld [vmem:[#allocation5 + $0x2a8] sm:$0xff]
    %v2905 = vld [vmem:[#allocation5 + $0x2b0] sm:$0xff]
    %v2906 = vld [vmem:[#allocation5 + $0x2b8] sm:$0xff]
    %v2907 = vld [vmem:[#allocation5 + $0x2c0] sm:$0xff]
    %v2908 = vld [vmem:[#allocation5 + $0x2c8] sm:$0xff]
    %v2909 = vld [vmem:[#allocation5 + $0x2d0] sm:$0xff]
    %v2910 = vld [vmem:[#allocation5 + $0x2d8] sm:$0xff]
    %v2911 = vld [vmem:[#allocation5 + $0x2e0] sm:$0xff]
    %v2912 = vld [vmem:[#allocation5 + $0x2e8] sm:$0xff]
    %v2913 = vld [vmem:[#allocation5 + $0x2f0] sm:$0xff]
    %v2914 = vld [vmem:[#allocation5 + $0x2f8] sm:$0xff]
    %v2915 = vld [vmem:[#allocation5 + $0x300] sm:$0xff]
    %v2916 = vld [vmem:[#allocation5 + $0x308] sm:$0xff]
    %v2917 = vld [vmem:[#allocation5 + $0x310] sm:$0xff]
    %v2918 = vld [vmem:[#allocation5 + $0x318] sm:$0xff]
    %v2919 = vld [vmem:[#allocation5 + $0x320] sm:$0xff]
    %v2920 = vld [vmem:[#allocation5 + $0x328] sm:$0xff]
    %v2921 = vld [vmem:[#allocation5 + $0x330] sm:$0xff]
    %v2922 = vld [vmem:[#allocation5 + $0x338] sm:$0xff]
    %v2923 = vld [vmem:[#allocation5 + $0x340] sm:$0xff]
    %v2924 = vld [vmem:[#allocation5 + $0x348] sm:$0xff]
    %v2925 = vld [vmem:[#allocation5 + $0x350] sm:$0xff]
    %v2926 = vld [vmem:[#allocation5 + $0x358] sm:$0xff]
    %2927 = vmatpush.msra.mxu0 %v2924
    %2928 = vmatpush.msra.mxu0 %v2921
    %2929 = vmatpush.msra.mxu0 %v2918
    %2930 = vmatpush.msra.mxu0 %v2915
    %2931 = vmatpush.msra.mxu0 %v2912
    %2932 = vmatpush.msra.mxu0 %v2909
    %2933 = vmatpush.msra.mxu0 %v2906
    %2934 = vmatpush.msra.mxu0 %v2903
    %2935 = vmatpush.msra.mxu0 %v2900
    %2936 = vmatpush.msra.mxu0 %v2897
    %2937 = vmatpush.msra.mxu0 %v2894
    %2938 = vmatpush.msra.mxu0 %v2891
    %2939 = vmatpush.msra.mxu0 %v2888
    %2940 = vmatpush.msra.mxu0 %v2885
    %2941 = vmatpush.msra.mxu0 %v2882
    %2942 = vmatpush.msra.mxu0 %v2879
    %2943 = vmatmul.f32.gmra.mxu0 %v2828
    %v2944 = vpop.f32.mrf.mxu0
    %v2945 = vadd.f32 0.0, %v2944
    %2946 = vdwg.mxu0
    %2947 = vmatpush.msra.mxu0 %v2925
    %2948 = vmatpush.msra.mxu0 %v2922
    %2949 = vmatpush.msra.mxu0 %v2919
    %2950 = vmatpush.msra.mxu0 %v2916
    %2951 = vmatpush.msra.mxu0 %v2913
    %2952 = vmatpush.msra.mxu0 %v2910
    %2953 = vmatpush.msra.mxu0 %v2907
    %2954 = vmatpush.msra.mxu0 %v2904
    %2955 = vmatpush.msra.mxu0 %v2901
    %2956 = vmatpush.msra.mxu0 %v2898
    %2957 = vmatpush.msra.mxu0 %v2895
    %2958 = vmatpush.msra.mxu0 %v2892
    %2959 = vmatpush.msra.mxu0 %v2889
    %2960 = vmatpush.msra.mxu0 %v2886
    %2961 = vmatpush.msra.mxu0 %v2883
    %2962 = vmatpush.msra.mxu0 %v2880
    %2963 = vmatmul.f32.gmra.mxu0 %v2828
    %v2964 = vpop.f32.mrf.mxu0
    %v2965 = vadd.f32 0.0, %v2964
    %2966 = vdwg.mxu0
    %2967 = vmatpush.msra.mxu0 %v2926
    %2968 = vmatpush.msra.mxu0 %v2923
    %2969 = vmatpush.msra.mxu0 %v2920
    %2970 = vmatpush.msra.mxu0 %v2917
    %2971 = vmatpush.msra.mxu0 %v2914
    %2972 = vmatpush.msra.mxu0 %v2911
    %2973 = vmatpush.msra.mxu0 %v2908
    %2974 = vmatpush.msra.mxu0 %v2905
    %2975 = vmatpush.msra.mxu0 %v2902
    %2976 = vmatpush.msra.mxu0 %v2899
    %2977 = vmatpush.msra.mxu0 %v2896
    %2978 = vmatpush.msra.mxu0 %v2893
    %2979 = vmatpush.msra.mxu0 %v2890
    %2980 = vmatpush.msra.mxu0 %v2887
    %2981 = vmatpush.msra.mxu0 %v2884
    %2982 = vmatpush.msra.mxu0 %v2881
    %2983 = vmatmul.f32.gmra.mxu0 %v2828
    %v2984 = vpop.f32.mrf.mxu0
    %v2985 = vadd.f32 0.0, %v2984
    %2986 = vdwg.mxu0
    %v2987 = vadd.f32 %v2876, %v2945
    %v2988 = vxor.u32 %v2987, 2147483648
    %v2989 = vmul.f32 %v2988, 1.442695
    %v2990 = vpow.pop %v2989
    %v2991 = vadd.f32 %v2990, 1.0
    %v2992 = vrcp.pop %v2991
    %v2993 = vmul.f32 %v2991, %v2992
    %v2994 = vsub.f32 1.0, %v2993
    %v2995 = vmul.f32 %v2992, %v2994
    %v2996 = vadd.f32 %v2992, %v2995
    %vm2997 = vweird.f32 %v2991
    %vm2998 = vweird.f32 %v2992
    %vm2999 = vmor %vm2997, %vm2998
    %v3000 = vsel %vm2999, %v2992, %v2996
    %v3001 = vand.u32 2147483647, %v2991
    %vm3002 = vcmp.eq.f32.partialorder %v3001, 8.507059e+37
    %v3003 = vand.u32 %v2991, 2147483648
    %v3004 = vor.u32 1.1754944e-38, %v3003
    %v3005 = vsel %vm3002, %v3004, %v3000
    %v3006 = vmul.f32 1.0, %v3005
    %v3007 = vadd.f32 %v2877, %v2965
    %v3008 = vxor.u32 %v3007, 2147483648
    %v3009 = vmul.f32 %v3008, 1.442695
    %v3010 = vpow.pop %v3009
    %v3011 = vadd.f32 %v3010, 1.0
    %v3012 = vrcp.pop %v3011
    %v3013 = vmul.f32 %v3011, %v3012
    %v3014 = vsub.f32 1.0, %v3013
    %v3015 = vmul.f32 %v3012, %v3014
    %v3016 = vadd.f32 %v3012, %v3015
    %vm3017 = vweird.f32 %v3011
    %vm3018 = vweird.f32 %v3012
    %vm3019 = vmor %vm3017, %vm3018
    %v3020 = vsel %vm3019, %v3012, %v3016
    %v3021 = vand.u32 2147483647, %v3011
    %vm3022 = vcmp.eq.f32.partialorder %v3021, 8.507059e+37
    %v3023 = vand.u32 %v3011, 2147483648
    %v3024 = vor.u32 1.1754944e-38, %v3023
    %v3025 = vsel %vm3022, %v3024, %v3020
    %v3026 = vmul.f32 1.0, %v3025
    %v3027 = vadd.f32 %v2985, %v527
    %v3028 = vmul.f32 %v3006, %v3027
    %v3029 = vadd.f32 %v2878, %v3028
    %v3030 = vtanh.pop %v3029
    %v3031 = vsub.f32 1.0, %v3026
    %v3032 = vmul.f32 %v3031, %v3030
    %v3033 = vmul.f32 %v3026, %v2828
    %v3034 = vadd.f32 %v3032, %v3033
    %s3035 = scalar_lea.vmem [#allocation4], 48
    %v3036 = vld [vmem:[%s3035] sm:$0xff]
    %v3037 = vld [vmem:[#allocation7 + $0x20] sm:$0xff]
    %v3038 = vld [vmem:[#allocation7 + $0x28] sm:$0xff]
    %v3039 = vld [vmem:[#allocation7 + $0x30] sm:$0xff]
    %v3040 = vld [vmem:[#allocation7 + $0x38] sm:$0xff]
    %v3041 = vld [vmem:[#allocation7 + $0x40] sm:$0xff]
    %v3042 = vld [vmem:[#allocation7 + $0x48] sm:$0xff]
    %v3043 = vld [vmem:[#allocation7 + $0x50] sm:$0xff]
    %v3044 = vld [vmem:[#allocation7 + $0x58] sm:$0xff]
    %v3045 = vld [vmem:[#allocation7 + $0x60] sm:$0xff]
    %v3046 = vld [vmem:[#allocation7 + $0x68] sm:$0xff]
    %v3047 = vld [vmem:[#allocation7 + $0x70] sm:$0xff]
    %v3048 = vld [vmem:[#allocation7 + $0x78] sm:$0xff]
    %v3049 = vld [vmem:[#allocation7 + $0x80] sm:$0xff]
    %v3050 = vld [vmem:[#allocation7 + $0x88] sm:$0xff]
    %v3051 = vld [vmem:[#allocation7 + $0x90] sm:$0xff]
    %v3052 = vld [vmem:[#allocation7 + $0x98] sm:$0xff]
    %3053 = vmatpush.msra.mxu0 %v3052
    %3054 = vmatpush.msra.mxu0 %v3051
    %3055 = vmatpush.msra.mxu0 %v3050
    %3056 = vmatpush.msra.mxu0 %v3049
    %3057 = vmatpush.msra.mxu0 %v3048
    %3058 = vmatpush.msra.mxu0 %v3047
    %3059 = vmatpush.msra.mxu0 %v3046
    %3060 = vmatpush.msra.mxu0 %v3045
    %3061 = vmatpush.msra.mxu0 %v3044
    %3062 = vmatpush.msra.mxu0 %v3043
    %3063 = vmatpush.msra.mxu0 %v3042
    %3064 = vmatpush.msra.mxu0 %v3041
    %3065 = vmatpush.msra.mxu0 %v3040
    %3066 = vmatpush.msra.mxu0 %v3039
    %3067 = vmatpush.msra.mxu0 %v3038
    %3068 = vmatpush.msra.mxu0 %v3037
    %3069 = vmatmul.f32.gmra.mxu0 %v3034
    %v3070 = vpop.f32.mrf.mxu0
    %v3071 = vadd.f32 0.0, %v3070
    %3072 = vdwg.mxu0
    %v3073 = vadd.f32 %v3036, %v3071
    %v3074 = vadd.f32 %v3073, %v1635
    %s3075 = scalar_lea.vmem %s8, 48
    %3076 = vst [vmem:[%s3075] sm:$0xff] %v3074
    // Predicated region
    $region42: #{gru_seq2seq_forward.1} parent=1 // pred_check
      _
    $region43: #{gru_seq2seq_forward.1} parent=1 // pred_check_branch
      %3078 = sbr.rel (0) target = $region45
    $region44: #{gru_seq2seq_forward.1} parent=1 // pred_region
      _
    $region45: #{gru_seq2seq_forward.1} parent=1 // pred_fallthru
      _
    // Predicated region
    $region46: #{gru_seq2seq_forward.1} parent=1 // pred_check
      _
    $region47: #{gru_seq2seq_forward.1} parent=1 // pred_check_branch
      %3080 = sbr.rel (0) target = $region49
    $region48: #{gru_seq2seq_forward.1} parent=1 // pred_region
      _
    $region49: #{gru_seq2seq_forward.1} parent=1 // pred_fallthru
      _
    %3081 = vsyncpa [#allocation6], 1
    %3082 = vsyncpa [#allocation8], 1

</llo_original>
